<compile_context>
chip_gen: v6e
topology: v6e:2x2x1
jax: 0.10.0
libtpu: 0.0.40
codegen_flags: <defaults>
</compile_context>

<pallas_src>
import functools
import math

import jax
import jax.numpy as jnp
from jax.experimental import pallas as pl
from jax.experimental.pallas import tpu as pltpu

_VMEM_LIMIT_BYTES = 48 * 1024 * 1024  # < v7x's 64 MiB physical, > default scoped limits


# ---------------------------------------------------------------------------
# In-kernel helpers (traced inside Pallas kernels)
# ---------------------------------------------------------------------------

def _ln(x, g, b, eps=1e-5):
    """LayerNorm over the last axis. x: (M, E) f32; g, b: (1, E) f32."""
    mean = jnp.mean(x, axis=-1, keepdims=True)
    var = jnp.mean(jnp.square(x - mean), axis=-1, keepdims=True)
    return (x - mean) * jax.lax.rsqrt(var + eps) * g + b


def _split_heads(x2d, n_head, n_batch, seq_len):
    """(n_batch*seq, E) f32 -> (n_head*n_batch, seq, dk), batch dim n = h*n_batch + b.

    Built from static column slices stacked along a new leading axis (no middle-dim
    transposes, which Mosaic does not lower well)."""
    e = x2d.shape[-1]
    dk = e // n_head
    stacked = jnp.stack([x2d[:, h * dk:(h + 1) * dk] for h in range(n_head)],
                        axis=0)                       # (H, n_batch*seq, dk)
    return stacked.reshape(n_head * n_batch, seq_len, dk)


def _attention(q2d, k2d, v2d, bias, wfc, bfc, *, n_head, n_batch, scale):
    """All-head attention + fc_out for a folded batch of rows.

    q2d: (n_batch*Lq, E) f32; k2d/v2d: (n_batch*Lk, E) f32.
    bias: f32 additive mask broadcastable to (n_head*n_batch, Lq, Lk)
          (0 where attendable, -1e20 where masked; applied unscaled, which is
          numerically equivalent to torch's masked_fill + /sqrt(d_model)).
    wfc: (E, E) bf16; bfc: (1, E) f32.  Returns fc_out(attention): (n_batch*Lq, E) f32.
    """
    e = q2d.shape[-1]
    dk = e // n_head
    lq = q2d.shape[0] // n_batch
    lk = k2d.shape[0] // n_batch

    # 1/sqrt(d_model) folded into Q (scales an (M, E) tensor, not the score matrix).
    qh = _split_heads(q2d * scale, n_head, n_batch, lq).astype(jnp.bfloat16)
    kh = _split_heads(k2d, n_head, n_batch, lk).astype(jnp.bfloat16)
    vh = _split_heads(v2d, n_head, n_batch, lk).astype(jnp.bfloat16)

    # Scores for every (head, batch) pair in one batched MXU einsum, f32 accumulation.
    s = jnp.einsum('nqd,nkd->nqk', qh, kh, preferred_element_type=jnp.float32)
    s = s + bias
    s = s - jnp.max(s, axis=-1, keepdims=True)
    p = jnp.exp(s)
    p = p * pl.reciprocal(jnp.sum(p, axis=-1, keepdims=True), approx=True)
    o = jnp.einsum('nqk,nkd->nqd', p.astype(jnp.bfloat16), vh,
                   preferred_element_type=jnp.float32)

    # fc_out folded per head: accumulate lane-dense (M, E) slabs instead of a
    # lane-axis concat of dk-wide head outputs followed by one (E, E) matmul.
    o = o.reshape(n_head, n_batch * lq, dk)
    acc = jnp.dot(o[0].astype(jnp.bfloat16), wfc[0:dk, :],
                  preferred_element_type=jnp.float32)
    for h in range(1, n_head):
        acc = acc + jnp.dot(o[h].astype(jnp.bfloat16),
                            wfc[h * dk:(h + 1) * dk, :],
                            preferred_element_type=jnp.float32)
    return acc + bfc


def _ffn_ln_block(attn, resid, g1, b1, wff1, bff1, wff2, bff2, g2, b2):
    """Residual + LN1 -> FFN(LeakyReLU) -> residual + LN2 (dropout == identity)."""
    y = _ln(attn + resid, g1, b1)
    h = jnp.dot(y.astype(jnp.bfloat16), wff1,
                preferred_element_type=jnp.float32) + bff1
    h = jnp.where(h >= 0, h, jnp.float32(0.01) * h)       # nn.LeakyReLU(0.01)
    f = jnp.dot(h.astype(jnp.bfloat16), wff2,
                preferred_element_type=jnp.float32) + bff2
    return _ln(f + y, g2, b2)


def _pad_bias(mask, n_head, n_batch, s_len):
    """(Bblk, 1, S) 0/1 mask -> (H*Bblk, 1, S) additive bias (0 / -1e20)."""
    bias = (mask - 1.0) * jnp.float32(1e20)               # (Bblk, 1, S)
    return jnp.concatenate([bias] * n_head, axis=0)       # n = h*Bblk + b ordering


# ---------------------------------------------------------------------------
# Pallas kernels
# ---------------------------------------------------------------------------

def _enc_block_kernel(x_ref, mask_ref,
                      wqkv_ref, wfc_ref, bfc_ref,
                      g1_ref, b1_ref, wff1_ref, bff1_ref, wff2_ref, bff2_ref,
                      g2_ref, b2_ref, o_ref, *, n_head, scale):
    """Self-attention TransformerBlock (encoder layer) for a (Bblk, S, E) block."""
    bblk, s_len, e = x_ref.shape
    x = x_ref[...].reshape(bblk * s_len, e)                # bf16, batch folded into M
    x_f32 = x.astype(jnp.float32)

    qkv = jnp.dot(x, wqkv_ref[...], preferred_element_type=jnp.float32)   # (M, 3E)
    q, k, v = qkv[:, :e], qkv[:, e:2 * e], qkv[:, 2 * e:]

    bias = _pad_bias(mask_ref[...], n_head, bblk, s_len)
    attn = _attention(q, k, v, bias, wfc_ref[...], bfc_ref[...],
                      n_head=n_head, n_batch=bblk, scale=scale)

    out = _ffn_ln_block(attn, x_f32, g1_ref[...], b1_ref[...],
                        wff1_ref[...], bff1_ref[...], wff2_ref[...], bff2_ref[...],
                        g2_ref[...], b2_ref[...])
    o_ref[...] = out.reshape(bblk, s_len, e).astype(jnp.bfloat16)


def _dec_layer_kernel(y_ref, enc_ref, mask_ref,
                      swqkv_ref, swfc_ref, sbfc_ref, sg_ref, sb_ref,
                      cwq_ref, cwkv_ref, cwfc_ref, cbfc_ref,
                      g1_ref, b1_ref, wff1_ref, bff1_ref, wff2_ref, bff2_ref,
                      g2_ref, b2_ref, o_ref, *, n_head, scale):
    """Fused decoder layer: causal self-attn + LN, then cross-attention block."""
    bblk, t_len, e = y_ref.shape
    s_len = enc_ref.shape[1]
    y = y_ref[...].reshape(bblk * t_len, e)                # bf16
    y_f32 = y.astype(jnp.float32)

    # ---- masked self-attention + residual + LayerNorm (prologue, fused) ----
    qkv = jnp.dot(y, swqkv_ref[...], preferred_element_type=jnp.float32)
    q, k, v = qkv[:, :e], qkv[:, e:2 * e], qkv[:, 2 * e:]
    row = jax.lax.broadcasted_iota(jnp.int32, (t_len, t_len), 0)
    col = jax.lax.broadcasted_iota(jnp.int32, (t_len, t_len), 1)
    causal = jnp.where(row >= col, jnp.float32(0.0), jnp.float32(-1e20))   # (T, T)
    sattn = _attention(q, k, v, causal, swfc_ref[...], sbfc_ref[...],
                       n_head=n_head, n_batch=bblk, scale=scale)
    qx = _ln(sattn + y_f32, sg_ref[...], sb_ref[...])      # (M, E) f32 stays in VMEM

    # ---- cross-attention TransformerBlock ----
    enc = enc_ref[...].reshape(bblk * s_len, e)            # bf16
    qc = jnp.dot(qx.astype(jnp.bfloat16), cwq_ref[...],
                 preferred_element_type=jnp.float32)
    kv = jnp.dot(enc, cwkv_ref[...], preferred_element_type=jnp.float32)
    kc, vc = kv[:, :e], kv[:, e:]
    bias = _pad_bias(mask_ref[...], n_head, bblk, s_len)
    cattn = _attention(qc, kc, vc, bias, cwfc_ref[...], cbfc_ref[...],
                       n_head=n_head, n_batch=bblk, scale=scale)

    out = _ffn_ln_block(cattn, qx, g1_ref[...], b1_ref[...],
                        wff1_ref[...], bff1_ref[...], wff2_ref[...], bff2_ref[...],
                        g2_ref[...], b2_ref[...])
    o_ref[...] = out.reshape(bblk, t_len, e).astype(jnp.bfloat16)


def _classifier_kernel(x_ref, w_ref, b_ref, o_ref):
    """(tm, E)bf16 @ (E, tn)bf16 + (1, tn)f32 -> (tm, tn)f32, lane-dense tiles."""
    o_ref[...] = jnp.dot(x_ref[...], w_ref[...],
                         preferred_element_type=jnp.float32) + b_ref[...]


# ---------------------------------------------------------------------------
# pallas_call wrappers
# ---------------------------------------------------------------------------

def _const_spec(shape):
    """Full-array BlockSpec, constant across the grid (weights / biases).

    TODO(synk): at realistic sizes mark these pipeline_mode=pl.Buffered(1) so the
    grid-invariant weights are single-buffered (halves their VMEM on v7x)."""
    nd = len(shape)
    return pl.BlockSpec(shape, lambda *_, _nd=nd: (0,) * _nd)


def _pick_bblk(batch, seq, target_m=256):
    """Largest divisor of `batch` keeping the folded matmul M (= bblk*seq) <= target."""
    for cand in range(batch, 0, -1):
        if batch % cand == 0 and cand * seq <= max(target_m, seq):
            return cand
    return 1


def _pick_tile(n, cap, align):
    """Largest align-multiple tile <= cap dividing n (or full n if it already fits)."""
    if n <= cap:
        return n
    start = min(cap, n)
    start -= start % align
    for t in range(start, 0, -align):
        if n % t == 0:
            return t
    return n


def encoder_block_forward(p, x, src_mask, n_head):
    """x: (B, S, E) bf16; src_mask: (B, 1, S) f32 (1 = attendable, 0 = pad)."""
    b, s, e = x.shape
    bblk = _pick_bblk(b, s)
    scale = 1.0 / math.sqrt(e)                 # reference scales by sqrt(d_model)
    kernel = functools.partial(_enc_block_kernel, n_head=n_head, scale=scale)
    return pl.pallas_call(
        kernel,
        out_shape=jax.ShapeDtypeStruct((b, s, e), jnp.bfloat16),
        grid=(b // bblk,),
        in_specs=[
            pl.BlockSpec((bblk, s, e), lambda i: (i, 0, 0)),
            pl.BlockSpec((bblk, 1, s), lambda i: (i, 0, 0)),
            _const_spec(p["wqkv"].shape), _const_spec(p["wfc"].shape),
            _const_spec(p["bfc"].shape),
            _const_spec(p["ln1"]["g"].shape), _const_spec(p["ln1"]["b"].shape),
            _const_spec(p["ff1_w"].shape), _const_spec(p["ff1_b"].shape),
            _const_spec(p["ff2_w"].shape), _const_spec(p["ff2_b"].shape),
            _const_spec(p["ln2"]["g"].shape), _const_spec(p["ln2"]["b"].shape),
        ],
        out_specs=pl.BlockSpec((bblk, s, e), lambda i: (i, 0, 0)),
        compiler_params=pltpu.CompilerParams(
            dimension_semantics=("parallel",),
            vmem_limit_bytes=_VMEM_LIMIT_BYTES),
    )(x, src_mask, p["wqkv"], p["wfc"], p["bfc"],
      p["ln1"]["g"], p["ln1"]["b"], p["ff1_w"], p["ff1_b"],
      p["ff2_w"], p["ff2_b"], p["ln2"]["g"], p["ln2"]["b"])


def decoder_layer_forward(p, y, enc_out, src_mask, n_head):
    """y: (B, T, E) bf16; enc_out: (B, S, E) bf16; src_mask: (B, 1, S) f32."""
    b, t, e = y.shape
    s = enc_out.shape[1]
    bblk = _pick_bblk(b, max(t, s))
    scale = 1.0 / math.sqrt(e)
    kernel = functools.partial(_dec_layer_kernel, n_head=n_head, scale=scale)
    return pl.pallas_call(
        kernel,
        out_shape=jax.ShapeDtypeStruct((b, t, e), jnp.bfloat16),
        grid=(b // bblk,),
        in_specs=[
            pl.BlockSpec((bblk, t, e), lambda i: (i, 0, 0)),
            pl.BlockSpec((bblk, s, e), lambda i: (i, 0, 0)),
            pl.BlockSpec((bblk, 1, s), lambda i: (i, 0, 0)),
            _const_spec(p["self_wqkv"].shape), _const_spec(p["self_wfc"].shape),
            _const_spec(p["self_bfc"].shape),
            _const_spec(p["self_ln"]["g"].shape), _const_spec(p["self_ln"]["b"].shape),
            _const_spec(p["cross_wq"].shape), _const_spec(p["cross_wkv"].shape),
            _const_spec(p["cross_wfc"].shape), _const_spec(p["cross_bfc"].shape),
            _const_spec(p["ln1"]["g"].shape), _const_spec(p["ln1"]["b"].shape),
            _const_spec(p["ff1_w"].shape), _const_spec(p["ff1_b"].shape),
            _const_spec(p["ff2_w"].shape), _const_spec(p["ff2_b"].shape),
            _const_spec(p["ln2"]["g"].shape), _const_spec(p["ln2"]["b"].shape),
        ],
        out_specs=pl.BlockSpec((bblk, t, e), lambda i: (i, 0, 0)),
        compiler_params=pltpu.CompilerParams(
            dimension_semantics=("parallel",),
            vmem_limit_bytes=_VMEM_LIMIT_BYTES),
    )(y, enc_out, src_mask,
      p["self_wqkv"], p["self_wfc"], p["self_bfc"],
      p["self_ln"]["g"], p["self_ln"]["b"],
      p["cross_wq"], p["cross_wkv"], p["cross_wfc"], p["cross_bfc"],
      p["ln1"]["g"], p["ln1"]["b"], p["ff1_w"], p["ff1_b"],
      p["ff2_w"], p["ff2_b"], p["ln2"]["g"], p["ln2"]["b"])


def classifier_forward(x2d, w, b):
    """x2d: (M, E) bf16; w: (E, Vp) bf16 with Vp a multiple of 128; b: (1, Vp) f32."""
    m, e = x2d.shape
    vp = w.shape[1]
    tm = _pick_tile(m, 256, 8)
    tn = _pick_tile(vp, 512, 128)
    return pl.pallas_call(
        _classifier_kernel,
        out_shape=jax.ShapeDtypeStruct((m, vp), jnp.float32),
        grid=(m // tm, vp // tn),
        in_specs=[
            pl.BlockSpec((tm, e), lambda i, j: (i, 0)),
            pl.BlockSpec((e, tn), lambda i, j: (0, j)),
            pl.BlockSpec((1, tn), lambda i, j: (0, j)),
        ],
        out_specs=pl.BlockSpec((tm, tn), lambda i, j: (i, j)),
        compiler_params=pltpu.CompilerParams(
            dimension_semantics=("parallel", "parallel"),
            vmem_limit_bytes=_VMEM_LIMIT_BYTES),
    )(x2d, w, b)


# ---------------------------------------------------------------------------
# Parameter init (deterministic, synthetic; weights stored bf16 for the MXU)
# ---------------------------------------------------------------------------

def _winit(key, d_in, d_out):
    return jax.random.normal(key, (d_in, d_out), jnp.float32) * 0.02


def _ln_init(d):
    return {"g": jnp.ones((1, d), jnp.float32), "b": jnp.zeros((1, d), jnp.float32)}


def _ffn_ln_init(key, d, fe):
    k1, k2, k3, k4 = jax.random.split(key, 4)
    return {
        "ln1": _ln_init(d),
        "ff1_w": _winit(k1, d, fe * d).astype(jnp.bfloat16),
        "ff1_b": _winit(k2, 1, fe * d),
        "ff2_w": _winit(k3, fe * d, d).astype(jnp.bfloat16),
        "ff2_b": _winit(k4, 1, d),
        "ln2": _ln_init(d),
    }


def _enc_block_init(key, d, fe):
    k1, k2, k3, k4 = jax.random.split(key, 4)
    p = {
        "wqkv": _winit(k1, d, 3 * d).astype(jnp.bfloat16),   # merged Q|K|V (self-attn)
        "wfc": _winit(k2, d, d).astype(jnp.bfloat16),
        "bfc": _winit(k3, 1, d),
    }
    p.update(_ffn_ln_init(k4, d, fe))
    return p


def _dec_block_init(key, d, fe):
    ks = jax.random.split(key, 8)
    p = {
        "self_wqkv": _winit(ks[0], d, 3 * d).astype(jnp.bfloat16),
        "self_wfc": _winit(ks[1], d, d).astype(jnp.bfloat16),
        "self_bfc": _winit(ks[2], 1, d),
        "self_ln": _ln_init(d),
        "cross_wq": _winit(ks[3], d, d).astype(jnp.bfloat16),
        "cross_wkv": _winit(ks[4], d, 2 * d).astype(jnp.bfloat16),   # merged K|V (cross)
        "cross_wfc": _winit(ks[5], d, d).astype(jnp.bfloat16),
        "cross_bfc": _winit(ks[6], 1, d),
    }
    p.update(_ffn_ln_init(ks[7], d, fe))
    return p


def init_transformer(key, cfg):
    e, fe, v = cfg["embed"], cfg["fe"], cfg["tgt_vocab"]
    ke, kd = jax.random.split(key)
    ke_we, ke_pe, *ke_layers = jax.random.split(ke, 2 + cfg["n_layers"])
    kd_we, kd_pe, kd_fw, kd_fb, *kd_layers = jax.random.split(kd, 4 + cfg["n_layers"])

    # Classifier padded to a lane-dense (multiple-of-128) output width.
    vp = ((v + 127) // 128) * 128
    fc_w = jnp.zeros((e, vp), jnp.float32).at[:, :v].set(_winit(kd_fw, e, v))
    fc_b = jnp.zeros((1, vp), jnp.float32).at[:, :v].set(_winit(kd_fb, 1, v))

    return {
        "enc": {
            "we": jax.random.normal(ke_we, (cfg["src_vocab"], e), jnp.float32) * 0.02,
            "pe": jax.random.normal(ke_pe, (cfg["max_len"], e), jnp.float32) * 0.02,
            "layers": [_enc_block_init(k, e, fe) for k in ke_layers],
        },
        "dec": {
            "we": jax.random.normal(kd_we, (v, e), jnp.float32) * 0.02,
            "pe": jax.random.normal(kd_pe, (cfg["max_len"], e), jnp.float32) * 0.02,
            "layers": [_dec_block_init(k, e, fe) for k in kd_layers],
            "fc_w": fc_w.astype(jnp.bfloat16),
            "fc_b": fc_b,
        },
    }


# ---------------------------------------------------------------------------
# Forward pass (fused Pallas kernels + thin JAX glue)
# ---------------------------------------------------------------------------

def transformer_forward(params, source, target, cfg):
    b, s = source.shape
    _, t = target.shape
    e, h, v = cfg["embed"], cfg["n_heads"], cfg["tgt_vocab"]

    # Compact (B, 1, S) padding-mask flags; additive biases and the causal mask are
    # generated inside the kernels (no (B, L, L) bias in HBM).
    src_mask = (source != cfg["src_pad"]).astype(jnp.float32)[:, None, :]

    # Embeddings in plain JAX; inter-layer activations carried as bf16.
    # TODO(synk): dropout layers are treated as identity (eval-mode semantics);
    # embedding lookup could become a Pallas scalar-prefetch gather.
    x = (params["enc"]["we"][source]
         + params["enc"]["pe"][jnp.arange(s)][None]).astype(jnp.bfloat16)
    for lp in params["enc"]["layers"]:
        x = encoder_block_forward(lp, x, src_mask, h)
    enc_out = x

    y = (params["dec"]["we"][target]
         + params["dec"]["pe"][jnp.arange(t)][None]).astype(jnp.bfloat16)
    for lp in params["dec"]["layers"]:
        y = decoder_layer_forward(lp, y, enc_out, src_mask, h)

    logits = classifier_forward(y.reshape(b * t, e),
                                params["dec"]["fc_w"], params["dec"]["fc_b"])
    return logits[:, :v].reshape(b, t, v)


# ---------------------------------------------------------------------------
# Main
# ---------------------------------------------------------------------------

if __name__ == "__main__":
    cfg = {
        "src_vocab": 50,
        "tgt_vocab": 60,
        "src_pad": 0,
        "tgt_pad": 0,
        "embed": 32,
        "n_layers": 2,
        "fe": 2,          # forward_expansion
        "n_heads": 4,
        "max_len": 16,
    }

    key = jax.random.PRNGKey(0)
    kp, ks, kt = jax.random.split(key, 3)
    params = init_transformer(kp, cfg)

    B, S, T = 2, 8, 8
    source = jax.random.randint(ks, (B, S), 1, cfg["src_vocab"], dtype=jnp.int32)
    target = jax.random.randint(kt, (B, T), 1, cfg["tgt_vocab"], dtype=jnp.int32)
    # add a padding token to exercise the source mask
    source = source.at[0, -1].set(cfg["src_pad"])

    fwd = jax.jit(functools.partial(transformer_forward, cfg=cfg))
    out = jax.block_until_ready(fwd(params, source, target))

    assert out.shape == (B, T, cfg["tgt_vocab"])
    assert bool(jnp.all(jnp.isfinite(out)))
    print("KERNEL_OK")
</pallas_src>

<mosaic_0001>
module attributes {stable_mosaic.version = 11 : i64} {
  func.func @_classifier_kernel(%arg0: i32, %arg1: i32, %arg2: memref<16x32xbf16, #tpu.memory_space<vmem>>, %arg3: memref<32x128xbf16, #tpu.memory_space<vmem>>, %arg4: memref<1x128xf32, #tpu.memory_space<vmem>>, %arg5: memref<16x128xf32, #tpu.memory_space<vmem>>) attributes {dimension_semantics = [#tpu.dimension_semantics<parallel>, #tpu.dimension_semantics<parallel>], iteration_bounds = array<i64: 1, 1>, scalar_prefetch = 0 : i64, scratch_operands = 0 : i64, tpu.core_type = #tpu.core_type<tc>, window_params = [{transform_indices = @transform_0, window_bounds = array<i64: 16, 32>}, {transform_indices = @transform_1, window_bounds = array<i64: 32, 128>}, {transform_indices = @transform_2, window_bounds = array<i64: 1, 128>}, {transform_indices = @transform_3, window_bounds = array<i64: 16, 128>}]} {
    %c0 = arith.constant 0 : index
    %c0_0 = arith.constant 0 : index
    %0 = vector.load %arg2[%c0, %c0_0] : memref<16x32xbf16, #tpu.memory_space<vmem>>, vector<16x32xbf16>
    %c0_1 = arith.constant 0 : index
    %c0_2 = arith.constant 0 : index
    %1 = vector.load %arg3[%c0_1, %c0_2] : memref<32x128xbf16, #tpu.memory_space<vmem>>, vector<32x128xbf16>
    %cst = arith.constant dense<0.000000e+00> : vector<16x128xf32>
    %2 = tpu.matmul %0, %1, %cst {dimension_numbers = #tpu.dot_dimension_numbers<[1], [0], [0], [1], [0, 0, 1, 1], [], []>} : vector<16x32xbf16>, vector<32x128xbf16>, vector<16x128xf32> -> vector<16x128xf32>
    %c0_3 = arith.constant 0 : index
    %c0_4 = arith.constant 0 : index
    %3 = vector.load %arg4[%c0_3, %c0_4] : memref<1x128xf32, #tpu.memory_space<vmem>>, vector<1x128xf32>
    %4 = vector.broadcast %3 : vector<1x128xf32> to vector<16x128xf32>
    %5 = arith.addf %2, %4 : vector<16x128xf32>
    %c0_5 = arith.constant 0 : index
    %c0_6 = arith.constant 0 : index
    %6 = vector.load %arg5[%c0_5, %c0_6] : memref<16x128xf32, #tpu.memory_space<vmem>>, vector<16x128xf32>
    tpu.vector_store %arg5[%c0_5, %c0_6], %5 {strides = array<i32>} : memref<16x128xf32, #tpu.memory_space<vmem>>, vector<16x128xf32>,
    return
  }
  func.func @transform_0(%arg0: i32, %arg1: i32) -> (i32, i32) {
    %c0_i32 = arith.constant 0 : i32
    %c0_i32_0 = arith.constant 0 : i32
    return %arg0, %c0_i32 : i32, i32
  }
  func.func @transform_1(%arg0: i32, %arg1: i32) -> (i32, i32) {
    %c0_i32 = arith.constant 0 : i32
    %c0_i32_0 = arith.constant 0 : i32
    return %c0_i32, %arg1 : i32, i32
  }
  func.func @transform_2(%arg0: i32, %arg1: i32) -> (i32, i32) {
    %c0_i32 = arith.constant 0 : i32
    %c0_i32_0 = arith.constant 0 : i32
    return %c0_i32, %arg1 : i32, i32
  }
  func.func @transform_3(%arg0: i32, %arg1: i32) -> (i32, i32) {
    %c0_i32 = arith.constant 0 : i32
    return %arg0, %arg1 : i32, i32
  }
}

module attributes {stable_mosaic.version = 11 : i64} {
  func.func @_enc_block_kernel(%arg0: i32, %arg1: memref<2x8x32xbf16, #tpu.memory_space<vmem>>, %arg2: memref<2x1x8xf32, #tpu.memory_space<vmem>>, %arg3: memref<32x96xbf16, #tpu.memory_space<vmem>>, %arg4: memref<32x32xbf16, #tpu.memory_space<vmem>>, %arg5: memref<1x32xf32, #tpu.memory_space<vmem>>, %arg6: memref<1x32xf32, #tpu.memory_space<vmem>>, %arg7: memref<1x32xf32, #tpu.memory_space<vmem>>, %arg8: memref<32x64xbf16, #tpu.memory_space<vmem>>, %arg9: memref<1x64xf32, #tpu.memory_space<vmem>>, %arg10: memref<64x32xbf16, #tpu.memory_space<vmem>>, %arg11: memref<1x32xf32, #tpu.memory_space<vmem>>, %arg12: memref<1x32xf32, #tpu.memory_space<vmem>>, %arg13: memref<1x32xf32, #tpu.memory_space<vmem>>, %arg14: memref<2x8x32xbf16, #tpu.memory_space<vmem>>) attributes {dimension_semantics = [#tpu.dimension_semantics<parallel>], iteration_bounds = array<i64: 1>, scalar_prefetch = 0 : i64, scratch_operands = 0 : i64, tpu.core_type = #tpu.core_type<tc>, window_params = [{transform_indices = @transform_0, window_bounds = array<i64: 2, 8, 32>}, {transform_indices = @transform_1, window_bounds = array<i64: 2, 1, 8>}, {pipeline_mode = #tpu.pipeline_mode<synchronous>, transform_indices = @transform_2, window_bounds = array<i64: 32, 96>}, {pipeline_mode = #tpu.pipeline_mode<synchronous>, transform_indices = @transform_3, window_bounds = array<i64: 32, 32>}, {pipeline_mode = #tpu.pipeline_mode<synchronous>, transform_indices = @transform_4, window_bounds = array<i64: 1, 32>}, {pipeline_mode = #tpu.pipeline_mode<synchronous>, transform_indices = @transform_5, window_bounds = array<i64: 1, 32>}, {pipeline_mode = #tpu.pipeline_mode<synchronous>, transform_indices = @transform_6, window_bounds = array<i64: 1, 32>}, {pipeline_mode = #tpu.pipeline_mode<synchronous>, transform_indices = @transform_7, window_bounds = array<i64: 32, 64>}, {pipeline_mode = #tpu.pipeline_mode<synchronous>, transform_indices = @transform_8, window_bounds = array<i64: 1, 64>}, {pipeline_mode = #tpu.pipeline_mode<synchronous>, transform_indices = @transform_9, window_bounds = array<i64: 64, 32>}, {pipeline_mode = #tpu.pipeline_mode<synchronous>, transform_indices = @transform_10, window_bounds = array<i64: 1, 32>}, {pipeline_mode = #tpu.pipeline_mode<synchronous>, transform_indices = @transform_11, window_bounds = array<i64: 1, 32>}, {pipeline_mode = #tpu.pipeline_mode<synchronous>, transform_indices = @transform_12, window_bounds = array<i64: 1, 32>}, {transform_indices = @transform_13, window_bounds = array<i64: 2, 8, 32>}]} {
    %c0 = arith.constant 0 : index
    %c0_0 = arith.constant 0 : index
    %c0_1 = arith.constant 0 : index
    %0 = vector.load %arg1[%c0, %c0_0, %c0_1] : memref<2x8x32xbf16, #tpu.memory_space<vmem>>, vector<2x8x32xbf16>
    %1 = vector.shape_cast %0 : vector<2x8x32xbf16> to vector<16x32xbf16>
    %2 = arith.extf %1 : vector<16x32xbf16> to vector<16x32xf32>
    %c0_2 = arith.constant 0 : index
    %c0_3 = arith.constant 0 : index
    %3 = vector.load %arg3[%c0_2, %c0_3] : memref<32x96xbf16, #tpu.memory_space<vmem>>, vector<32x96xbf16>
    %cst = arith.constant dense<0.000000e+00> : vector<16x96xf32>
    %4 = tpu.matmul %1, %3, %cst {dimension_numbers = #tpu.dot_dimension_numbers<[1], [0], [0], [1], [0, 0, 1, 1], [], []>} : vector<16x32xbf16>, vector<32x96xbf16>, vector<16x96xf32> -> vector<16x96xf32>
    %5 = vector.extract_strided_slice %4 {offsets = [0, 0], sizes = [16, 32], strides = [1, 1]} : vector<16x96xf32> to vector<16x32xf32>
    %6 = vector.extract_strided_slice %4 {offsets = [0, 32], sizes = [16, 32], strides = [1, 1]} : vector<16x96xf32> to vector<16x32xf32>
    %7 = vector.extract_strided_slice %4 {offsets = [0, 64], sizes = [16, 32], strides = [1, 1]} : vector<16x96xf32> to vector<16x32xf32>
    %c0_4 = arith.constant 0 : index
    %c0_5 = arith.constant 0 : index
    %c0_6 = arith.constant 0 : index
    %8 = vector.load %arg2[%c0_4, %c0_5, %c0_6] : memref<2x1x8xf32, #tpu.memory_space<vmem>>, vector<2x1x8xf32>
    %cst_7 = arith.constant 1.000000e+00 : f32
    %9 = vector.broadcast %cst_7 : f32 to vector<2x1x8xf32>
    %10 = arith.subf %8, %9 : vector<2x1x8xf32>
    %cst_8 = arith.constant 1.000000e+20 : f32
    %11 = vector.broadcast %cst_8 : f32 to vector<2x1x8xf32>
    %12 = arith.mulf %10, %11 : vector<2x1x8xf32>
    %13 = tpu.concatenate %12, %12, %12, %12 in 0 : vector<2x1x8xf32>, vector<2x1x8xf32>, vector<2x1x8xf32>, vector<2x1x8xf32> -> vector<8x1x8xf32>
    %c0_9 = arith.constant 0 : index
    %c0_10 = arith.constant 0 : index
    %14 = vector.load %arg4[%c0_9, %c0_10] : memref<32x32xbf16, #tpu.memory_space<vmem>>, vector<32x32xbf16>
    %c0_11 = arith.constant 0 : index
    %c0_12 = arith.constant 0 : index
    %15 = vector.load %arg5[%c0_11, %c0_12] : memref<1x32xf32, #tpu.memory_space<vmem>>, vector<1x32xf32>
    %cst_13 = arith.constant 0.176776692 : f32
    %16 = vector.broadcast %cst_13 : f32 to vector<16x32xf32>
    %17 = arith.mulf %5, %16 : vector<16x32xf32>
    %18 = vector.extract_strided_slice %17 {offsets = [0, 0], sizes = [16, 8], strides = [1, 1]} : vector<16x32xf32> to vector<16x8xf32>
    %19 = vector.extract_strided_slice %17 {offsets = [0, 8], sizes = [16, 8], strides = [1, 1]} : vector<16x32xf32> to vector<16x8xf32>
    %20 = vector.extract_strided_slice %17 {offsets = [0, 16], sizes = [16, 8], strides = [1, 1]} : vector<16x32xf32> to vector<16x8xf32>
    %21 = vector.extract_strided_slice %17 {offsets = [0, 24], sizes = [16, 8], strides = [1, 1]} : vector<16x32xf32> to vector<16x8xf32>
    %22 = vector.shape_cast %18 : vector<16x8xf32> to vector<1x16x8xf32>
    %23 = vector.shape_cast %19 : vector<16x8xf32> to vector<1x16x8xf32>
    %24 = vector.shape_cast %20 : vector<16x8xf32> to vector<1x16x8xf32>
    %25 = vector.shape_cast %21 : vector<16x8xf32> to vector<1x16x8xf32>
    %26 = tpu.concatenate %22, %23, %24, %25 in 0 : vector<1x16x8xf32>, vector<1x16x8xf32>, vector<1x16x8xf32>, vector<1x16x8xf32> -> vector<4x16x8xf32>
    %27 = vector.shape_cast %26 : vector<4x16x8xf32> to vector<8x8x8xf32>
    %28 = arith.truncf %27 : vector<8x8x8xf32> to vector<8x8x8xbf16>
    %29 = vector.extract_strided_slice %6 {offsets = [0, 0], sizes = [16, 8], strides = [1, 1]} : vector<16x32xf32> to vector<16x8xf32>
    %30 = vector.extract_strided_slice %6 {offsets = [0, 8], sizes = [16, 8], strides = [1, 1]} : vector<16x32xf32> to vector<16x8xf32>
    %31 = vector.extract_strided_slice %6 {offsets = [0, 16], sizes = [16, 8], strides = [1, 1]} : vector<16x32xf32> to vector<16x8xf32>
    %32 = vector.extract_strided_slice %6 {offsets = [0, 24], sizes = [16, 8], strides = [1, 1]} : vector<16x32xf32> to vector<16x8xf32>
    %33 = vector.shape_cast %29 : vector<16x8xf32> to vector<1x16x8xf32>
    %34 = vector.shape_cast %30 : vector<16x8xf32> to vector<1x16x8xf32>
    %35 = vector.shape_cast %31 : vector<16x8xf32> to vector<1x16x8xf32>
    %36 = vector.shape_cast %32 : vector<16x8xf32> to vector<1x16x8xf32>
    %37 = tpu.concatenate %33, %34, %35, %36 in 0 : vector<1x16x8xf32>, vector<1x16x8xf32>, vector<1x16x8xf32>, vector<1x16x8xf32> -> vector<4x16x8xf32>
    %38 = vector.shape_cast %37 : vector<4x16x8xf32> to vector<8x8x8xf32>
    %39 = arith.truncf %38 : vector<8x8x8xf32> to vector<8x8x8xbf16>
    %40 = vector.extract_strided_slice %7 {offsets = [0, 0], sizes = [16, 8], strides = [1, 1]} : vector<16x32xf32> to vector<16x8xf32>
    %41 = vector.extract_strided_slice %7 {offsets = [0, 8], sizes = [16, 8], strides = [1, 1]} : vector<16x32xf32> to vector<16x8xf32>
    %42 = vector.extract_strided_slice %7 {offsets = [0, 16], sizes = [16, 8], strides = [1, 1]} : vector<16x32xf32> to vector<16x8xf32>
    %43 = vector.extract_strided_slice %7 {offsets = [0, 24], sizes = [16, 8], strides = [1, 1]} : vector<16x32xf32> to vector<16x8xf32>
    %44 = vector.shape_cast %40 : vector<16x8xf32> to vector<1x16x8xf32>
    %45 = vector.shape_cast %41 : vector<16x8xf32> to vector<1x16x8xf32>
    %46 = vector.shape_cast %42 : vector<16x8xf32> to vector<1x16x8xf32>
    %47 = vector.shape_cast %43 : vector<16x8xf32> to vector<1x16x8xf32>
    %48 = tpu.concatenate %44, %45, %46, %47 in 0 : vector<1x16x8xf32>, vector<1x16x8xf32>, vector<1x16x8xf32>, vector<1x16x8xf32> -> vector<4x16x8xf32>
    %49 = vector.shape_cast %48 : vector<4x16x8xf32> to vector<8x8x8xf32>
    %50 = arith.truncf %49 : vector<8x8x8xf32> to vector<8x8x8xbf16>
    "tpu.trace_start"() <{level = 10 : i32, message = "nqd,nkd->nqk"}> : () -> ()
    %cst_14 = arith.constant dense<0.000000e+00> : vector<8x8x8xf32>
    %51 = tpu.matmul %28, %39, %cst_14 {dimension_numbers = #tpu.dot_dimension_numbers<[2], [2], [1], [1], [0, 0, 0, 1, 1, 1], [0], [0]>} : vector<8x8x8xbf16>, vector<8x8x8xbf16>, vector<8x8x8xf32> -> vector<8x8x8xf32>
    "tpu.trace_stop"() : () -> ()
    %52 = vector.broadcast %13 : vector<8x1x8xf32> to vector<8x8x8xf32>
    %53 = arith.addf %51, %52 : vector<8x8x8xf32>
    %cst_15 = arith.constant dense<0xFF800000> : vector<8x8xf32>
    %54 = vector.multi_reduction <maximumf>, %53, %cst_15 [2] : vector<8x8x8xf32> to vector<8x8xf32>
    %55 = vector.shape_cast %54 : vector<8x8xf32> to vector<8x8x1xf32>
    %56 = vector.broadcast %55 : vector<8x8x1xf32> to vector<8x8x8xf32>
    %57 = arith.subf %53, %56 : vector<8x8x8xf32>
    %58 = math.exp %57 : vector<8x8x8xf32>
    %cst_16 = arith.constant dense<0.000000e+00> : vector<8x8xf32>
    %59 = vector.multi_reduction <add>, %58, %cst_16 [2] : vector<8x8x8xf32> to vector<8x8xf32>
    %60 = vector.shape_cast %59 : vector<8x8xf32> to vector<8x8x1xf32>
    %61 = tpu.reciprocal %60 {approx = true} : vector<8x8x1xf32> -> vector<8x8x1xf32>
    %62 = vector.broadcast %61 : vector<8x8x1xf32> to vector<8x8x8xf32>
    %63 = arith.mulf %58, %62 : vector<8x8x8xf32>
    %64 = arith.truncf %63 : vector<8x8x8xf32> to vector<8x8x8xbf16>
    "tpu.trace_start"() <{level = 10 : i32, message = "nqk,nkd->nqd"}> : () -> ()
    %cst_17 = arith.constant dense<0.000000e+00> : vector<8x8x8xf32>
    %65 = tpu.matmul %64, %50, %cst_17 {dimension_numbers = #tpu.dot_dimension_numbers<[2], [1], [1], [2], [0, 0, 0, 1, 1, 2], [0], [0]>} : vector<8x8x8xbf16>, vector<8x8x8xbf16>, vector<8x8x8xf32> -> vector<8x8x8xf32>
    "tpu.trace_stop"() : () -> ()
    %66 = vector.shape_cast %65 : vector<8x8x8xf32> to vector<4x16x8xf32>
    %67 = vector.extract_strided_slice %66 {offsets = [0, 0, 0], sizes = [1, 16, 8], strides = [1, 1, 1]} : vector<4x16x8xf32> to vector<1x16x8xf32>
    %68 = vector.shape_cast %67 : vector<1x16x8xf32> to vector<16x8xf32>
    %69 = arith.truncf %68 : vector<16x8xf32> to vector<16x8xbf16>
    %70 = vector.extract_strided_slice %14 {offsets = [0, 0], sizes = [8, 32], strides = [1, 1]} : vector<32x32xbf16> to vector<8x32xbf16>
    %cst_18 = arith.constant dense<0.000000e+00> : vector<16x32xf32>
    %71 = tpu.matmul %69, %70, %cst_18 {dimension_numbers = #tpu.dot_dimension_numbers<[1], [0], [0], [1], [0, 0, 1, 1], [], []>} : vector<16x8xbf16>, vector<8x32xbf16>, vector<16x32xf32> -> vector<16x32xf32>
    %72 = vector.extract_strided_slice %66 {offsets = [1, 0, 0], sizes = [1, 16, 8], strides = [1, 1, 1]} : vector<4x16x8xf32> to vector<1x16x8xf32>
    %73 = vector.shape_cast %72 : vector<1x16x8xf32> to vector<16x8xf32>
    %74 = arith.truncf %73 : vector<16x8xf32> to vector<16x8xbf16>
    %75 = vector.extract_strided_slice %14 {offsets = [8, 0], sizes = [8, 32], strides = [1, 1]} : vector<32x32xbf16> to vector<8x32xbf16>
    %cst_19 = arith.constant dense<0.000000e+00> : vector<16x32xf32>
    %76 = tpu.matmul %74, %75, %cst_19 {dimension_numbers = #tpu.dot_dimension_numbers<[1], [0], [0], [1], [0, 0, 1, 1], [], []>} : vector<16x8xbf16>, vector<8x32xbf16>, vector<16x32xf32> -> vector<16x32xf32>
    %77 = arith.addf %71, %76 : vector<16x32xf32>
    %78 = vector.extract_strided_slice %66 {offsets = [2, 0, 0], sizes = [1, 16, 8], strides = [1, 1, 1]} : vector<4x16x8xf32> to vector<1x16x8xf32>
    %79 = vector.shape_cast %78 : vector<1x16x8xf32> to vector<16x8xf32>
    %80 = arith.truncf %79 : vector<16x8xf32> to vector<16x8xbf16>
    %81 = vector.extract_strided_slice %14 {offsets = [16, 0], sizes = [8, 32], strides = [1, 1]} : vector<32x32xbf16> to vector<8x32xbf16>
    %cst_20 = arith.constant dense<0.000000e+00> : vector<16x32xf32>
    %82 = tpu.matmul %80, %81, %cst_20 {dimension_numbers = #tpu.dot_dimension_numbers<[1], [0], [0], [1], [0, 0, 1, 1], [], []>} : vector<16x8xbf16>, vector<8x32xbf16>, vector<16x32xf32> -> vector<16x32xf32>
    %83 = arith.addf %77, %82 : vector<16x32xf32>
    %84 = vector.extract_strided_slice %66 {offsets = [3, 0, 0], sizes = [1, 16, 8], strides = [1, 1, 1]} : vector<4x16x8xf32> to vector<1x16x8xf32>
    %85 = vector.shape_cast %84 : vector<1x16x8xf32> to vector<16x8xf32>
    %86 = arith.truncf %85 : vector<16x8xf32> to vector<16x8xbf16>
    %87 = vector.extract_strided_slice %14 {offsets = [24, 0], sizes = [8, 32], strides = [1, 1]} : vector<32x32xbf16> to vector<8x32xbf16>
    %cst_21 = arith.constant dense<0.000000e+00> : vector<16x32xf32>
    %88 = tpu.matmul %86, %87, %cst_21 {dimension_numbers = #tpu.dot_dimension_numbers<[1], [0], [0], [1], [0, 0, 1, 1], [], []>} : vector<16x8xbf16>, vector<8x32xbf16>, vector<16x32xf32> -> vector<16x32xf32>
    %89 = arith.addf %83, %88 : vector<16x32xf32>
    %90 = vector.broadcast %15 : vector<1x32xf32> to vector<16x32xf32>
    %91 = arith.addf %89, %90 : vector<16x32xf32>
    %c0_22 = arith.constant 0 : index
    %c0_23 = arith.constant 0 : index
    %92 = vector.load %arg6[%c0_22, %c0_23] : memref<1x32xf32, #tpu.memory_space<vmem>>, vector<1x32xf32>
    %c0_24 = arith.constant 0 : index
    %c0_25 = arith.constant 0 : index
    %93 = vector.load %arg7[%c0_24, %c0_25] : memref<1x32xf32, #tpu.memory_space<vmem>>, vector<1x32xf32>
    %c0_26 = arith.constant 0 : index
    %c0_27 = arith.constant 0 : index
    %94 = vector.load %arg8[%c0_26, %c0_27] : memref<32x64xbf16, #tpu.memory_space<vmem>>, vector<32x64xbf16>
    %c0_28 = arith.constant 0 : index
    %c0_29 = arith.constant 0 : index
    %95 = vector.load %arg9[%c0_28, %c0_29] : memref<1x64xf32, #tpu.memory_space<vmem>>, vector<1x64xf32>
    %c0_30 = arith.constant 0 : index
    %c0_31 = arith.constant 0 : index
    %96 = vector.load %arg10[%c0_30, %c0_31] : memref<64x32xbf16, #tpu.memory_space<vmem>>, vector<64x32xbf16>
    %c0_32 = arith.constant 0 : index
    %c0_33 = arith.constant 0 : index
    %97 = vector.load %arg11[%c0_32, %c0_33] : memref<1x32xf32, #tpu.memory_space<vmem>>, vector<1x32xf32>
    %c0_34 = arith.constant 0 : index
    %c0_35 = arith.constant 0 : index
    %98 = vector.load %arg12[%c0_34, %c0_35] : memref<1x32xf32, #tpu.memory_space<vmem>>, vector<1x32xf32>
    %c0_36 = arith.constant 0 : index
    %c0_37 = arith.constant 0 : index
    %99 = vector.load %arg13[%c0_36, %c0_37] : memref<1x32xf32, #tpu.memory_space<vmem>>, vector<1x32xf32>
    %100 = arith.addf %91, %2 : vector<16x32xf32>
    %cst_38 = arith.constant dense<0.000000e+00> : vector<16xf32>
    %101 = vector.multi_reduction <add>, %100, %cst_38 [1] : vector<16x32xf32> to vector<16xf32>
    %102 = vector.shape_cast %101 : vector<16xf32> to vector<16x1xf32>
    %cst_39 = arith.constant 3.200000e+01 : f32
    %103 = vector.broadcast %cst_39 : f32 to vector<16x1xf32>
    %104 = arith.divf %102, %103 : vector<16x1xf32>
    %105 = vector.broadcast %104 : vector<16x1xf32> to vector<16x32xf32>
    %106 = arith.subf %100, %105 : vector<16x32xf32>
    %107 = arith.mulf %106, %106 : vector<16x32xf32>
    %cst_40 = arith.constant dense<0.000000e+00> : vector<16xf32>
    %108 = vector.multi_reduction <add>, %107, %cst_40 [1] : vector<16x32xf32> to vector<16xf32>
    %109 = vector.shape_cast %108 : vector<16xf32> to vector<16x1xf32>
    %cst_41 = arith.constant 3.200000e+01 : f32
    %110 = vector.broadcast %cst_41 : f32 to vector<16x1xf32>
    %111 = arith.divf %109, %110 : vector<16x1xf32>
    %112 = vector.broadcast %104 : vector<16x1xf32> to vector<16x32xf32>
    %113 = arith.subf %100, %112 : vector<16x32xf32>
    %cst_42 = arith.constant 9.99999974E-6 : f32
    %114 = vector.broadcast %cst_42 : f32 to vector<16x1xf32>
    %115 = arith.addf %111, %114 : vector<16x1xf32>
    %116 = math.rsqrt %115 : vector<16x1xf32>
    %117 = vector.broadcast %116 : vector<16x1xf32> to vector<16x32xf32>
    %118 = arith.mulf %113, %117 : vector<16x32xf32>
    %119 = vector.broadcast %92 : vector<1x32xf32> to vector<16x32xf32>
    %120 = arith.mulf %118, %119 : vector<16x32xf32>
    %121 = vector.broadcast %93 : vector<1x32xf32> to vector<16x32xf32>
    %122 = arith.addf %120, %121 : vector<16x32xf32>
    %123 = arith.truncf %122 : vector<16x32xf32> to vector<16x32xbf16>
    %cst_43 = arith.constant dense<0.000000e+00> : vector<16x64xf32>
    %124 = tpu.matmul %123, %94, %cst_43 {dimension_numbers = #tpu.dot_dimension_numbers<[1], [0], [0], [1], [0, 0, 1, 1], [], []>} : vector<16x32xbf16>, vector<32x64xbf16>, vector<16x64xf32> -> vector<16x64xf32>
    %125 = vector.broadcast %95 : vector<1x64xf32> to vector<16x64xf32>
    %126 = arith.addf %124, %125 : vector<16x64xf32>
    %cst_44 = arith.constant 0.000000e+00 : f32
    %127 = vector.broadcast %cst_44 : f32 to vector<16x64xf32>
    %128 = arith.cmpf oge, %126, %127 : vector<16x64xf32>
    %cst_45 = arith.constant 0.00999999977 : f32
    %129 = vector.broadcast %cst_45 : f32 to vector<16x64xf32>
    %130 = arith.mulf %129, %126 : vector<16x64xf32>
    %131 = arith.select %128, %126, %130 : vector<16x64xi1>, vector<16x64xf32>
    %132 = arith.truncf %131 : vector<16x64xf32> to vector<16x64xbf16>
    %cst_46 = arith.constant dense<0.000000e+00> : vector<16x32xf32>
    %133 = tpu.matmul %132, %96, %cst_46 {dimension_numbers = #tpu.dot_dimension_numbers<[1], [0], [0], [1], [0, 0, 1, 1], [], []>} : vector<16x64xbf16>, vector<64x32xbf16>, vector<16x32xf32> -> vector<16x32xf32>
    %134 = vector.broadcast %97 : vector<1x32xf32> to vector<16x32xf32>
    %135 = arith.addf %133, %134 : vector<16x32xf32>
    %136 = arith.addf %135, %122 : vector<16x32xf32>
    %cst_47 = arith.constant dense<0.000000e+00> : vector<16xf32>
    %137 = vector.multi_reduction <add>, %136, %cst_47 [1] : vector<16x32xf32> to vector<16xf32>
    %138 = vector.shape_cast %137 : vector<16xf32> to vector<16x1xf32>
    %cst_48 = arith.constant 3.200000e+01 : f32
    %139 = vector.broadcast %cst_48 : f32 to vector<16x1xf32>
    %140 = arith.divf %138, %139 : vector<16x1xf32>
    %141 = vector.broadcast %140 : vector<16x1xf32> to vector<16x32xf32>
    %142 = arith.subf %136, %141 : vector<16x32xf32>
    %143 = arith.mulf %142, %142 : vector<16x32xf32>
    %cst_49 = arith.constant dense<0.000000e+00> : vector<16xf32>
    %144 = vector.multi_reduction <add>, %143, %cst_49 [1] : vector<16x32xf32> to vector<16xf32>
    %145 = vector.shape_cast %144 : vector<16xf32> to vector<16x1xf32>
    %cst_50 = arith.constant 3.200000e+01 : f32
    %146 = vector.broadcast %cst_50 : f32 to vector<16x1xf32>
    %147 = arith.divf %145, %146 : vector<16x1xf32>
    %148 = vector.broadcast %140 : vector<16x1xf32> to vector<16x32xf32>
    %149 = arith.subf %136, %148 : vector<16x32xf32>
    %cst_51 = arith.constant 9.99999974E-6 : f32
    %150 = vector.broadcast %cst_51 : f32 to vector<16x1xf32>
    %151 = arith.addf %147, %150 : vector<16x1xf32>
    %152 = math.rsqrt %151 : vector<16x1xf32>
    %153 = vector.broadcast %152 : vector<16x1xf32> to vector<16x32xf32>
    %154 = arith.mulf %149, %153 : vector<16x32xf32>
    %155 = vector.broadcast %98 : vector<1x32xf32> to vector<16x32xf32>
    %156 = arith.mulf %154, %155 : vector<16x32xf32>
    %157 = vector.broadcast %99 : vector<1x32xf32> to vector<16x32xf32>
    %158 = arith.addf %156, %157 : vector<16x32xf32>
    %159 = vector.shape_cast %158 : vector<16x32xf32> to vector<2x8x32xf32>
    %160 = arith.truncf %159 : vector<2x8x32xf32> to vector<2x8x32xbf16>
    %c0_52 = arith.constant 0 : index
    %c0_53 = arith.constant 0 : index
    %c0_54 = arith.constant 0 : index
    %161 = vector.load %arg14[%c0_52, %c0_53, %c0_54] : memref<2x8x32xbf16, #tpu.memory_space<vmem>>, vector<2x8x32xbf16>
    tpu.vector_store %arg14[%c0_52, %c0_53, %c0_54], %160 {strides = array<i32>} : memref<2x8x32xbf16, #tpu.memory_space<vmem>>, vector<2x8x32xbf16>,
    return
  }
  func.func @transform_0(%arg0: i32) -> (i32, i32, i32) {
    %c0_i32 = arith.constant 0 : i32
    %c0_i32_0 = arith.constant 0 : i32
    %c0_i32_1 = arith.constant 0 : i32
    return %arg0, %c0_i32, %c0_i32_0 : i32, i32, i32
  }
  func.func @transform_1(%arg0: i32) -> (i32, i32, i32) {
    %c0_i32 = arith.constant 0 : i32
    %c0_i32_0 = arith.constant 0 : i32
    %c0_i32_1 = arith.constant 0 : i32
    return %arg0, %c0_i32, %c0_i32_0 : i32, i32, i32
  }
  func.func @transform_2(%arg0: i32) -> (i32, i32) {
    %c0_i32 = arith.constant 0 : i32
    %c0_i32_0 = arith.constant 0 : i32
    %c0_i32_1 = arith.constant 0 : i32
    return %c0_i32, %c0_i32_0 : i32, i32
  }
  func.func @transform_3(%arg0: i32) -> (i32, i32) {
    %c0_i32 = arith.constant 0 : i32
    %c0_i32_0 = arith.constant 0 : i32
    %c0_i32_1 = arith.constant 0 : i32
    return %c0_i32, %c0_i32_0 : i32, i32
  }
  func.func @transform_4(%arg0: i32) -> (i32, i32) {
    %c0_i32 = arith.constant 0 : i32
    %c0_i32_0 = arith.constant 0 : i32
    %c0_i32_1 = arith.constant 0 : i32
    return %c0_i32, %c0_i32_0 : i32, i32
  }
  func.func @transform_5(%arg0: i32) -> (i32, i32) {
    %c0_i32 = arith.constant 0 : i32
    %c0_i32_0 = arith.constant 0 : i32
    %c0_i32_1 = arith.constant 0 : i32
    return %c0_i32, %c0_i32_0 : i32, i32
  }
  func.func @transform_6(%arg0: i32) -> (i32, i32) {
    %c0_i32 = arith.constant 0 : i32
    %c0_i32_0 = arith.constant 0 : i32
    %c0_i32_1 = arith.constant 0 : i32
    return %c0_i32, %c0_i32_0 : i32, i32
  }
  func.func @transform_7(%arg0: i32) -> (i32, i32) {
    %c0_i32 = arith.constant 0 : i32
    %c0_i32_0 = arith.constant 0 : i32
    %c0_i32_1 = arith.constant 0 : i32
    return %c0_i32, %c0_i32_0 : i32, i32
  }
  func.func @transform_8(%arg0: i32) -> (i32, i32) {
    %c0_i32 = arith.constant 0 : i32
    %c0_i32_0 = arith.constant 0 : i32
    %c0_i32_1 = arith.constant 0 : i32
    return %c0_i32, %c0_i32_0 : i32, i32
  }
  func.func @transform_9(%arg0: i32) -> (i32, i32) {
    %c0_i32 = arith.constant 0 : i32
    %c0_i32_0 = arith.constant 0 : i32
    %c0_i32_1 = arith.constant 0 : i32
    return %c0_i32, %c0_i32_0 : i32, i32
  }
  func.func @transform_10(%arg0: i32) -> (i32, i32) {
    %c0_i32 = arith.constant 0 : i32
    %c0_i32_0 = arith.constant 0 : i32
    %c0_i32_1 = arith.constant 0 : i32
    return %c0_i32, %c0_i32_0 : i32, i32
  }
  func.func @transform_11(%arg0: i32) -> (i32, i32) {
    %c0_i32 = arith.constant 0 : i32
    %c0_i32_0 = arith.constant 0 : i32
    %c0_i32_1 = arith.constant 0 : i32
    return %c0_i32, %c0_i32_0 : i32, i32
  }
  func.func @transform_12(%arg0: i32) -> (i32, i32) {
    %c0_i32 = arith.constant 0 : i32
    %c0_i32_0 = arith.constant 0 : i32
    %c0_i32_1 = arith.constant 0 : i32
    return %c0_i32, %c0_i32_0 : i32, i32
  }
  func.func @transform_13(%arg0: i32) -> (i32, i32, i32) {
    %c0_i32 = arith.constant 0 : i32
    %c0_i32_0 = arith.constant 0 : i32
    %c0_i32_1 = arith.constant 0 : i32
    return %arg0, %c0_i32, %c0_i32_0 : i32, i32, i32
  }
}

module attributes {stable_mosaic.version = 11 : i64} {
  func.func @_dec_layer_kernel(%arg0: i32, %arg1: memref<2x8x32xbf16, #tpu.memory_space<vmem>>, %arg2: memref<2x8x32xbf16, #tpu.memory_space<vmem>>, %arg3: memref<2x1x8xf32, #tpu.memory_space<vmem>>, %arg4: memref<32x96xbf16, #tpu.memory_space<vmem>>, %arg5: memref<32x32xbf16, #tpu.memory_space<vmem>>, %arg6: memref<1x32xf32, #tpu.memory_space<vmem>>, %arg7: memref<1x32xf32, #tpu.memory_space<vmem>>, %arg8: memref<1x32xf32, #tpu.memory_space<vmem>>, %arg9: memref<32x32xbf16, #tpu.memory_space<vmem>>, %arg10: memref<32x64xbf16, #tpu.memory_space<vmem>>, %arg11: memref<32x32xbf16, #tpu.memory_space<vmem>>, %arg12: memref<1x32xf32, #tpu.memory_space<vmem>>, %arg13: memref<1x32xf32, #tpu.memory_space<vmem>>, %arg14: memref<1x32xf32, #tpu.memory_space<vmem>>, %arg15: memref<32x64xbf16, #tpu.memory_space<vmem>>, %arg16: memref<1x64xf32, #tpu.memory_space<vmem>>, %arg17: memref<64x32xbf16, #tpu.memory_space<vmem>>, %arg18: memref<1x32xf32, #tpu.memory_space<vmem>>, %arg19: memref<1x32xf32, #tpu.memory_space<vmem>>, %arg20: memref<1x32xf32, #tpu.memory_space<vmem>>, %arg21: memref<2x8x32xbf16, #tpu.memory_space<vmem>>) attributes {dimension_semantics = [#tpu.dimension_semantics<parallel>], iteration_bounds = array<i64: 1>, scalar_prefetch = 0 : i64, scratch_operands = 0 : i64, tpu.core_type = #tpu.core_type<tc>, window_params = [{transform_indices = @transform_0, window_bounds = array<i64: 2, 8, 32>}, {transform_indices = @transform_1, window_bounds = array<i64: 2, 8, 32>}, {transform_indices = @transform_2, window_bounds = array<i64: 2, 1, 8>}, {pipeline_mode = #tpu.pipeline_mode<synchronous>, transform_indices = @transform_3, window_bounds = array<i64: 32, 96>}, {pipeline_mode = #tpu.pipeline_mode<synchronous>, transform_indices = @transform_4, window_bounds = array<i64: 32, 32>}, {pipeline_mode = #tpu.pipeline_mode<synchronous>, transform_indices = @transform_5, window_bounds = array<i64: 1, 32>}, {pipeline_mode = #tpu.pipeline_mode<synchronous>, transform_indices = @transform_6, window_bounds = array<i64: 1, 32>}, {pipeline_mode = #tpu.pipeline_mode<synchronous>, transform_indices = @transform_7, window_bounds = array<i64: 1, 32>}, {pipeline_mode = #tpu.pipeline_mode<synchronous>, transform_indices = @transform_8, window_bounds = array<i64: 32, 32>}, {pipeline_mode = #tpu.pipeline_mode<synchronous>, transform_indices = @transform_9, window_bounds = array<i64: 32, 64>}, {pipeline_mode = #tpu.pipeline_mode<synchronous>, transform_indices = @transform_10, window_bounds = array<i64: 32, 32>}, {pipeline_mode = #tpu.pipeline_mode<synchronous>, transform_indices = @transform_11, window_bounds = array<i64: 1, 32>}, {pipeline_mode = #tpu.pipeline_mode<synchronous>, transform_indices = @transform_12, window_bounds = array<i64: 1, 32>}, {pipeline_mode = #tpu.pipeline_mode<synchronous>, transform_indices = @transform_13, window_bounds = array<i64: 1, 32>}, {pipeline_mode = #tpu.pipeline_mode<synchronous>, transform_indices = @transform_14, window_bounds = array<i64: 32, 64>}, {pipeline_mode = #tpu.pipeline_mode<synchronous>, transform_indices = @transform_15, window_bounds = array<i64: 1, 64>}, {pipeline_mode = #tpu.pipeline_mode<synchronous>, transform_indices = @transform_16, window_bounds = array<i64: 64, 32>}, {pipeline_mode = #tpu.pipeline_mode<synchronous>, transform_indices = @transform_17, window_bounds = array<i64: 1, 32>}, {pipeline_mode = #tpu.pipeline_mode<synchronous>, transform_indices = @transform_18, window_bounds = array<i64: 1, 32>}, {pipeline_mode = #tpu.pipeline_mode<synchronous>, transform_indices = @transform_19, window_bounds = array<i64: 1, 32>}, {transform_indices = @transform_20, window_bounds = array<i64: 2, 8, 32>}]} {
    %c0 = arith.constant 0 : index
    %c0_0 = arith.constant 0 : index
    %c0_1 = arith.constant 0 : index
    %0 = vector.load %arg1[%c0, %c0_0, %c0_1] : memref<2x8x32xbf16, #tpu.memory_space<vmem>>, vector<2x8x32xbf16>
    %1 = vector.shape_cast %0 : vector<2x8x32xbf16> to vector<16x32xbf16>
    %2 = arith.extf %1 : vector<16x32xbf16> to vector<16x32xf32>
    %c0_2 = arith.constant 0 : index
    %c0_3 = arith.constant 0 : index
    %3 = vector.load %arg4[%c0_2, %c0_3] : memref<32x96xbf16, #tpu.memory_space<vmem>>, vector<32x96xbf16>
    %cst = arith.constant dense<0.000000e+00> : vector<16x96xf32>
    %4 = tpu.matmul %1, %3, %cst {dimension_numbers = #tpu.dot_dimension_numbers<[1], [0], [0], [1], [0, 0, 1, 1], [], []>} : vector<16x32xbf16>, vector<32x96xbf16>, vector<16x96xf32> -> vector<16x96xf32>
    %5 = vector.extract_strided_slice %4 {offsets = [0, 0], sizes = [16, 32], strides = [1, 1]} : vector<16x96xf32> to vector<16x32xf32>
    %6 = vector.extract_strided_slice %4 {offsets = [0, 32], sizes = [16, 32], strides = [1, 1]} : vector<16x96xf32> to vector<16x32xf32>
    %7 = vector.extract_strided_slice %4 {offsets = [0, 64], sizes = [16, 32], strides = [1, 1]} : vector<16x96xf32> to vector<16x32xf32>
    %8 = tpu.iota {dimensions = array<i32: 0>} : vector<8x8xi32>
    %9 = tpu.iota {dimensions = array<i32: 1>} : vector<8x8xi32>
    %10 = arith.cmpi sge, %8, %9 : vector<8x8xi32>
    %cst_4 = arith.constant 0.000000e+00 : f32
    %cst_5 = arith.constant -1.000000e+20 : f32
    %11 = vector.broadcast %cst_4 : f32 to vector<8x8xf32>
    %12 = vector.broadcast %cst_5 : f32 to vector<8x8xf32>
    %13 = arith.select %10, %11, %12 : vector<8x8xi1>, vector<8x8xf32>
    %c0_6 = arith.constant 0 : index
    %c0_7 = arith.constant 0 : index
    %14 = vector.load %arg5[%c0_6, %c0_7] : memref<32x32xbf16, #tpu.memory_space<vmem>>, vector<32x32xbf16>
    %c0_8 = arith.constant 0 : index
    %c0_9 = arith.constant 0 : index
    %15 = vector.load %arg6[%c0_8, %c0_9] : memref<1x32xf32, #tpu.memory_space<vmem>>, vector<1x32xf32>
    %cst_10 = arith.constant 0.176776692 : f32
    %16 = vector.broadcast %cst_10 : f32 to vector<16x32xf32>
    %17 = arith.mulf %5, %16 : vector<16x32xf32>
    %18 = vector.extract_strided_slice %17 {offsets = [0, 0], sizes = [16, 8], strides = [1, 1]} : vector<16x32xf32> to vector<16x8xf32>
    %19 = vector.extract_strided_slice %17 {offsets = [0, 8], sizes = [16, 8], strides = [1, 1]} : vector<16x32xf32> to vector<16x8xf32>
    %20 = vector.extract_strided_slice %17 {offsets = [0, 16], sizes = [16, 8], strides = [1, 1]} : vector<16x32xf32> to vector<16x8xf32>
    %21 = vector.extract_strided_slice %17 {offsets = [0, 24], sizes = [16, 8], strides = [1, 1]} : vector<16x32xf32> to vector<16x8xf32>
    %22 = vector.shape_cast %18 : vector<16x8xf32> to vector<1x16x8xf32>
    %23 = vector.shape_cast %19 : vector<16x8xf32> to vector<1x16x8xf32>
    %24 = vector.shape_cast %20 : vector<16x8xf32> to vector<1x16x8xf32>
    %25 = vector.shape_cast %21 : vector<16x8xf32> to vector<1x16x8xf32>
    %26 = tpu.concatenate %22, %23, %24, %25 in 0 : vector<1x16x8xf32>, vector<1x16x8xf32>, vector<1x16x8xf32>, vector<1x16x8xf32> -> vector<4x16x8xf32>
    %27 = vector.shape_cast %26 : vector<4x16x8xf32> to vector<8x8x8xf32>
    %28 = arith.truncf %27 : vector<8x8x8xf32> to vector<8x8x8xbf16>
    %29 = vector.extract_strided_slice %6 {offsets = [0, 0], sizes = [16, 8], strides = [1, 1]} : vector<16x32xf32> to vector<16x8xf32>
    %30 = vector.extract_strided_slice %6 {offsets = [0, 8], sizes = [16, 8], strides = [1, 1]} : vector<16x32xf32> to vector<16x8xf32>
    %31 = vector.extract_strided_slice %6 {offsets = [0, 16], sizes = [16, 8], strides = [1, 1]} : vector<16x32xf32> to vector<16x8xf32>
    %32 = vector.extract_strided_slice %6 {offsets = [0, 24], sizes = [16, 8], strides = [1, 1]} : vector<16x32xf32> to vector<16x8xf32>
    %33 = vector.shape_cast %29 : vector<16x8xf32> to vector<1x16x8xf32>
    %34 = vector.shape_cast %30 : vector<16x8xf32> to vector<1x16x8xf32>
    %35 = vector.shape_cast %31 : vector<16x8xf32> to vector<1x16x8xf32>
    %36 = vector.shape_cast %32 : vector<16x8xf32> to vector<1x16x8xf32>
    %37 = tpu.concatenate %33, %34, %35, %36 in 0 : vector<1x16x8xf32>, vector<1x16x8xf32>, vector<1x16x8xf32>, vector<1x16x8xf32> -> vector<4x16x8xf32>
    %38 = vector.shape_cast %37 : vector<4x16x8xf32> to vector<8x8x8xf32>
    %39 = arith.truncf %38 : vector<8x8x8xf32> to vector<8x8x8xbf16>
    %40 = vector.extract_strided_slice %7 {offsets = [0, 0], sizes = [16, 8], strides = [1, 1]} : vector<16x32xf32> to vector<16x8xf32>
    %41 = vector.extract_strided_slice %7 {offsets = [0, 8], sizes = [16, 8], strides = [1, 1]} : vector<16x32xf32> to vector<16x8xf32>
    %42 = vector.extract_strided_slice %7 {offsets = [0, 16], sizes = [16, 8], strides = [1, 1]} : vector<16x32xf32> to vector<16x8xf32>
    %43 = vector.extract_strided_slice %7 {offsets = [0, 24], sizes = [16, 8], strides = [1, 1]} : vector<16x32xf32> to vector<16x8xf32>
    %44 = vector.shape_cast %40 : vector<16x8xf32> to vector<1x16x8xf32>
    %45 = vector.shape_cast %41 : vector<16x8xf32> to vector<1x16x8xf32>
    %46 = vector.shape_cast %42 : vector<16x8xf32> to vector<1x16x8xf32>
    %47 = vector.shape_cast %43 : vector<16x8xf32> to vector<1x16x8xf32>
    %48 = tpu.concatenate %44, %45, %46, %47 in 0 : vector<1x16x8xf32>, vector<1x16x8xf32>, vector<1x16x8xf32>, vector<1x16x8xf32> -> vector<4x16x8xf32>
    %49 = vector.shape_cast %48 : vector<4x16x8xf32> to vector<8x8x8xf32>
    %50 = arith.truncf %49 : vector<8x8x8xf32> to vector<8x8x8xbf16>
    "tpu.trace_start"() <{level = 10 : i32, message = "nqd,nkd->nqk"}> : () -> ()
    %cst_11 = arith.constant dense<0.000000e+00> : vector<8x8x8xf32>
    %51 = tpu.matmul %28, %39, %cst_11 {dimension_numbers = #tpu.dot_dimension_numbers<[2], [2], [1], [1], [0, 0, 0, 1, 1, 1], [0], [0]>} : vector<8x8x8xbf16>, vector<8x8x8xbf16>, vector<8x8x8xf32> -> vector<8x8x8xf32>
    "tpu.trace_stop"() : () -> ()
    %52 = vector.shape_cast %13 : vector<8x8xf32> to vector<1x8x8xf32>
    %53 = vector.broadcast %52 : vector<1x8x8xf32> to vector<8x8x8xf32>
    %54 = arith.addf %51, %53 : vector<8x8x8xf32>
    %cst_12 = arith.constant dense<0xFF800000> : vector<8x8xf32>
    %55 = vector.multi_reduction <maximumf>, %54, %cst_12 [2] : vector<8x8x8xf32> to vector<8x8xf32>
    %56 = vector.shape_cast %55 : vector<8x8xf32> to vector<8x8x1xf32>
    %57 = vector.broadcast %56 : vector<8x8x1xf32> to vector<8x8x8xf32>
    %58 = arith.subf %54, %57 : vector<8x8x8xf32>
    %59 = math.exp %58 : vector<8x8x8xf32>
    %cst_13 = arith.constant dense<0.000000e+00> : vector<8x8xf32>
    %60 = vector.multi_reduction <add>, %59, %cst_13 [2] : vector<8x8x8xf32> to vector<8x8xf32>
    %61 = vector.shape_cast %60 : vector<8x8xf32> to vector<8x8x1xf32>
    %62 = tpu.reciprocal %61 {approx = true} : vector<8x8x1xf32> -> vector<8x8x1xf32>
    %63 = vector.broadcast %62 : vector<8x8x1xf32> to vector<8x8x8xf32>
    %64 = arith.mulf %59, %63 : vector<8x8x8xf32>
    %65 = arith.truncf %64 : vector<8x8x8xf32> to vector<8x8x8xbf16>
    "tpu.trace_start"() <{level = 10 : i32, message = "nqk,nkd->nqd"}> : () -> ()
    %cst_14 = arith.constant dense<0.000000e+00> : vector<8x8x8xf32>
    %66 = tpu.matmul %65, %50, %cst_14 {dimension_numbers = #tpu.dot_dimension_numbers<[2], [1], [1], [2], [0, 0, 0, 1, 1, 2], [0], [0]>} : vector<8x8x8xbf16>, vector<8x8x8xbf16>, vector<8x8x8xf32> -> vector<8x8x8xf32>
    "tpu.trace_stop"() : () -> ()
    %67 = vector.shape_cast %66 : vector<8x8x8xf32> to vector<4x16x8xf32>
    %68 = vector.extract_strided_slice %67 {offsets = [0, 0, 0], sizes = [1, 16, 8], strides = [1, 1, 1]} : vector<4x16x8xf32> to vector<1x16x8xf32>
    %69 = vector.shape_cast %68 : vector<1x16x8xf32> to vector<16x8xf32>
    %70 = arith.truncf %69 : vector<16x8xf32> to vector<16x8xbf16>
    %71 = vector.extract_strided_slice %14 {offsets = [0, 0], sizes = [8, 32], strides = [1, 1]} : vector<32x32xbf16> to vector<8x32xbf16>
    %cst_15 = arith.constant dense<0.000000e+00> : vector<16x32xf32>
    %72 = tpu.matmul %70, %71, %cst_15 {dimension_numbers = #tpu.dot_dimension_numbers<[1], [0], [0], [1], [0, 0, 1, 1], [], []>} : vector<16x8xbf16>, vector<8x32xbf16>, vector<16x32xf32> -> vector<16x32xf32>
    %73 = vector.extract_strided_slice %67 {offsets = [1, 0, 0], sizes = [1, 16, 8], strides = [1, 1, 1]} : vector<4x16x8xf32> to vector<1x16x8xf32>
    %74 = vector.shape_cast %73 : vector<1x16x8xf32> to vector<16x8xf32>
    %75 = arith.truncf %74 : vector<16x8xf32> to vector<16x8xbf16>
    %76 = vector.extract_strided_slice %14 {offsets = [8, 0], sizes = [8, 32], strides = [1, 1]} : vector<32x32xbf16> to vector<8x32xbf16>
    %cst_16 = arith.constant dense<0.000000e+00> : vector<16x32xf32>
    %77 = tpu.matmul %75, %76, %cst_16 {dimension_numbers = #tpu.dot_dimension_numbers<[1], [0], [0], [1], [0, 0, 1, 1], [], []>} : vector<16x8xbf16>, vector<8x32xbf16>, vector<16x32xf32> -> vector<16x32xf32>
    %78 = arith.addf %72, %77 : vector<16x32xf32>
    %79 = vector.extract_strided_slice %67 {offsets = [2, 0, 0], sizes = [1, 16, 8], strides = [1, 1, 1]} : vector<4x16x8xf32> to vector<1x16x8xf32>
    %80 = vector.shape_cast %79 : vector<1x16x8xf32> to vector<16x8xf32>
    %81 = arith.truncf %80 : vector<16x8xf32> to vector<16x8xbf16>
    %82 = vector.extract_strided_slice %14 {offsets = [16, 0], sizes = [8, 32], strides = [1, 1]} : vector<32x32xbf16> to vector<8x32xbf16>
    %cst_17 = arith.constant dense<0.000000e+00> : vector<16x32xf32>
    %83 = tpu.matmul %81, %82, %cst_17 {dimension_numbers = #tpu.dot_dimension_numbers<[1], [0], [0], [1], [0, 0, 1, 1], [], []>} : vector<16x8xbf16>, vector<8x32xbf16>, vector<16x32xf32> -> vector<16x32xf32>
    %84 = arith.addf %78, %83 : vector<16x32xf32>
    %85 = vector.extract_strided_slice %67 {offsets = [3, 0, 0], sizes = [1, 16, 8], strides = [1, 1, 1]} : vector<4x16x8xf32> to vector<1x16x8xf32>
    %86 = vector.shape_cast %85 : vector<1x16x8xf32> to vector<16x8xf32>
    %87 = arith.truncf %86 : vector<16x8xf32> to vector<16x8xbf16>
    %88 = vector.extract_strided_slice %14 {offsets = [24, 0], sizes = [8, 32], strides = [1, 1]} : vector<32x32xbf16> to vector<8x32xbf16>
    %cst_18 = arith.constant dense<0.000000e+00> : vector<16x32xf32>
    %89 = tpu.matmul %87, %88, %cst_18 {dimension_numbers = #tpu.dot_dimension_numbers<[1], [0], [0], [1], [0, 0, 1, 1], [], []>} : vector<16x8xbf16>, vector<8x32xbf16>, vector<16x32xf32> -> vector<16x32xf32>
    %90 = arith.addf %84, %89 : vector<16x32xf32>
    %91 = vector.broadcast %15 : vector<1x32xf32> to vector<16x32xf32>
    %92 = arith.addf %90, %91 : vector<16x32xf32>
    %93 = arith.addf %92, %2 : vector<16x32xf32>
    %c0_19 = arith.constant 0 : index
    %c0_20 = arith.constant 0 : index
    %94 = vector.load %arg7[%c0_19, %c0_20] : memref<1x32xf32, #tpu.memory_space<vmem>>, vector<1x32xf32>
    %c0_21 = arith.constant 0 : index
    %c0_22 = arith.constant 0 : index
    %95 = vector.load %arg8[%c0_21, %c0_22] : memref<1x32xf32, #tpu.memory_space<vmem>>, vector<1x32xf32>
    %cst_23 = arith.constant dense<0.000000e+00> : vector<16xf32>
    %96 = vector.multi_reduction <add>, %93, %cst_23 [1] : vector<16x32xf32> to vector<16xf32>
    %97 = vector.shape_cast %96 : vector<16xf32> to vector<16x1xf32>
    %cst_24 = arith.constant 3.200000e+01 : f32
    %98 = vector.broadcast %cst_24 : f32 to vector<16x1xf32>
    %99 = arith.divf %97, %98 : vector<16x1xf32>
    %100 = vector.broadcast %99 : vector<16x1xf32> to vector<16x32xf32>
    %101 = arith.subf %93, %100 : vector<16x32xf32>
    %102 = arith.mulf %101, %101 : vector<16x32xf32>
    %cst_25 = arith.constant dense<0.000000e+00> : vector<16xf32>
    %103 = vector.multi_reduction <add>, %102, %cst_25 [1] : vector<16x32xf32> to vector<16xf32>
    %104 = vector.shape_cast %103 : vector<16xf32> to vector<16x1xf32>
    %cst_26 = arith.constant 3.200000e+01 : f32
    %105 = vector.broadcast %cst_26 : f32 to vector<16x1xf32>
    %106 = arith.divf %104, %105 : vector<16x1xf32>
    %107 = vector.broadcast %99 : vector<16x1xf32> to vector<16x32xf32>
    %108 = arith.subf %93, %107 : vector<16x32xf32>
    %cst_27 = arith.constant 9.99999974E-6 : f32
    %109 = vector.broadcast %cst_27 : f32 to vector<16x1xf32>
    %110 = arith.addf %106, %109 : vector<16x1xf32>
    %111 = math.rsqrt %110 : vector<16x1xf32>
    %112 = vector.broadcast %111 : vector<16x1xf32> to vector<16x32xf32>
    %113 = arith.mulf %108, %112 : vector<16x32xf32>
    %114 = vector.broadcast %94 : vector<1x32xf32> to vector<16x32xf32>
    %115 = arith.mulf %113, %114 : vector<16x32xf32>
    %116 = vector.broadcast %95 : vector<1x32xf32> to vector<16x32xf32>
    %117 = arith.addf %115, %116 : vector<16x32xf32>
    %c0_28 = arith.constant 0 : index
    %c0_29 = arith.constant 0 : index
    %c0_30 = arith.constant 0 : index
    %118 = vector.load %arg2[%c0_28, %c0_29, %c0_30] : memref<2x8x32xbf16, #tpu.memory_space<vmem>>, vector<2x8x32xbf16>
    %119 = vector.shape_cast %118 : vector<2x8x32xbf16> to vector<16x32xbf16>
    %120 = arith.truncf %117 : vector<16x32xf32> to vector<16x32xbf16>
    %c0_31 = arith.constant 0 : index
    %c0_32 = arith.constant 0 : index
    %121 = vector.load %arg9[%c0_31, %c0_32] : memref<32x32xbf16, #tpu.memory_space<vmem>>, vector<32x32xbf16>
    %cst_33 = arith.constant dense<0.000000e+00> : vector<16x32xf32>
    %122 = tpu.matmul %120, %121, %cst_33 {dimension_numbers = #tpu.dot_dimension_numbers<[1], [0], [0], [1], [0, 0, 1, 1], [], []>} : vector<16x32xbf16>, vector<32x32xbf16>, vector<16x32xf32> -> vector<16x32xf32>
    %c0_34 = arith.constant 0 : index
    %c0_35 = arith.constant 0 : index
    %123 = vector.load %arg10[%c0_34, %c0_35] : memref<32x64xbf16, #tpu.memory_space<vmem>>, vector<32x64xbf16>
    %cst_36 = arith.constant dense<0.000000e+00> : vector<16x64xf32>
    %124 = tpu.matmul %119, %123, %cst_36 {dimension_numbers = #tpu.dot_dimension_numbers<[1], [0], [0], [1], [0, 0, 1, 1], [], []>} : vector<16x32xbf16>, vector<32x64xbf16>, vector<16x64xf32> -> vector<16x64xf32>
    %125 = vector.extract_strided_slice %124 {offsets = [0, 0], sizes = [16, 32], strides = [1, 1]} : vector<16x64xf32> to vector<16x32xf32>
    %126 = vector.extract_strided_slice %124 {offsets = [0, 32], sizes = [16, 32], strides = [1, 1]} : vector<16x64xf32> to vector<16x32xf32>
    %c0_37 = arith.constant 0 : index
    %c0_38 = arith.constant 0 : index
    %c0_39 = arith.constant 0 : index
    %127 = vector.load %arg3[%c0_37, %c0_38, %c0_39] : memref<2x1x8xf32, #tpu.memory_space<vmem>>, vector<2x1x8xf32>
    %cst_40 = arith.constant 1.000000e+00 : f32
    %128 = vector.broadcast %cst_40 : f32 to vector<2x1x8xf32>
    %129 = arith.subf %127, %128 : vector<2x1x8xf32>
    %cst_41 = arith.constant 1.000000e+20 : f32
    %130 = vector.broadcast %cst_41 : f32 to vector<2x1x8xf32>
    %131 = arith.mulf %129, %130 : vector<2x1x8xf32>
    %132 = tpu.concatenate %131, %131, %131, %131 in 0 : vector<2x1x8xf32>, vector<2x1x8xf32>, vector<2x1x8xf32>, vector<2x1x8xf32> -> vector<8x1x8xf32>
    %c0_42 = arith.constant 0 : index
    %c0_43 = arith.constant 0 : index
    %133 = vector.load %arg11[%c0_42, %c0_43] : memref<32x32xbf16, #tpu.memory_space<vmem>>, vector<32x32xbf16>
    %c0_44 = arith.constant 0 : index
    %c0_45 = arith.constant 0 : index
    %134 = vector.load %arg12[%c0_44, %c0_45] : memref<1x32xf32, #tpu.memory_space<vmem>>, vector<1x32xf32>
    %cst_46 = arith.constant 0.176776692 : f32
    %135 = vector.broadcast %cst_46 : f32 to vector<16x32xf32>
    %136 = arith.mulf %122, %135 : vector<16x32xf32>
    %137 = vector.extract_strided_slice %136 {offsets = [0, 0], sizes = [16, 8], strides = [1, 1]} : vector<16x32xf32> to vector<16x8xf32>
    %138 = vector.extract_strided_slice %136 {offsets = [0, 8], sizes = [16, 8], strides = [1, 1]} : vector<16x32xf32> to vector<16x8xf32>
    %139 = vector.extract_strided_slice %136 {offsets = [0, 16], sizes = [16, 8], strides = [1, 1]} : vector<16x32xf32> to vector<16x8xf32>
    %140 = vector.extract_strided_slice %136 {offsets = [0, 24], sizes = [16, 8], strides = [1, 1]} : vector<16x32xf32> to vector<16x8xf32>
    %141 = vector.shape_cast %137 : vector<16x8xf32> to vector<1x16x8xf32>
    %142 = vector.shape_cast %138 : vector<16x8xf32> to vector<1x16x8xf32>
    %143 = vector.shape_cast %139 : vector<16x8xf32> to vector<1x16x8xf32>
    %144 = vector.shape_cast %140 : vector<16x8xf32> to vector<1x16x8xf32>
    %145 = tpu.concatenate %141, %142, %143, %144 in 0 : vector<1x16x8xf32>, vector<1x16x8xf32>, vector<1x16x8xf32>, vector<1x16x8xf32> -> vector<4x16x8xf32>
    %146 = vector.shape_cast %145 : vector<4x16x8xf32> to vector<8x8x8xf32>
    %147 = arith.truncf %146 : vector<8x8x8xf32> to vector<8x8x8xbf16>
    %148 = vector.extract_strided_slice %125 {offsets = [0, 0], sizes = [16, 8], strides = [1, 1]} : vector<16x32xf32> to vector<16x8xf32>
    %149 = vector.extract_strided_slice %125 {offsets = [0, 8], sizes = [16, 8], strides = [1, 1]} : vector<16x32xf32> to vector<16x8xf32>
    %150 = vector.extract_strided_slice %125 {offsets = [0, 16], sizes = [16, 8], strides = [1, 1]} : vector<16x32xf32> to vector<16x8xf32>
    %151 = vector.extract_strided_slice %125 {offsets = [0, 24], sizes = [16, 8], strides = [1, 1]} : vector<16x32xf32> to vector<16x8xf32>
    %152 = vector.shape_cast %148 : vector<16x8xf32> to vector<1x16x8xf32>
    %153 = vector.shape_cast %149 : vector<16x8xf32> to vector<1x16x8xf32>
    %154 = vector.shape_cast %150 : vector<16x8xf32> to vector<1x16x8xf32>
    %155 = vector.shape_cast %151 : vector<16x8xf32> to vector<1x16x8xf32>
    %156 = tpu.concatenate %152, %153, %154, %155 in 0 : vector<1x16x8xf32>, vector<1x16x8xf32>, vector<1x16x8xf32>, vector<1x16x8xf32> -> vector<4x16x8xf32>
    %157 = vector.shape_cast %156 : vector<4x16x8xf32> to vector<8x8x8xf32>
    %158 = arith.truncf %157 : vector<8x8x8xf32> to vector<8x8x8xbf16>
    %159 = vector.extract_strided_slice %126 {offsets = [0, 0], sizes = [16, 8], strides = [1, 1]} : vector<16x32xf32> to vector<16x8xf32>
    %160 = vector.extract_strided_slice %126 {offsets = [0, 8], sizes = [16, 8], strides = [1, 1]} : vector<16x32xf32> to vector<16x8xf32>
    %161 = vector.extract_strided_slice %126 {offsets = [0, 16], sizes = [16, 8], strides = [1, 1]} : vector<16x32xf32> to vector<16x8xf32>
    %162 = vector.extract_strided_slice %126 {offsets = [0, 24], sizes = [16, 8], strides = [1, 1]} : vector<16x32xf32> to vector<16x8xf32>
    %163 = vector.shape_cast %159 : vector<16x8xf32> to vector<1x16x8xf32>
    %164 = vector.shape_cast %160 : vector<16x8xf32> to vector<1x16x8xf32>
    %165 = vector.shape_cast %161 : vector<16x8xf32> to vector<1x16x8xf32>
    %166 = vector.shape_cast %162 : vector<16x8xf32> to vector<1x16x8xf32>
    %167 = tpu.concatenate %163, %164, %165, %166 in 0 : vector<1x16x8xf32>, vector<1x16x8xf32>, vector<1x16x8xf32>, vector<1x16x8xf32> -> vector<4x16x8xf32>
    %168 = vector.shape_cast %167 : vector<4x16x8xf32> to vector<8x8x8xf32>
    %169 = arith.truncf %168 : vector<8x8x8xf32> to vector<8x8x8xbf16>
    "tpu.trace_start"() <{level = 10 : i32, message = "nqd,nkd->nqk"}> : () -> ()
    %cst_47 = arith.constant dense<0.000000e+00> : vector<8x8x8xf32>
    %170 = tpu.matmul %147, %158, %cst_47 {dimension_numbers = #tpu.dot_dimension_numbers<[2], [2], [1], [1], [0, 0, 0, 1, 1, 1], [0], [0]>} : vector<8x8x8xbf16>, vector<8x8x8xbf16>, vector<8x8x8xf32> -> vector<8x8x8xf32>
    "tpu.trace_stop"() : () -> ()
    %171 = vector.broadcast %132 : vector<8x1x8xf32> to vector<8x8x8xf32>
    %172 = arith.addf %170, %171 : vector<8x8x8xf32>
    %cst_48 = arith.constant dense<0xFF800000> : vector<8x8xf32>
    %173 = vector.multi_reduction <maximumf>, %172, %cst_48 [2] : vector<8x8x8xf32> to vector<8x8xf32>
    %174 = vector.shape_cast %173 : vector<8x8xf32> to vector<8x8x1xf32>
    %175 = vector.broadcast %174 : vector<8x8x1xf32> to vector<8x8x8xf32>
    %176 = arith.subf %172, %175 : vector<8x8x8xf32>
    %177 = math.exp %176 : vector<8x8x8xf32>
    %cst_49 = arith.constant dense<0.000000e+00> : vector<8x8xf32>
    %178 = vector.multi_reduction <add>, %177, %cst_49 [2] : vector<8x8x8xf32> to vector<8x8xf32>
    %179 = vector.shape_cast %178 : vector<8x8xf32> to vector<8x8x1xf32>
    %180 = tpu.reciprocal %179 {approx = true} : vector<8x8x1xf32> -> vector<8x8x1xf32>
    %181 = vector.broadcast %180 : vector<8x8x1xf32> to vector<8x8x8xf32>
    %182 = arith.mulf %177, %181 : vector<8x8x8xf32>
    %183 = arith.truncf %182 : vector<8x8x8xf32> to vector<8x8x8xbf16>
    "tpu.trace_start"() <{level = 10 : i32, message = "nqk,nkd->nqd"}> : () -> ()
    %cst_50 = arith.constant dense<0.000000e+00> : vector<8x8x8xf32>
    %184 = tpu.matmul %183, %169, %cst_50 {dimension_numbers = #tpu.dot_dimension_numbers<[2], [1], [1], [2], [0, 0, 0, 1, 1, 2], [0], [0]>} : vector<8x8x8xbf16>, vector<8x8x8xbf16>, vector<8x8x8xf32> -> vector<8x8x8xf32>
    "tpu.trace_stop"() : () -> ()
    %185 = vector.shape_cast %184 : vector<8x8x8xf32> to vector<4x16x8xf32>
    %186 = vector.extract_strided_slice %185 {offsets = [0, 0, 0], sizes = [1, 16, 8], strides = [1, 1, 1]} : vector<4x16x8xf32> to vector<1x16x8xf32>
    %187 = vector.shape_cast %186 : vector<1x16x8xf32> to vector<16x8xf32>
    %188 = arith.truncf %187 : vector<16x8xf32> to vector<16x8xbf16>
    %189 = vector.extract_strided_slice %133 {offsets = [0, 0], sizes = [8, 32], strides = [1, 1]} : vector<32x32xbf16> to vector<8x32xbf16>
    %cst_51 = arith.constant dense<0.000000e+00> : vector<16x32xf32>
    %190 = tpu.matmul %188, %189, %cst_51 {dimension_numbers = #tpu.dot_dimension_numbers<[1], [0], [0], [1], [0, 0, 1, 1], [], []>} : vector<16x8xbf16>, vector<8x32xbf16>, vector<16x32xf32> -> vector<16x32xf32>
    %191 = vector.extract_strided_slice %185 {offsets = [1, 0, 0], sizes = [1, 16, 8], strides = [1, 1, 1]} : vector<4x16x8xf32> to vector<1x16x8xf32>
    %192 = vector.shape_cast %191 : vector<1x16x8xf32> to vector<16x8xf32>
    %193 = arith.truncf %192 : vector<16x8xf32> to vector<16x8xbf16>
    %194 = vector.extract_strided_slice %133 {offsets = [8, 0], sizes = [8, 32], strides = [1, 1]} : vector<32x32xbf16> to vector<8x32xbf16>
    %cst_52 = arith.constant dense<0.000000e+00> : vector<16x32xf32>
    %195 = tpu.matmul %193, %194, %cst_52 {dimension_numbers = #tpu.dot_dimension_numbers<[1], [0], [0], [1], [0, 0, 1, 1], [], []>} : vector<16x8xbf16>, vector<8x32xbf16>, vector<16x32xf32> -> vector<16x32xf32>
    %196 = arith.addf %190, %195 : vector<16x32xf32>
    %197 = vector.extract_strided_slice %185 {offsets = [2, 0, 0], sizes = [1, 16, 8], strides = [1, 1, 1]} : vector<4x16x8xf32> to vector<1x16x8xf32>
    %198 = vector.shape_cast %197 : vector<1x16x8xf32> to vector<16x8xf32>
    %199 = arith.truncf %198 : vector<16x8xf32> to vector<16x8xbf16>
    %200 = vector.extract_strided_slice %133 {offsets = [16, 0], sizes = [8, 32], strides = [1, 1]} : vector<32x32xbf16> to vector<8x32xbf16>
    %cst_53 = arith.constant dense<0.000000e+00> : vector<16x32xf32>
    %201 = tpu.matmul %199, %200, %cst_53 {dimension_numbers = #tpu.dot_dimension_numbers<[1], [0], [0], [1], [0, 0, 1, 1], [], []>} : vector<16x8xbf16>, vector<8x32xbf16>, vector<16x32xf32> -> vector<16x32xf32>
    %202 = arith.addf %196, %201 : vector<16x32xf32>
    %203 = vector.extract_strided_slice %185 {offsets = [3, 0, 0], sizes = [1, 16, 8], strides = [1, 1, 1]} : vector<4x16x8xf32> to vector<1x16x8xf32>
    %204 = vector.shape_cast %203 : vector<1x16x8xf32> to vector<16x8xf32>
    %205 = arith.truncf %204 : vector<16x8xf32> to vector<16x8xbf16>
    %206 = vector.extract_strided_slice %133 {offsets = [24, 0], sizes = [8, 32], strides = [1, 1]} : vector<32x32xbf16> to vector<8x32xbf16>
    %cst_54 = arith.constant dense<0.000000e+00> : vector<16x32xf32>
    %207 = tpu.matmul %205, %206, %cst_54 {dimension_numbers = #tpu.dot_dimension_numbers<[1], [0], [0], [1], [0, 0, 1, 1], [], []>} : vector<16x8xbf16>, vector<8x32xbf16>, vector<16x32xf32> -> vector<16x32xf32>
    %208 = arith.addf %202, %207 : vector<16x32xf32>
    %209 = vector.broadcast %134 : vector<1x32xf32> to vector<16x32xf32>
    %210 = arith.addf %208, %209 : vector<16x32xf32>
    %c0_55 = arith.constant 0 : index
    %c0_56 = arith.constant 0 : index
    %211 = vector.load %arg13[%c0_55, %c0_56] : memref<1x32xf32, #tpu.memory_space<vmem>>, vector<1x32xf32>
    %c0_57 = arith.constant 0 : index
    %c0_58 = arith.constant 0 : index
    %212 = vector.load %arg14[%c0_57, %c0_58] : memref<1x32xf32, #tpu.memory_space<vmem>>, vector<1x32xf32>
    %c0_59 = arith.constant 0 : index
    %c0_60 = arith.constant 0 : index
    %213 = vector.load %arg15[%c0_59, %c0_60] : memref<32x64xbf16, #tpu.memory_space<vmem>>, vector<32x64xbf16>
    %c0_61 = arith.constant 0 : index
    %c0_62 = arith.constant 0 : index
    %214 = vector.load %arg16[%c0_61, %c0_62] : memref<1x64xf32, #tpu.memory_space<vmem>>, vector<1x64xf32>
    %c0_63 = arith.constant 0 : index
    %c0_64 = arith.constant 0 : index
    %215 = vector.load %arg17[%c0_63, %c0_64] : memref<64x32xbf16, #tpu.memory_space<vmem>>, vector<64x32xbf16>
    %c0_65 = arith.constant 0 : index
    %c0_66 = arith.constant 0 : index
    %216 = vector.load %arg18[%c0_65, %c0_66] : memref<1x32xf32, #tpu.memory_space<vmem>>, vector<1x32xf32>
    %c0_67 = arith.constant 0 : index
    %c0_68 = arith.constant 0 : index
    %217 = vector.load %arg19[%c0_67, %c0_68] : memref<1x32xf32, #tpu.memory_space<vmem>>, vector<1x32xf32>
    %c0_69 = arith.constant 0 : index
    %c0_70 = arith.constant 0 : index
    %218 = vector.load %arg20[%c0_69, %c0_70] : memref<1x32xf32, #tpu.memory_space<vmem>>, vector<1x32xf32>
    %219 = arith.addf %210, %117 : vector<16x32xf32>
    %cst_71 = arith.constant dense<0.000000e+00> : vector<16xf32>
    %220 = vector.multi_reduction <add>, %219, %cst_71 [1] : vector<16x32xf32> to vector<16xf32>
    %221 = vector.shape_cast %220 : vector<16xf32> to vector<16x1xf32>
    %cst_72 = arith.constant 3.200000e+01 : f32
    %222 = vector.broadcast %cst_72 : f32 to vector<16x1xf32>
    %223 = arith.divf %221, %222 : vector<16x1xf32>
    %224 = vector.broadcast %223 : vector<16x1xf32> to vector<16x32xf32>
    %225 = arith.subf %219, %224 : vector<16x32xf32>
    %226 = arith.mulf %225, %225 : vector<16x32xf32>
    %cst_73 = arith.constant dense<0.000000e+00> : vector<16xf32>
    %227 = vector.multi_reduction <add>, %226, %cst_73 [1] : vector<16x32xf32> to vector<16xf32>
    %228 = vector.shape_cast %227 : vector<16xf32> to vector<16x1xf32>
    %cst_74 = arith.constant 3.200000e+01 : f32
    %229 = vector.broadcast %cst_74 : f32 to vector<16x1xf32>
    %230 = arith.divf %228, %229 : vector<16x1xf32>
    %231 = vector.broadcast %223 : vector<16x1xf32> to vector<16x32xf32>
    %232 = arith.subf %219, %231 : vector<16x32xf32>
    %cst_75 = arith.constant 9.99999974E-6 : f32
    %233 = vector.broadcast %cst_75 : f32 to vector<16x1xf32>
    %234 = arith.addf %230, %233 : vector<16x1xf32>
    %235 = math.rsqrt %234 : vector<16x1xf32>
    %236 = vector.broadcast %235 : vector<16x1xf32> to vector<16x32xf32>
    %237 = arith.mulf %232, %236 : vector<16x32xf32>
    %238 = vector.broadcast %211 : vector<1x32xf32> to vector<16x32xf32>
    %239 = arith.mulf %237, %238 : vector<16x32xf32>
    %240 = vector.broadcast %212 : vector<1x32xf32> to vector<16x32xf32>
    %241 = arith.addf %239, %240 : vector<16x32xf32>
    %242 = arith.truncf %241 : vector<16x32xf32> to vector<16x32xbf16>
    %cst_76 = arith.constant dense<0.000000e+00> : vector<16x64xf32>
    %243 = tpu.matmul %242, %213, %cst_76 {dimension_numbers = #tpu.dot_dimension_numbers<[1], [0], [0], [1], [0, 0, 1, 1], [], []>} : vector<16x32xbf16>, vector<32x64xbf16>, vector<16x64xf32> -> vector<16x64xf32>
    %244 = vector.broadcast %214 : vector<1x64xf32> to vector<16x64xf32>
    %245 = arith.addf %243, %244 : vector<16x64xf32>
    %cst_77 = arith.constant 0.000000e+00 : f32
    %246 = vector.broadcast %cst_77 : f32 to vector<16x64xf32>
    %247 = arith.cmpf oge, %245, %246 : vector<16x64xf32>
    %cst_78 = arith.constant 0.00999999977 : f32
    %248 = vector.broadcast %cst_78 : f32 to vector<16x64xf32>
    %249 = arith.mulf %248, %245 : vector<16x64xf32>
    %250 = arith.select %247, %245, %249 : vector<16x64xi1>, vector<16x64xf32>
    %251 = arith.truncf %250 : vector<16x64xf32> to vector<16x64xbf16>
    %cst_79 = arith.constant dense<0.000000e+00> : vector<16x32xf32>
    %252 = tpu.matmul %251, %215, %cst_79 {dimension_numbers = #tpu.dot_dimension_numbers<[1], [0], [0], [1], [0, 0, 1, 1], [], []>} : vector<16x64xbf16>, vector<64x32xbf16>, vector<16x32xf32> -> vector<16x32xf32>
    %253 = vector.broadcast %216 : vector<1x32xf32> to vector<16x32xf32>
    %254 = arith.addf %252, %253 : vector<16x32xf32>
    %255 = arith.addf %254, %241 : vector<16x32xf32>
    %cst_80 = arith.constant dense<0.000000e+00> : vector<16xf32>
    %256 = vector.multi_reduction <add>, %255, %cst_80 [1] : vector<16x32xf32> to vector<16xf32>
    %257 = vector.shape_cast %256 : vector<16xf32> to vector<16x1xf32>
    %cst_81 = arith.constant 3.200000e+01 : f32
    %258 = vector.broadcast %cst_81 : f32 to vector<16x1xf32>
    %259 = arith.divf %257, %258 : vector<16x1xf32>
    %260 = vector.broadcast %259 : vector<16x1xf32> to vector<16x32xf32>
    %261 = arith.subf %255, %260 : vector<16x32xf32>
    %262 = arith.mulf %261, %261 : vector<16x32xf32>
    %cst_82 = arith.constant dense<0.000000e+00> : vector<16xf32>
    %263 = vector.multi_reduction <add>, %262, %cst_82 [1] : vector<16x32xf32> to vector<16xf32>
    %264 = vector.shape_cast %263 : vector<16xf32> to vector<16x1xf32>
    %cst_83 = arith.constant 3.200000e+01 : f32
    %265 = vector.broadcast %cst_83 : f32 to vector<16x1xf32>
    %266 = arith.divf %264, %265 : vector<16x1xf32>
    %267 = vector.broadcast %259 : vector<16x1xf32> to vector<16x32xf32>
    %268 = arith.subf %255, %267 : vector<16x32xf32>
    %cst_84 = arith.constant 9.99999974E-6 : f32
    %269 = vector.broadcast %cst_84 : f32 to vector<16x1xf32>
    %270 = arith.addf %266, %269 : vector<16x1xf32>
    %271 = math.rsqrt %270 : vector<16x1xf32>
    %272 = vector.broadcast %271 : vector<16x1xf32> to vector<16x32xf32>
    %273 = arith.mulf %268, %272 : vector<16x32xf32>
    %274 = vector.broadcast %217 : vector<1x32xf32> to vector<16x32xf32>
    %275 = arith.mulf %273, %274 : vector<16x32xf32>
    %276 = vector.broadcast %218 : vector<1x32xf32> to vector<16x32xf32>
    %277 = arith.addf %275, %276 : vector<16x32xf32>
    %278 = vector.shape_cast %277 : vector<16x32xf32> to vector<2x8x32xf32>
    %279 = arith.truncf %278 : vector<2x8x32xf32> to vector<2x8x32xbf16>
    %c0_85 = arith.constant 0 : index
    %c0_86 = arith.constant 0 : index
    %c0_87 = arith.constant 0 : index
    %280 = vector.load %arg21[%c0_85, %c0_86, %c0_87] : memref<2x8x32xbf16, #tpu.memory_space<vmem>>, vector<2x8x32xbf16>
    tpu.vector_store %arg21[%c0_85, %c0_86, %c0_87], %279 {strides = array<i32>} : memref<2x8x32xbf16, #tpu.memory_space<vmem>>, vector<2x8x32xbf16>,
    return
  }
  func.func @transform_0(%arg0: i32) -> (i32, i32, i32) {
    %c0_i32 = arith.constant 0 : i32
    %c0_i32_0 = arith.constant 0 : i32
    %c0_i32_1 = arith.constant 0 : i32
    return %arg0, %c0_i32, %c0_i32_0 : i32, i32, i32
  }
  func.func @transform_1(%arg0: i32) -> (i32, i32, i32) {
    %c0_i32 = arith.constant 0 : i32
    %c0_i32_0 = arith.constant 0 : i32
    %c0_i32_1 = arith.constant 0 : i32
    return %arg0, %c0_i32, %c0_i32_0 : i32, i32, i32
  }
  func.func @transform_2(%arg0: i32) -> (i32, i32, i32) {
    %c0_i32 = arith.constant 0 : i32
    %c0_i32_0 = arith.constant 0 : i32
    %c0_i32_1 = arith.constant 0 : i32
    return %arg0, %c0_i32, %c0_i32_0 : i32, i32, i32
  }
  func.func @transform_3(%arg0: i32) -> (i32, i32) {
    %c0_i32 = arith.constant 0 : i32
    %c0_i32_0 = arith.constant 0 : i32
    %c0_i32_1 = arith.constant 0 : i32
    return %c0_i32, %c0_i32_0 : i32, i32
  }
  func.func @transform_4(%arg0: i32) -> (i32, i32) {
    %c0_i32 = arith.constant 0 : i32
    %c0_i32_0 = arith.constant 0 : i32
    %c0_i32_1 = arith.constant 0 : i32
    return %c0_i32, %c0_i32_0 : i32, i32
  }
  func.func @transform_5(%arg0: i32) -> (i32, i32) {
    %c0_i32 = arith.constant 0 : i32
    %c0_i32_0 = arith.constant 0 : i32
    %c0_i32_1 = arith.constant 0 : i32
    return %c0_i32, %c0_i32_0 : i32, i32
  }
  func.func @transform_6(%arg0: i32) -> (i32, i32) {
    %c0_i32 = arith.constant 0 : i32
    %c0_i32_0 = arith.constant 0 : i32
    %c0_i32_1 = arith.constant 0 : i32
    return %c0_i32, %c0_i32_0 : i32, i32
  }
  func.func @transform_7(%arg0: i32) -> (i32, i32) {
    %c0_i32 = arith.constant 0 : i32
    %c0_i32_0 = arith.constant 0 : i32
    %c0_i32_1 = arith.constant 0 : i32
    return %c0_i32, %c0_i32_0 : i32, i32
  }
  func.func @transform_8(%arg0: i32) -> (i32, i32) {
    %c0_i32 = arith.constant 0 : i32
    %c0_i32_0 = arith.constant 0 : i32
    %c0_i32_1 = arith.constant 0 : i32
    return %c0_i32, %c0_i32_0 : i32, i32
  }
  func.func @transform_9(%arg0: i32) -> (i32, i32) {
    %c0_i32 = arith.constant 0 : i32
    %c0_i32_0 = arith.constant 0 : i32
    %c0_i32_1 = arith.constant 0 : i32
    return %c0_i32, %c0_i32_0 : i32, i32
  }
  func.func @transform_10(%arg0: i32) -> (i32, i32) {
    %c0_i32 = arith.constant 0 : i32
    %c0_i32_0 = arith.constant 0 : i32
    %c0_i32_1 = arith.constant 0 : i32
    return %c0_i32, %c0_i32_0 : i32, i32
  }
  func.func @transform_11(%arg0: i32) -> (i32, i32) {
    %c0_i32 = arith.constant 0 : i32
    %c0_i32_0 = arith.constant 0 : i32
    %c0_i32_1 = arith.constant 0 : i32
    return %c0_i32, %c0_i32_0 : i32, i32
  }
  func.func @transform_12(%arg0: i32) -> (i32, i32) {
    %c0_i32 = arith.constant 0 : i32
    %c0_i32_0 = arith.constant 0 : i32
    %c0_i32_1 = arith.constant 0 : i32
    return %c0_i32, %c0_i32_0 : i32, i32
  }
  func.func @transform_13(%arg0: i32) -> (i32, i32) {
    %c0_i32 = arith.constant 0 : i32
    %c0_i32_0 = arith.constant 0 : i32
    %c0_i32_1 = arith.constant 0 : i32
    return %c0_i32, %c0_i32_0 : i32, i32
  }
  func.func @transform_14(%arg0: i32) -> (i32, i32) {
    %c0_i32 = arith.constant 0 : i32
    %c0_i32_0 = arith.constant 0 : i32
    %c0_i32_1 = arith.constant 0 : i32
    return %c0_i32, %c0_i32_0 : i32, i32
  }
  func.func @transform_15(%arg0: i32) -> (i32, i32) {
    %c0_i32 = arith.constant 0 : i32
    %c0_i32_0 = arith.constant 0 : i32
    %c0_i32_1 = arith.constant 0 : i32
    return %c0_i32, %c0_i32_0 : i32, i32
  }
  func.func @transform_16(%arg0: i32) -> (i32, i32) {
    %c0_i32 = arith.constant 0 : i32
    %c0_i32_0 = arith.constant 0 : i32
    %c0_i32_1 = arith.constant 0 : i32
    return %c0_i32, %c0_i32_0 : i32, i32
  }
  func.func @transform_17(%arg0: i32) -> (i32, i32) {
    %c0_i32 = arith.constant 0 : i32
    %c0_i32_0 = arith.constant 0 : i32
    %c0_i32_1 = arith.constant 0 : i32
    return %c0_i32, %c0_i32_0 : i32, i32
  }
  func.func @transform_18(%arg0: i32) -> (i32, i32) {
    %c0_i32 = arith.constant 0 : i32
    %c0_i32_0 = arith.constant 0 : i32
    %c0_i32_1 = arith.constant 0 : i32
    return %c0_i32, %c0_i32_0 : i32, i32
  }
  func.func @transform_19(%arg0: i32) -> (i32, i32) {
    %c0_i32 = arith.constant 0 : i32
    %c0_i32_0 = arith.constant 0 : i32
    %c0_i32_1 = arith.constant 0 : i32
    return %c0_i32, %c0_i32_0 : i32, i32
  }
  func.func @transform_20(%arg0: i32) -> (i32, i32, i32) {
    %c0_i32 = arith.constant 0 : i32
    %c0_i32_0 = arith.constant 0 : i32
    %c0_i32_1 = arith.constant 0 : i32
    return %arg0, %c0_i32, %c0_i32_0 : i32, i32, i32
  }
}

</mosaic_0001>

<llo_original>
// kernel: transformer_forward.9
$region0: #{transformer_forward.9}
  #allocation0 [shape = 'u32[]', space=smem, size = 0x4, offset = 0x4, fixed_abs, tag = 'smem constant byte address 0x4 - core index']
  #allocation1 [shape = 'u32[144,128]{1,0:T(1,128)}', space=vmem, size = 0x12000, scoped, tag = 'internal scratch']
  %s0 = inlined_call_operand.vmem [shape: bf16[16,32], index: 0, kind: input, shape index: {}]
  %s1 = inlined_call_operand.vmem [shape: bf16[32,128], index: 1, kind: input, shape index: {}]
  %s2 = inlined_call_operand.vmem [shape: f32[1,128], index: 2, kind: input, shape index: {}]
  %s3 = inlined_call_operand.vmem [shape: f32[16,128], index: 3, kind: output, shape index: {}]
  %s4 = sld [smem:[#allocation0]]
  $region22: #{transformer_forward.9} parent=0
    _
  %s6 = ssub.s32 1, %s4
  %s7 = scalar_select 0, %s6, %s4
  // Predicated region
  $region2: #{transformer_forward.9} parent=0 // pred_check
    _
  $region3: #{transformer_forward.9} parent=0 // pred_check_branch
    %9 = sbr.rel (0) target = $region5
  $region4: #{transformer_forward.9} parent=0 // pred_region
    _
  $region5: #{transformer_forward.9} parent=0 // pred_fallthru
    _
  // Predicated region
  $region6: #{transformer_forward.9} parent=0 // pred_check
    _
  $region7: #{transformer_forward.9} parent=0 // pred_check_branch
    %11 = sbr.rel (0) target = $region9
  $region8: #{transformer_forward.9} parent=0 // pred_region
    _
  $region9: #{transformer_forward.9} parent=0 // pred_fallthru
    _
  // Predicated region
  $region10: #{transformer_forward.9} parent=0 // pred_check
    _
  $region11: #{transformer_forward.9} parent=0 // pred_check_branch
    %13 = sbr.rel (0) target = $region13
  $region12: #{transformer_forward.9} parent=0 // pred_region
    _
  $region13: #{transformer_forward.9} parent=0 // pred_fallthru
    _
  %v15 = vld [vmem:[%s0] sm:$0xf]
  %v16 = vld [vmem:[%s0 + $0x4] sm:$0xf]
  %v17 = vld [vmem:[%s1] sm:$0xf]
  %v18 = vld [vmem:[%s1 + $0x4] sm:$0xf]
  %v19 = vld [vmem:[%s1 + $0x8] sm:$0xf]
  %v20 = vld [vmem:[%s1 + $0xc] sm:$0xf]
  %v21 = vld [vmem:[%s2] sm:$0x1]
  %v23 = vlaneseq
  %v24 = vshrl.u32 %v23, 7
  %v25 = vsub.s32 0, %v24
  %v26 = vrot.slane %v21, %v25
  %v30 = vunpack.c.l.b16 %v15
  %v31 = vunpack.c.l.b16 %v16
  %v32 = vpack.c.b16 %v31, %v30
  %v37 = vunpack.c.l.b16 %v17
  %v38 = vunpack.c.l.b16 %v18
  %v39 = vunpack.c.l.b16 %v19
  %v40 = vunpack.c.l.b16 %v20
  %v41 = vpack.c.b16 %v38, %v37
  %v42 = vpack.c.b16 %v40, %v39
  %vm45 = vcmask 261120
  %v47 = vsel %vm45, %v32, 0
  %49 = vmatprep.subr.bf16.mxu0 0
  %50 = vmatpush1.bf16.msra.mxu0 0
  %51 = vmatprep.subr.bf16.mxu0 0
  %52 = vmatpush1.bf16.msra.mxu0 0
  %53 = vmatprep.subr.bf16.mxu0 0
  %54 = vmatpush1.bf16.msra.mxu0 0
  %55 = vmatprep.subr.bf16.mxu0 0
  %56 = vmatpush1.bf16.msra.mxu0 0
  %57 = vmatprep.subr.bf16.mxu0 0
  %58 = vmatpush1.bf16.msra.mxu0 0
  %59 = vmatprep.subr.bf16.mxu0 0
  %60 = vmatpush1.bf16.msra.mxu0 0
  %61 = vmatprep.subr.bf16.mxu0 0
  %62 = vmatpush1.bf16.msra.mxu0 %v42
  %63 = vmatprep.subr.bf16.mxu0 0
  %64 = vmatpush1.bf16.msra.mxu0 %v41
  %65 = vmatprep.subr.bf16.mxu0 0
  %66 = vmatpush2.bf16.msra.mxu0 0
  %67 = vmatprep.subr.bf16.mxu0 0
  %68 = vmatpush2.bf16.msra.mxu0 0
  %69 = vmatprep.subr.bf16.mxu0 0
  %70 = vmatpush2.bf16.msra.mxu0 0
  %71 = vmatprep.subr.bf16.mxu0 0
  %72 = vmatpush2.bf16.msra.mxu0 0
  %73 = vmatprep.subr.bf16.mxu0 0
  %74 = vmatpush2.bf16.msra.mxu0 0
  %75 = vmatprep.subr.bf16.mxu0 0
  %76 = vmatpush2.bf16.msra.mxu0 0
  %77 = vmatprep.subr.bf16.mxu0 0
  %78 = vmatpush2.bf16.msra.mxu0 0
  %79 = vmatprep.subr.bf16.mxu0 0
  %80 = vmatpush2.bf16.msra.mxu0 0
  %81 = vmatprep.mubr.bf16.mxu0 0
  %82 = vmatmul.mubr.bf16.gmra.mxu0 %v47
  %v83 = vpop.f32.mrf.mxu0
  %v84 = vadd.f32 %v26, %v83
  %v85 = vpop.f32.mrf.mxu0
  %v86 = vpop.f32.mrf.mxu0
  %v87 = vadd.f32 %v26, %v86
  %v88 = vpop.f32.mrf.mxu0
  %89 = vdwg.mxu0
  %90 = vst [vmem:[%s3] sm:$0xff] %v84
  %91 = vst [vmem:[%s3 + $0x8] sm:$0xff] %v87
  // Predicated region
  $region14: #{transformer_forward.9} parent=0 // pred_check
    _
  $region15: #{transformer_forward.9} parent=0 // pred_check_branch
    %93 = sbr.rel (0) target = $region17
  $region16: #{transformer_forward.9} parent=0 // pred_region
    _
  $region17: #{transformer_forward.9} parent=0 // pred_fallthru
    _
  // Predicated region
  $region18: #{transformer_forward.9} parent=0 // pred_check
    _
  $region19: #{transformer_forward.9} parent=0 // pred_check_branch
    %95 = sbr.rel (0) target = $region21
  $region20: #{transformer_forward.9} parent=0 // pred_region
    _
  $region21: #{transformer_forward.9} parent=0 // pred_fallthru
    _

// kernel: transformer_forward.5
$region0: #{transformer_forward.5}
  #allocation0 [shape = 'u32[]', space=smem, size = 0x4, offset = 0x4, fixed_abs, tag = 'smem constant byte address 0x4 - core index']
  #allocation1 [shape = 'u32[144,128]{1,0:T(1,128)}', space=vmem, size = 0x12000, scoped, tag = 'internal scratch']
  %s0 = inlined_call_operand.vmem [shape: bf16[2,8,32], index: 0, kind: input, shape index: {}]
  %s1 = inlined_call_operand.vmem [shape: f32[2,1,8], index: 1, kind: input, shape index: {}]
  %s2 = inlined_call_operand.vmem [shape: bf16[32,96], index: 2, kind: input, shape index: {}]
  %s3 = inlined_call_operand.vmem [shape: bf16[32,32], index: 3, kind: input, shape index: {}]
  %s4 = inlined_call_operand.vmem [shape: f32[1,32], index: 4, kind: input, shape index: {}]
  %s5 = inlined_call_operand.vmem [shape: f32[1,32], index: 5, kind: input, shape index: {}]
  %s6 = inlined_call_operand.vmem [shape: f32[1,32], index: 6, kind: input, shape index: {}]
  %s7 = inlined_call_operand.vmem [shape: bf16[32,64], index: 7, kind: input, shape index: {}]
  %s8 = inlined_call_operand.vmem [shape: f32[1,64], index: 8, kind: input, shape index: {}]
  %s9 = inlined_call_operand.vmem [shape: bf16[64,32], index: 9, kind: input, shape index: {}]
  %s10 = inlined_call_operand.vmem [shape: f32[1,32], index: 10, kind: input, shape index: {}]
  %s11 = inlined_call_operand.vmem [shape: f32[1,32], index: 11, kind: input, shape index: {}]
  %s12 = inlined_call_operand.vmem [shape: f32[1,32], index: 12, kind: input, shape index: {}]
  %s13 = inlined_call_operand.vmem [shape: bf16[2,8,32], index: 13, kind: output, shape index: {}]
  %s14 = sld [smem:[#allocation0]]
  $region62: #{transformer_forward.5} parent=0
    _
  %s16 = ssub.s32 1, %s14
  %s17 = scalar_select 0, %s16, %s14
  // Predicated region
  $region2: #{transformer_forward.5} parent=0 // pred_check
    _
  $region3: #{transformer_forward.5} parent=0 // pred_check_branch
    %19 = sbr.rel (0) target = $region5
  $region4: #{transformer_forward.5} parent=0 // pred_region
    _
  $region5: #{transformer_forward.5} parent=0 // pred_fallthru
    _
  // Predicated region
  $region6: #{transformer_forward.5} parent=0 // pred_check
    _
  $region7: #{transformer_forward.5} parent=0 // pred_check_branch
    %21 = sbr.rel (0) target = $region9
  $region8: #{transformer_forward.5} parent=0 // pred_region
    _
  $region9: #{transformer_forward.5} parent=0 // pred_fallthru
    _
  // Predicated region
  $region10: #{transformer_forward.5} parent=0 // pred_check
    _
  $region11: #{transformer_forward.5} parent=0 // pred_check_branch
    %23 = sbr.rel (0) target = $region13
  $region12: #{transformer_forward.5} parent=0 // pred_region
    _
  $region13: #{transformer_forward.5} parent=0 // pred_fallthru
    _
  // Predicated region
  $region14: #{transformer_forward.5} parent=0 // pred_check
    _
  $region15: #{transformer_forward.5} parent=0 // pred_check_branch
    %25 = sbr.rel (0) target = $region17
  $region16: #{transformer_forward.5} parent=0 // pred_region
    _
  $region17: #{transformer_forward.5} parent=0 // pred_fallthru
    _
  // Predicated region
  $region18: #{transformer_forward.5} parent=0 // pred_check
    _
  $region19: #{transformer_forward.5} parent=0 // pred_check_branch
    %27 = sbr.rel (0) target = $region21
  $region20: #{transformer_forward.5} parent=0 // pred_region
    _
  $region21: #{transformer_forward.5} parent=0 // pred_fallthru
    _
  // Predicated region
  $region22: #{transformer_forward.5} parent=0 // pred_check
    _
  $region23: #{transformer_forward.5} parent=0 // pred_check_branch
    %29 = sbr.rel (0) target = $region25
  $region24: #{transformer_forward.5} parent=0 // pred_region
    _
  $region25: #{transformer_forward.5} parent=0 // pred_fallthru
    _
  // Predicated region
  $region26: #{transformer_forward.5} parent=0 // pred_check
    _
  $region27: #{transformer_forward.5} parent=0 // pred_check_branch
    %31 = sbr.rel (0) target = $region29
  $region28: #{transformer_forward.5} parent=0 // pred_region
    _
  $region29: #{transformer_forward.5} parent=0 // pred_fallthru
    _
  // Predicated region
  $region30: #{transformer_forward.5} parent=0 // pred_check
    _
  $region31: #{transformer_forward.5} parent=0 // pred_check_branch
    %33 = sbr.rel (0) target = $region33
  $region32: #{transformer_forward.5} parent=0 // pred_region
    _
  $region33: #{transformer_forward.5} parent=0 // pred_fallthru
    _
  // Predicated region
  $region34: #{transformer_forward.5} parent=0 // pred_check
    _
  $region35: #{transformer_forward.5} parent=0 // pred_check_branch
    %35 = sbr.rel (0) target = $region37
  $region36: #{transformer_forward.5} parent=0 // pred_region
    _
  $region37: #{transformer_forward.5} parent=0 // pred_fallthru
    _
  // Predicated region
  $region38: #{transformer_forward.5} parent=0 // pred_check
    _
  $region39: #{transformer_forward.5} parent=0 // pred_check_branch
    %37 = sbr.rel (0) target = $region41
  $region40: #{transformer_forward.5} parent=0 // pred_region
    _
  $region41: #{transformer_forward.5} parent=0 // pred_fallthru
    _
  // Predicated region
  $region42: #{transformer_forward.5} parent=0 // pred_check
    _
  $region43: #{transformer_forward.5} parent=0 // pred_check_branch
    %39 = sbr.rel (0) target = $region45
  $region44: #{transformer_forward.5} parent=0 // pred_region
    _
  $region45: #{transformer_forward.5} parent=0 // pred_fallthru
    _
  // Predicated region
  $region46: #{transformer_forward.5} parent=0 // pred_check
    _
  $region47: #{transformer_forward.5} parent=0 // pred_check_branch
    %41 = sbr.rel (0) target = $region49
  $region48: #{transformer_forward.5} parent=0 // pred_region
    _
  $region49: #{transformer_forward.5} parent=0 // pred_fallthru
    _
  // Predicated region
  $region50: #{transformer_forward.5} parent=0 // pred_check
    _
  $region51: #{transformer_forward.5} parent=0 // pred_check_branch
    %43 = sbr.rel (0) target = $region53
  $region52: #{transformer_forward.5} parent=0 // pred_region
    _
  $region53: #{transformer_forward.5} parent=0 // pred_fallthru
    _
  %v45 = vld [vmem:[%s0] sm:$0xf]
  %v46 = vld [vmem:[%s0 + $0x4] sm:$0xf]
  %v47 = vunpack.c.l.bf16 %v45
  %v48 = vunpack.c.l.bf16 %v46
  %v49 = vld [vmem:[%s2] sm:$0xf]
  %v50 = vld [vmem:[%s2 + $0x4] sm:$0xf]
  %v51 = vld [vmem:[%s2 + $0x8] sm:$0xf]
  %v52 = vld [vmem:[%s2 + $0xc] sm:$0xf]
  %v55 = vunpack.c.l.b16 %v45
  %v56 = vunpack.c.l.b16 %v46
  %v57 = vpack.c.b16 %v56, %v55
  %v62 = vunpack.c.l.b16 %v49
  %v63 = vunpack.c.l.b16 %v50
  %v64 = vunpack.c.l.b16 %v51
  %v65 = vunpack.c.l.b16 %v52
  %v66 = vpack.c.b16 %v63, %v62
  %v67 = vpack.c.b16 %v65, %v64
  %vm70 = vcmask 261120
  %v72 = vsel %vm70, %v57, 0
  %74 = vmatprep.subr.bf16.mxu0 0
  %75 = vmatpush1.bf16.msra.mxu0 0
  %76 = vmatprep.subr.bf16.mxu0 0
  %77 = vmatpush1.bf16.msra.mxu0 0
  %78 = vmatprep.subr.bf16.mxu0 0
  %79 = vmatpush1.bf16.msra.mxu0 0
  %80 = vmatprep.subr.bf16.mxu0 0
  %81 = vmatpush1.bf16.msra.mxu0 0
  %82 = vmatprep.subr.bf16.mxu0 0
  %83 = vmatpush1.bf16.msra.mxu0 0
  %84 = vmatprep.subr.bf16.mxu0 0
  %85 = vmatpush1.bf16.msra.mxu0 0
  %86 = vmatprep.subr.bf16.mxu0 0
  %87 = vmatpush1.bf16.msra.mxu0 %v67
  %88 = vmatprep.subr.bf16.mxu0 0
  %89 = vmatpush1.bf16.msra.mxu0 %v66
  %90 = vmatprep.subr.bf16.mxu0 0
  %91 = vmatpush2.bf16.msra.mxu0 0
  %92 = vmatprep.subr.bf16.mxu0 0
  %93 = vmatpush2.bf16.msra.mxu0 0
  %94 = vmatprep.subr.bf16.mxu0 0
  %95 = vmatpush2.bf16.msra.mxu0 0
  %96 = vmatprep.subr.bf16.mxu0 0
  %97 = vmatpush2.bf16.msra.mxu0 0
  %98 = vmatprep.subr.bf16.mxu0 0
  %99 = vmatpush2.bf16.msra.mxu0 0
  %100 = vmatprep.subr.bf16.mxu0 0
  %101 = vmatpush2.bf16.msra.mxu0 0
  %102 = vmatprep.subr.bf16.mxu0 0
  %103 = vmatpush2.bf16.msra.mxu0 0
  %104 = vmatprep.subr.bf16.mxu0 0
  %105 = vmatpush2.bf16.msra.mxu0 0
  %106 = vmatprep.mubr.bf16.mxu0 0
  %107 = vmatmul.mubr.bf16.gmra.mxu0 %v72
  %v108 = vpop.f32.mrf.mxu0
  %v109 = vadd.f32 0.0, %v108
  %v110 = vpop.f32.mrf.mxu0
  %v111 = vpop.f32.mrf.mxu0
  %v112 = vadd.f32 0.0, %v111
  %v113 = vpop.f32.mrf.mxu0
  %114 = vdwg.mxu0
  %v115 = vld [vmem:[%s1] sm:$0x1]
  %v116 = vld [vmem:[%s1 + $0x1] sm:$0x1]
  %v117 = vsub.f32 %v115, 1.0
  %v118 = vsub.f32 %v116, 1.0
  %v119 = vmul.f32 %v117, 1e+20
  %v120 = vmul.f32 %v118, 1e+20
  %v121 = vld [vmem:[%s3] sm:$0xf]
  %v122 = vld [vmem:[%s3 + $0x4] sm:$0xf]
  %v123 = vld [vmem:[%s3 + $0x8] sm:$0xf]
  %v124 = vld [vmem:[%s3 + $0xc] sm:$0xf]
  %v125 = vld [vmem:[%s4] sm:$0x1]
  %v126 = vmul.f32 %v109, 0.17677669
  %v127 = vmul.f32 %v112, 0.17677669
  %130 = vrot.lane.b32.xlu0 %v126, 120
  %v131 = vpop.permute.xlu0 %130
  %132 = vrot.lane.b32.xlu0 %v127, 120
  %v133 = vpop.permute.xlu0 %132
  %136 = vrot.lane.b32.xlu0 %v126, 112
  %v137 = vpop.permute.xlu0 %136
  %138 = vrot.lane.b32.xlu0 %v127, 112
  %v139 = vpop.permute.xlu0 %138
  %142 = vrot.lane.b32.xlu0 %v126, 104
  %v143 = vpop.permute.xlu0 %142
  %144 = vrot.lane.b32.xlu0 %v127, 104
  %v145 = vpop.permute.xlu0 %144
  %v148 = vpack.c.bf16 %v126, %v126
  %v149 = vpack.c.bf16 %v127, %v127
  %v150 = vpack.c.bf16 %v131, %v131
  %v151 = vpack.c.bf16 %v133, %v133
  %v152 = vpack.c.bf16 %v137, %v137
  %v153 = vpack.c.bf16 %v139, %v139
  %v154 = vpack.c.bf16 %v143, %v143
  %v155 = vpack.c.bf16 %v145, %v145
  %158 = vrot.lane.b32.xlu0 %v109, 120
  %v159 = vpop.permute.xlu0 %158
  %160 = vrot.lane.b32.xlu0 %v112, 120
  %v161 = vpop.permute.xlu0 %160
  %164 = vrot.lane.b32.xlu0 %v109, 112
  %v165 = vpop.permute.xlu0 %164
  %166 = vrot.lane.b32.xlu0 %v112, 112
  %v167 = vpop.permute.xlu0 %166
  %170 = vrot.lane.b32.xlu0 %v109, 104
  %v171 = vpop.permute.xlu0 %170
  %172 = vrot.lane.b32.xlu0 %v112, 104
  %v173 = vpop.permute.xlu0 %172
  %v176 = vpack.c.bf16 %v109, %v109
  %v177 = vpack.c.bf16 %v112, %v112
  %v178 = vpack.c.bf16 %v159, %v159
  %v179 = vpack.c.bf16 %v161, %v161
  %v180 = vpack.c.bf16 %v165, %v165
  %v181 = vpack.c.bf16 %v167, %v167
  %v182 = vpack.c.bf16 %v171, %v171
  %v183 = vpack.c.bf16 %v173, %v173
  %v186 = vlaneseq
  %v187 = vshrl.u32 %v186, 7
  %v188 = vsub.s32 0, %v187
  %v189 = vrot.slane %v119, %v188
  %v190 = vlaneseq
  %v191 = vshrl.u32 %v190, 7
  %v192 = vsub.s32 0, %v191
  %v193 = vrot.slane %v120, %v192
  %197 = vrot.lane.b32.xlu0 %v176, 96
  %v198 = vpop.permute.xlu0 %197
  %vm199 = vcmask 64512
  %v201 = vsel %vm199, %v148, 0
  %v204 = vsel %vm199, %v198, 0
  %206 = vmatprep.subr.bf16.mxu0 0
  %207 = vmatpush1.bf16.xpose.msra.mxu0 0
  %208 = vmatprep.subr.bf16.mxu0 0
  %209 = vmatpush1.bf16.xpose.msra.mxu0 0
  %210 = vmatprep.subr.bf16.mxu0 0
  %211 = vmatpush1.bf16.xpose.msra.mxu0 0
  %212 = vmatprep.subr.bf16.mxu0 0
  %213 = vmatpush1.bf16.xpose.msra.mxu0 0
  %214 = vmatprep.subr.bf16.mxu0 0
  %215 = vmatpush1.bf16.xpose.msra.mxu0 0
  %216 = vmatprep.subr.bf16.mxu0 0
  %217 = vmatpush1.bf16.xpose.msra.mxu0 0
  %218 = vmatprep.subr.bf16.mxu0 0
  %219 = vmatpush1.bf16.xpose.msra.mxu0 0
  %220 = vmatprep.subr.bf16.mxu0 0
  %221 = vmatpush1.bf16.xpose.msra.mxu0 %v204
  %222 = vmatprep.subr.bf16.mxu0 0
  %223 = vmatpush2.bf16.xpose.msra.mxu0 0
  %224 = vmatprep.subr.bf16.mxu0 0
  %225 = vmatpush2.bf16.xpose.msra.mxu0 0
  %226 = vmatprep.subr.bf16.mxu0 0
  %227 = vmatpush2.bf16.xpose.msra.mxu0 0
  %228 = vmatprep.subr.bf16.mxu0 0
  %229 = vmatpush2.bf16.xpose.msra.mxu0 0
  %230 = vmatprep.subr.bf16.mxu0 0
  %231 = vmatpush2.bf16.xpose.msra.mxu0 0
  %232 = vmatprep.subr.bf16.mxu0 0
  %233 = vmatpush2.bf16.xpose.msra.mxu0 0
  %234 = vmatprep.subr.bf16.mxu0 0
  %235 = vmatpush2.bf16.xpose.msra.mxu0 0
  %236 = vmatprep.subr.bf16.mxu0 0
  %237 = vmatpush2.bf16.xpose.msra.mxu0 0
  %238 = vmatprep.mubr.bf16.mxu0 0
  %239 = vmatmul.mubr.bf16.gmra.mxu0 %v201
  %v240 = vpop.f32.mrf.mxu0
  %v241 = vadd.f32 %v189, %v240
  %v242 = vpop.f32.mrf.mxu0
  %v243 = vpop.f32.mrf.mxu0
  %v244 = vpop.f32.mrf.mxu0
  %245 = vdwg.mxu0
  %247 = vrot.lane.b32.xlu0 %v177, 96
  %v248 = vpop.permute.xlu0 %247
  %v250 = vsel %vm199, %v149, 0
  %v253 = vsel %vm199, %v248, 0
  %255 = vmatprep.subr.bf16.mxu0 0
  %256 = vmatpush1.bf16.xpose.msra.mxu0 0
  %257 = vmatprep.subr.bf16.mxu0 0
  %258 = vmatpush1.bf16.xpose.msra.mxu0 0
  %259 = vmatprep.subr.bf16.mxu0 0
  %260 = vmatpush1.bf16.xpose.msra.mxu0 0
  %261 = vmatprep.subr.bf16.mxu0 0
  %262 = vmatpush1.bf16.xpose.msra.mxu0 0
  %263 = vmatprep.subr.bf16.mxu0 0
  %264 = vmatpush1.bf16.xpose.msra.mxu0 0
  %265 = vmatprep.subr.bf16.mxu0 0
  %266 = vmatpush1.bf16.xpose.msra.mxu0 0
  %267 = vmatprep.subr.bf16.mxu0 0
  %268 = vmatpush1.bf16.xpose.msra.mxu0 0
  %269 = vmatprep.subr.bf16.mxu0 0
  %270 = vmatpush1.bf16.xpose.msra.mxu0 %v253
  %271 = vmatprep.subr.bf16.mxu0 0
  %272 = vmatpush2.bf16.xpose.msra.mxu0 0
  %273 = vmatprep.subr.bf16.mxu0 0
  %274 = vmatpush2.bf16.xpose.msra.mxu0 0
  %275 = vmatprep.subr.bf16.mxu0 0
  %276 = vmatpush2.bf16.xpose.msra.mxu0 0
  %277 = vmatprep.subr.bf16.mxu0 0
  %278 = vmatpush2.bf16.xpose.msra.mxu0 0
  %279 = vmatprep.subr.bf16.mxu0 0
  %280 = vmatpush2.bf16.xpose.msra.mxu0 0
  %281 = vmatprep.subr.bf16.mxu0 0
  %282 = vmatpush2.bf16.xpose.msra.mxu0 0
  %283 = vmatprep.subr.bf16.mxu0 0
  %284 = vmatpush2.bf16.xpose.msra.mxu0 0
  %285 = vmatprep.subr.bf16.mxu0 0
  %286 = vmatpush2.bf16.xpose.msra.mxu0 0
  %287 = vmatprep.mubr.bf16.mxu0 0
  %288 = vmatmul.mubr.bf16.gmra.mxu0 %v250
  %v289 = vpop.f32.mrf.mxu0
  %v290 = vadd.f32 %v193, %v289
  %v291 = vpop.f32.mrf.mxu0
  %v292 = vpop.f32.mrf.mxu0
  %v293 = vpop.f32.mrf.mxu0
  %294 = vdwg.mxu0
  %296 = vrot.lane.b32.xlu0 %v178, 96
  %v297 = vpop.permute.xlu0 %296
  %v299 = vsel %vm199, %v150, 0
  %v302 = vsel %vm199, %v297, 0
  %304 = vmatprep.subr.bf16.mxu0 0
  %305 = vmatpush1.bf16.xpose.msra.mxu0 0
  %306 = vmatprep.subr.bf16.mxu0 0
  %307 = vmatpush1.bf16.xpose.msra.mxu0 0
  %308 = vmatprep.subr.bf16.mxu0 0
  %309 = vmatpush1.bf16.xpose.msra.mxu0 0
  %310 = vmatprep.subr.bf16.mxu0 0
  %311 = vmatpush1.bf16.xpose.msra.mxu0 0
  %312 = vmatprep.subr.bf16.mxu0 0
  %313 = vmatpush1.bf16.xpose.msra.mxu0 0
  %314 = vmatprep.subr.bf16.mxu0 0
  %315 = vmatpush1.bf16.xpose.msra.mxu0 0
  %316 = vmatprep.subr.bf16.mxu0 0
  %317 = vmatpush1.bf16.xpose.msra.mxu0 0
  %318 = vmatprep.subr.bf16.mxu0 0
  %319 = vmatpush1.bf16.xpose.msra.mxu0 %v302
  %320 = vmatprep.subr.bf16.mxu0 0
  %321 = vmatpush2.bf16.xpose.msra.mxu0 0
  %322 = vmatprep.subr.bf16.mxu0 0
  %323 = vmatpush2.bf16.xpose.msra.mxu0 0
  %324 = vmatprep.subr.bf16.mxu0 0
  %325 = vmatpush2.bf16.xpose.msra.mxu0 0
  %326 = vmatprep.subr.bf16.mxu0 0
  %327 = vmatpush2.bf16.xpose.msra.mxu0 0
  %328 = vmatprep.subr.bf16.mxu0 0
  %329 = vmatpush2.bf16.xpose.msra.mxu0 0
  %330 = vmatprep.subr.bf16.mxu0 0
  %331 = vmatpush2.bf16.xpose.msra.mxu0 0
  %332 = vmatprep.subr.bf16.mxu0 0
  %333 = vmatpush2.bf16.xpose.msra.mxu0 0
  %334 = vmatprep.subr.bf16.mxu0 0
  %335 = vmatpush2.bf16.xpose.msra.mxu0 0
  %336 = vmatprep.mubr.bf16.mxu0 0
  %337 = vmatmul.mubr.bf16.gmra.mxu0 %v299
  %v338 = vpop.f32.mrf.mxu0
  %v339 = vadd.f32 %v189, %v338
  %v340 = vpop.f32.mrf.mxu0
  %v341 = vpop.f32.mrf.mxu0
  %v342 = vpop.f32.mrf.mxu0
  %343 = vdwg.mxu0
  %345 = vrot.lane.b32.xlu0 %v179, 96
  %v346 = vpop.permute.xlu0 %345
  %v348 = vsel %vm199, %v151, 0
  %v351 = vsel %vm199, %v346, 0
  %353 = vmatprep.subr.bf16.mxu0 0
  %354 = vmatpush1.bf16.xpose.msra.mxu0 0
  %355 = vmatprep.subr.bf16.mxu0 0
  %356 = vmatpush1.bf16.xpose.msra.mxu0 0
  %357 = vmatprep.subr.bf16.mxu0 0
  %358 = vmatpush1.bf16.xpose.msra.mxu0 0
  %359 = vmatprep.subr.bf16.mxu0 0
  %360 = vmatpush1.bf16.xpose.msra.mxu0 0
  %361 = vmatprep.subr.bf16.mxu0 0
  %362 = vmatpush1.bf16.xpose.msra.mxu0 0
  %363 = vmatprep.subr.bf16.mxu0 0
  %364 = vmatpush1.bf16.xpose.msra.mxu0 0
  %365 = vmatprep.subr.bf16.mxu0 0
  %366 = vmatpush1.bf16.xpose.msra.mxu0 0
  %367 = vmatprep.subr.bf16.mxu0 0
  %368 = vmatpush1.bf16.xpose.msra.mxu0 %v351
  %369 = vmatprep.subr.bf16.mxu0 0
  %370 = vmatpush2.bf16.xpose.msra.mxu0 0
  %371 = vmatprep.subr.bf16.mxu0 0
  %372 = vmatpush2.bf16.xpose.msra.mxu0 0
  %373 = vmatprep.subr.bf16.mxu0 0
  %374 = vmatpush2.bf16.xpose.msra.mxu0 0
  %375 = vmatprep.subr.bf16.mxu0 0
  %376 = vmatpush2.bf16.xpose.msra.mxu0 0
  %377 = vmatprep.subr.bf16.mxu0 0
  %378 = vmatpush2.bf16.xpose.msra.mxu0 0
  %379 = vmatprep.subr.bf16.mxu0 0
  %380 = vmatpush2.bf16.xpose.msra.mxu0 0
  %381 = vmatprep.subr.bf16.mxu0 0
  %382 = vmatpush2.bf16.xpose.msra.mxu0 0
  %383 = vmatprep.subr.bf16.mxu0 0
  %384 = vmatpush2.bf16.xpose.msra.mxu0 0
  %385 = vmatprep.mubr.bf16.mxu0 0
  %386 = vmatmul.mubr.bf16.gmra.mxu0 %v348
  %v387 = vpop.f32.mrf.mxu0
  %v388 = vadd.f32 %v193, %v387
  %v389 = vpop.f32.mrf.mxu0
  %v390 = vpop.f32.mrf.mxu0
  %v391 = vpop.f32.mrf.mxu0
  %392 = vdwg.mxu0
  %394 = vrot.lane.b32.xlu0 %v180, 96
  %v395 = vpop.permute.xlu0 %394
  %v397 = vsel %vm199, %v152, 0
  %v400 = vsel %vm199, %v395, 0
  %402 = vmatprep.subr.bf16.mxu0 0
  %403 = vmatpush1.bf16.xpose.msra.mxu0 0
  %404 = vmatprep.subr.bf16.mxu0 0
  %405 = vmatpush1.bf16.xpose.msra.mxu0 0
  %406 = vmatprep.subr.bf16.mxu0 0
  %407 = vmatpush1.bf16.xpose.msra.mxu0 0
  %408 = vmatprep.subr.bf16.mxu0 0
  %409 = vmatpush1.bf16.xpose.msra.mxu0 0
  %410 = vmatprep.subr.bf16.mxu0 0
  %411 = vmatpush1.bf16.xpose.msra.mxu0 0
  %412 = vmatprep.subr.bf16.mxu0 0
  %413 = vmatpush1.bf16.xpose.msra.mxu0 0
  %414 = vmatprep.subr.bf16.mxu0 0
  %415 = vmatpush1.bf16.xpose.msra.mxu0 0
  %416 = vmatprep.subr.bf16.mxu0 0
  %417 = vmatpush1.bf16.xpose.msra.mxu0 %v400
  %418 = vmatprep.subr.bf16.mxu0 0
  %419 = vmatpush2.bf16.xpose.msra.mxu0 0
  %420 = vmatprep.subr.bf16.mxu0 0
  %421 = vmatpush2.bf16.xpose.msra.mxu0 0
  %422 = vmatprep.subr.bf16.mxu0 0
  %423 = vmatpush2.bf16.xpose.msra.mxu0 0
  %424 = vmatprep.subr.bf16.mxu0 0
  %425 = vmatpush2.bf16.xpose.msra.mxu0 0
  %426 = vmatprep.subr.bf16.mxu0 0
  %427 = vmatpush2.bf16.xpose.msra.mxu0 0
  %428 = vmatprep.subr.bf16.mxu0 0
  %429 = vmatpush2.bf16.xpose.msra.mxu0 0
  %430 = vmatprep.subr.bf16.mxu0 0
  %431 = vmatpush2.bf16.xpose.msra.mxu0 0
  %432 = vmatprep.subr.bf16.mxu0 0
  %433 = vmatpush2.bf16.xpose.msra.mxu0 0
  %434 = vmatprep.mubr.bf16.mxu0 0
  %435 = vmatmul.mubr.bf16.gmra.mxu0 %v397
  %v436 = vpop.f32.mrf.mxu0
  %v437 = vadd.f32 %v189, %v436
  %v438 = vpop.f32.mrf.mxu0
  %v439 = vpop.f32.mrf.mxu0
  %v440 = vpop.f32.mrf.mxu0
  %441 = vdwg.mxu0
  %443 = vrot.lane.b32.xlu0 %v181, 96
  %v444 = vpop.permute.xlu0 %443
  %v446 = vsel %vm199, %v153, 0
  %v449 = vsel %vm199, %v444, 0
  %451 = vmatprep.subr.bf16.mxu0 0
  %452 = vmatpush1.bf16.xpose.msra.mxu0 0
  %453 = vmatprep.subr.bf16.mxu0 0
  %454 = vmatpush1.bf16.xpose.msra.mxu0 0
  %455 = vmatprep.subr.bf16.mxu0 0
  %456 = vmatpush1.bf16.xpose.msra.mxu0 0
  %457 = vmatprep.subr.bf16.mxu0 0
  %458 = vmatpush1.bf16.xpose.msra.mxu0 0
  %459 = vmatprep.subr.bf16.mxu0 0
  %460 = vmatpush1.bf16.xpose.msra.mxu0 0
  %461 = vmatprep.subr.bf16.mxu0 0
  %462 = vmatpush1.bf16.xpose.msra.mxu0 0
  %463 = vmatprep.subr.bf16.mxu0 0
  %464 = vmatpush1.bf16.xpose.msra.mxu0 0
  %465 = vmatprep.subr.bf16.mxu0 0
  %466 = vmatpush1.bf16.xpose.msra.mxu0 %v449
  %467 = vmatprep.subr.bf16.mxu0 0
  %468 = vmatpush2.bf16.xpose.msra.mxu0 0
  %469 = vmatprep.subr.bf16.mxu0 0
  %470 = vmatpush2.bf16.xpose.msra.mxu0 0
  %471 = vmatprep.subr.bf16.mxu0 0
  %472 = vmatpush2.bf16.xpose.msra.mxu0 0
  %473 = vmatprep.subr.bf16.mxu0 0
  %474 = vmatpush2.bf16.xpose.msra.mxu0 0
  %475 = vmatprep.subr.bf16.mxu0 0
  %476 = vmatpush2.bf16.xpose.msra.mxu0 0
  %477 = vmatprep.subr.bf16.mxu0 0
  %478 = vmatpush2.bf16.xpose.msra.mxu0 0
  %479 = vmatprep.subr.bf16.mxu0 0
  %480 = vmatpush2.bf16.xpose.msra.mxu0 0
  %481 = vmatprep.subr.bf16.mxu0 0
  %482 = vmatpush2.bf16.xpose.msra.mxu0 0
  %483 = vmatprep.mubr.bf16.mxu0 0
  %484 = vmatmul.mubr.bf16.gmra.mxu0 %v446
  %v485 = vpop.f32.mrf.mxu0
  %v486 = vadd.f32 %v193, %v485
  %v487 = vpop.f32.mrf.mxu0
  %v488 = vpop.f32.mrf.mxu0
  %v489 = vpop.f32.mrf.mxu0
  %490 = vdwg.mxu0
  %492 = vrot.lane.b32.xlu0 %v182, 96
  %v493 = vpop.permute.xlu0 %492
  %v495 = vsel %vm199, %v154, 0
  %v498 = vsel %vm199, %v493, 0
  %500 = vmatprep.subr.bf16.mxu0 0
  %501 = vmatpush1.bf16.xpose.msra.mxu0 0
  %502 = vmatprep.subr.bf16.mxu0 0
  %503 = vmatpush1.bf16.xpose.msra.mxu0 0
  %504 = vmatprep.subr.bf16.mxu0 0
  %505 = vmatpush1.bf16.xpose.msra.mxu0 0
  %506 = vmatprep.subr.bf16.mxu0 0
  %507 = vmatpush1.bf16.xpose.msra.mxu0 0
  %508 = vmatprep.subr.bf16.mxu0 0
  %509 = vmatpush1.bf16.xpose.msra.mxu0 0
  %510 = vmatprep.subr.bf16.mxu0 0
  %511 = vmatpush1.bf16.xpose.msra.mxu0 0
  %512 = vmatprep.subr.bf16.mxu0 0
  %513 = vmatpush1.bf16.xpose.msra.mxu0 0
  %514 = vmatprep.subr.bf16.mxu0 0
  %515 = vmatpush1.bf16.xpose.msra.mxu0 %v498
  %516 = vmatprep.subr.bf16.mxu0 0
  %517 = vmatpush2.bf16.xpose.msra.mxu0 0
  %518 = vmatprep.subr.bf16.mxu0 0
  %519 = vmatpush2.bf16.xpose.msra.mxu0 0
  %520 = vmatprep.subr.bf16.mxu0 0
  %521 = vmatpush2.bf16.xpose.msra.mxu0 0
  %522 = vmatprep.subr.bf16.mxu0 0
  %523 = vmatpush2.bf16.xpose.msra.mxu0 0
  %524 = vmatprep.subr.bf16.mxu0 0
  %525 = vmatpush2.bf16.xpose.msra.mxu0 0
  %526 = vmatprep.subr.bf16.mxu0 0
  %527 = vmatpush2.bf16.xpose.msra.mxu0 0
  %528 = vmatprep.subr.bf16.mxu0 0
  %529 = vmatpush2.bf16.xpose.msra.mxu0 0
  %530 = vmatprep.subr.bf16.mxu0 0
  %531 = vmatpush2.bf16.xpose.msra.mxu0 0
  %532 = vmatprep.mubr.bf16.mxu0 0
  %533 = vmatmul.mubr.bf16.gmra.mxu0 %v495
  %v534 = vpop.f32.mrf.mxu0
  %v535 = vadd.f32 %v189, %v534
  %v536 = vpop.f32.mrf.mxu0
  %v537 = vpop.f32.mrf.mxu0
  %v538 = vpop.f32.mrf.mxu0
  %539 = vdwg.mxu0
  %541 = vrot.lane.b32.xlu0 %v183, 96
  %v542 = vpop.permute.xlu0 %541
  %v544 = vsel %vm199, %v155, 0
  %v547 = vsel %vm199, %v542, 0
  %549 = vmatprep.subr.bf16.mxu0 0
  %550 = vmatpush1.bf16.xpose.msra.mxu0 0
  %551 = vmatprep.subr.bf16.mxu0 0
  %552 = vmatpush1.bf16.xpose.msra.mxu0 0
  %553 = vmatprep.subr.bf16.mxu0 0
  %554 = vmatpush1.bf16.xpose.msra.mxu0 0
  %555 = vmatprep.subr.bf16.mxu0 0
  %556 = vmatpush1.bf16.xpose.msra.mxu0 0
  %557 = vmatprep.subr.bf16.mxu0 0
  %558 = vmatpush1.bf16.xpose.msra.mxu0 0
  %559 = vmatprep.subr.bf16.mxu0 0
  %560 = vmatpush1.bf16.xpose.msra.mxu0 0
  %561 = vmatprep.subr.bf16.mxu0 0
  %562 = vmatpush1.bf16.xpose.msra.mxu0 0
  %563 = vmatprep.subr.bf16.mxu0 0
  %564 = vmatpush1.bf16.xpose.msra.mxu0 %v547
  %565 = vmatprep.subr.bf16.mxu0 0
  %566 = vmatpush2.bf16.xpose.msra.mxu0 0
  %567 = vmatprep.subr.bf16.mxu0 0
  %568 = vmatpush2.bf16.xpose.msra.mxu0 0
  %569 = vmatprep.subr.bf16.mxu0 0
  %570 = vmatpush2.bf16.xpose.msra.mxu0 0
  %571 = vmatprep.subr.bf16.mxu0 0
  %572 = vmatpush2.bf16.xpose.msra.mxu0 0
  %573 = vmatprep.subr.bf16.mxu0 0
  %574 = vmatpush2.bf16.xpose.msra.mxu0 0
  %575 = vmatprep.subr.bf16.mxu0 0
  %576 = vmatpush2.bf16.xpose.msra.mxu0 0
  %577 = vmatprep.subr.bf16.mxu0 0
  %578 = vmatpush2.bf16.xpose.msra.mxu0 0
  %579 = vmatprep.subr.bf16.mxu0 0
  %580 = vmatpush2.bf16.xpose.msra.mxu0 0
  %581 = vmatprep.mubr.bf16.mxu0 0
  %582 = vmatmul.mubr.bf16.gmra.mxu0 %v544
  %v583 = vpop.f32.mrf.mxu0
  %v584 = vadd.f32 %v193, %v583
  %v585 = vpop.f32.mrf.mxu0
  %v586 = vpop.f32.mrf.mxu0
  %v587 = vpop.f32.mrf.mxu0
  %588 = vdwg.mxu0
  %v589 = vsel %vm199, %v241, -inf
  %590 = vmax.xlane.f32.xlu0 %v589
  %v591 = vpop.xlane.xlu0 %590
  %v592 = vsel %vm199, %v290, -inf
  %593 = vmax.xlane.f32.xlu0 %v592
  %v594 = vpop.xlane.xlu0 %593
  %v595 = vsel %vm199, %v339, -inf
  %596 = vmax.xlane.f32.xlu0 %v595
  %v597 = vpop.xlane.xlu0 %596
  %v598 = vsel %vm199, %v388, -inf
  %599 = vmax.xlane.f32.xlu0 %v598
  %v600 = vpop.xlane.xlu0 %599
  %v601 = vsel %vm199, %v437, -inf
  %602 = vmax.xlane.f32.xlu0 %v601
  %v603 = vpop.xlane.xlu0 %602
  %v604 = vsel %vm199, %v486, -inf
  %605 = vmax.xlane.f32.xlu0 %v604
  %v606 = vpop.xlane.xlu0 %605
  %v607 = vsel %vm199, %v535, -inf
  %608 = vmax.xlane.f32.xlu0 %v607
  %v609 = vpop.xlane.xlu0 %608
  %v610 = vsel %vm199, %v584, -inf
  %611 = vmax.xlane.f32.xlu0 %v610
  %v612 = vpop.xlane.xlu0 %611
  %v613 = vsub.f32 %v241, %v591
  %v614 = vsub.f32 %v290, %v594
  %v615 = vsub.f32 %v339, %v597
  %v616 = vsub.f32 %v388, %v600
  %v617 = vsub.f32 %v437, %v603
  %v618 = vsub.f32 %v486, %v606
  %v619 = vsub.f32 %v535, %v609
  %v620 = vsub.f32 %v584, %v612
  %v621 = vmul.f32 %v613, 1.442695
  %v622 = vpow.pop %v621
  %v623 = vmul.f32 %v614, 1.442695
  %v624 = vpow.pop %v623
  %v625 = vmul.f32 %v615, 1.442695
  %v626 = vpow.pop %v625
  %v627 = vmul.f32 %v616, 1.442695
  %v628 = vpow.pop %v627
  %v629 = vmul.f32 %v617, 1.442695
  %v630 = vpow.pop %v629
  %v631 = vmul.f32 %v618, 1.442695
  %v632 = vpow.pop %v631
  %v633 = vmul.f32 %v619, 1.442695
  %v634 = vpow.pop %v633
  %v635 = vmul.f32 %v620, 1.442695
  %v636 = vpow.pop %v635
  %v637 = vsel %vm199, %v622, 0.0
  %638 = vadd.xlane.f32.xlu0 %v637
  %v639 = vpop.xlane.xlu0 %638
  %v640 = vsel %vm199, %v624, 0.0
  %641 = vadd.xlane.f32.xlu0 %v640
  %v642 = vpop.xlane.xlu0 %641
  %v643 = vsel %vm199, %v626, 0.0
  %644 = vadd.xlane.f32.xlu0 %v643
  %v645 = vpop.xlane.xlu0 %644
  %v646 = vsel %vm199, %v628, 0.0
  %647 = vadd.xlane.f32.xlu0 %v646
  %v648 = vpop.xlane.xlu0 %647
  %v649 = vsel %vm199, %v630, 0.0
  %650 = vadd.xlane.f32.xlu0 %v649
  %v651 = vpop.xlane.xlu0 %650
  %v652 = vsel %vm199, %v632, 0.0
  %653 = vadd.xlane.f32.xlu0 %v652
  %v654 = vpop.xlane.xlu0 %653
  %v655 = vsel %vm199, %v634, 0.0
  %656 = vadd.xlane.f32.xlu0 %v655
  %v657 = vpop.xlane.xlu0 %656
  %v658 = vsel %vm199, %v636, 0.0
  %659 = vadd.xlane.f32.xlu0 %v658
  %v660 = vpop.xlane.xlu0 %659
  %v661 = vrcp.pop %v639
  %v662 = vrcp.pop %v642
  %v663 = vrcp.pop %v645
  %v664 = vrcp.pop %v648
  %v665 = vrcp.pop %v651
  %v666 = vrcp.pop %v654
  %v667 = vrcp.pop %v657
  %v668 = vrcp.pop %v660
  %v669 = vmul.f32 %v622, %v661
  %v670 = vmul.f32 %v624, %v662
  %v671 = vmul.f32 %v626, %v663
  %v672 = vmul.f32 %v628, %v664
  %v673 = vmul.f32 %v630, %v665
  %v674 = vmul.f32 %v632, %v666
  %v675 = vmul.f32 %v634, %v667
  %v676 = vmul.f32 %v636, %v668
  %v677 = vpack.c.bf16 %v669, %v669
  %v678 = vpack.c.bf16 %v670, %v670
  %v679 = vpack.c.bf16 %v671, %v671
  %v680 = vpack.c.bf16 %v672, %v672
  %v681 = vpack.c.bf16 %v673, %v673
  %v682 = vpack.c.bf16 %v674, %v674
  %v683 = vpack.c.bf16 %v675, %v675
  %v684 = vpack.c.bf16 %v676, %v676
  %685 = vrot.lane.b32.xlu0 %v176, 64
  %v686 = vpop.permute.xlu0 %685
  %v688 = vsel %vm199, %v677, 0
  %vm690 = vcmask 1043456
  %v692 = vsel %vm690, %v686, 0
  %694 = vmatprep.subr.bf16.mxu0 0
  %695 = vmatpush1.bf16.msra.mxu0 0
  %696 = vmatprep.subr.bf16.mxu0 0
  %697 = vmatpush1.bf16.msra.mxu0 0
  %698 = vmatprep.subr.bf16.mxu0 0
  %699 = vmatpush1.bf16.msra.mxu0 0
  %700 = vmatprep.subr.bf16.mxu0 0
  %701 = vmatpush1.bf16.msra.mxu0 0
  %702 = vmatprep.subr.bf16.mxu0 0
  %703 = vmatpush1.bf16.msra.mxu0 0
  %704 = vmatprep.subr.bf16.mxu0 0
  %705 = vmatpush1.bf16.msra.mxu0 0
  %706 = vmatprep.subr.bf16.mxu0 0
  %707 = vmatpush1.bf16.msra.mxu0 0
  %708 = vmatprep.subr.bf16.mxu0 0
  %709 = vmatpush1.bf16.msra.mxu0 %v692
  %710 = vmatprep.subr.bf16.mxu0 0
  %711 = vmatpush2.bf16.msra.mxu0 0
  %712 = vmatprep.subr.bf16.mxu0 0
  %713 = vmatpush2.bf16.msra.mxu0 0
  %714 = vmatprep.subr.bf16.mxu0 0
  %715 = vmatpush2.bf16.msra.mxu0 0
  %716 = vmatprep.subr.bf16.mxu0 0
  %717 = vmatpush2.bf16.msra.mxu0 0
  %718 = vmatprep.subr.bf16.mxu0 0
  %719 = vmatpush2.bf16.msra.mxu0 0
  %720 = vmatprep.subr.bf16.mxu0 0
  %721 = vmatpush2.bf16.msra.mxu0 0
  %722 = vmatprep.subr.bf16.mxu0 0
  %723 = vmatpush2.bf16.msra.mxu0 0
  %724 = vmatprep.subr.bf16.mxu0 0
  %725 = vmatpush2.bf16.msra.mxu0 0
  %726 = vmatprep.mubr.bf16.mxu0 0
  %727 = vmatmul.mubr.bf16.gmra.mxu0 %v688
  %v728 = vpop.f32.mrf.mxu0
  %v729 = vadd.f32 0.0, %v728
  %v730 = vpop.f32.mrf.mxu0
  %v731 = vpop.f32.mrf.mxu0
  %v732 = vpop.f32.mrf.mxu0
  %733 = vdwg.mxu0
  %734 = vrot.lane.b32.xlu0 %v177, 64
  %v735 = vpop.permute.xlu0 %734
  %v737 = vsel %vm199, %v678, 0
  %v740 = vsel %vm690, %v735, 0
  %742 = vmatprep.subr.bf16.mxu0 0
  %743 = vmatpush1.bf16.msra.mxu0 0
  %744 = vmatprep.subr.bf16.mxu0 0
  %745 = vmatpush1.bf16.msra.mxu0 0
  %746 = vmatprep.subr.bf16.mxu0 0
  %747 = vmatpush1.bf16.msra.mxu0 0
  %748 = vmatprep.subr.bf16.mxu0 0
  %749 = vmatpush1.bf16.msra.mxu0 0
  %750 = vmatprep.subr.bf16.mxu0 0
  %751 = vmatpush1.bf16.msra.mxu0 0
  %752 = vmatprep.subr.bf16.mxu0 0
  %753 = vmatpush1.bf16.msra.mxu0 0
  %754 = vmatprep.subr.bf16.mxu0 0
  %755 = vmatpush1.bf16.msra.mxu0 0
  %756 = vmatprep.subr.bf16.mxu0 0
  %757 = vmatpush1.bf16.msra.mxu0 %v740
  %758 = vmatprep.subr.bf16.mxu0 0
  %759 = vmatpush2.bf16.msra.mxu0 0
  %760 = vmatprep.subr.bf16.mxu0 0
  %761 = vmatpush2.bf16.msra.mxu0 0
  %762 = vmatprep.subr.bf16.mxu0 0
  %763 = vmatpush2.bf16.msra.mxu0 0
  %764 = vmatprep.subr.bf16.mxu0 0
  %765 = vmatpush2.bf16.msra.mxu0 0
  %766 = vmatprep.subr.bf16.mxu0 0
  %767 = vmatpush2.bf16.msra.mxu0 0
  %768 = vmatprep.subr.bf16.mxu0 0
  %769 = vmatpush2.bf16.msra.mxu0 0
  %770 = vmatprep.subr.bf16.mxu0 0
  %771 = vmatpush2.bf16.msra.mxu0 0
  %772 = vmatprep.subr.bf16.mxu0 0
  %773 = vmatpush2.bf16.msra.mxu0 0
  %774 = vmatprep.mubr.bf16.mxu0 0
  %775 = vmatmul.mubr.bf16.gmra.mxu0 %v737
  %v776 = vpop.f32.mrf.mxu0
  %v777 = vadd.f32 0.0, %v776
  %v778 = vpop.f32.mrf.mxu0
  %v779 = vpop.f32.mrf.mxu0
  %v780 = vpop.f32.mrf.mxu0
  %781 = vdwg.mxu0
  %782 = vrot.lane.b32.xlu0 %v178, 64
  %v783 = vpop.permute.xlu0 %782
  %v785 = vsel %vm199, %v679, 0
  %v788 = vsel %vm690, %v783, 0
  %790 = vmatprep.subr.bf16.mxu0 0
  %791 = vmatpush1.bf16.msra.mxu0 0
  %792 = vmatprep.subr.bf16.mxu0 0
  %793 = vmatpush1.bf16.msra.mxu0 0
  %794 = vmatprep.subr.bf16.mxu0 0
  %795 = vmatpush1.bf16.msra.mxu0 0
  %796 = vmatprep.subr.bf16.mxu0 0
  %797 = vmatpush1.bf16.msra.mxu0 0
  %798 = vmatprep.subr.bf16.mxu0 0
  %799 = vmatpush1.bf16.msra.mxu0 0
  %800 = vmatprep.subr.bf16.mxu0 0
  %801 = vmatpush1.bf16.msra.mxu0 0
  %802 = vmatprep.subr.bf16.mxu0 0
  %803 = vmatpush1.bf16.msra.mxu0 0
  %804 = vmatprep.subr.bf16.mxu0 0
  %805 = vmatpush1.bf16.msra.mxu0 %v788
  %806 = vmatprep.subr.bf16.mxu0 0
  %807 = vmatpush2.bf16.msra.mxu0 0
  %808 = vmatprep.subr.bf16.mxu0 0
  %809 = vmatpush2.bf16.msra.mxu0 0
  %810 = vmatprep.subr.bf16.mxu0 0
  %811 = vmatpush2.bf16.msra.mxu0 0
  %812 = vmatprep.subr.bf16.mxu0 0
  %813 = vmatpush2.bf16.msra.mxu0 0
  %814 = vmatprep.subr.bf16.mxu0 0
  %815 = vmatpush2.bf16.msra.mxu0 0
  %816 = vmatprep.subr.bf16.mxu0 0
  %817 = vmatpush2.bf16.msra.mxu0 0
  %818 = vmatprep.subr.bf16.mxu0 0
  %819 = vmatpush2.bf16.msra.mxu0 0
  %820 = vmatprep.subr.bf16.mxu0 0
  %821 = vmatpush2.bf16.msra.mxu0 0
  %822 = vmatprep.mubr.bf16.mxu0 0
  %823 = vmatmul.mubr.bf16.gmra.mxu0 %v785
  %v824 = vpop.f32.mrf.mxu0
  %v825 = vadd.f32 0.0, %v824
  %v826 = vpop.f32.mrf.mxu0
  %v827 = vpop.f32.mrf.mxu0
  %v828 = vpop.f32.mrf.mxu0
  %829 = vdwg.mxu0
  %830 = vrot.lane.b32.xlu0 %v179, 64
  %v831 = vpop.permute.xlu0 %830
  %v833 = vsel %vm199, %v680, 0
  %v836 = vsel %vm690, %v831, 0
  %838 = vmatprep.subr.bf16.mxu0 0
  %839 = vmatpush1.bf16.msra.mxu0 0
  %840 = vmatprep.subr.bf16.mxu0 0
  %841 = vmatpush1.bf16.msra.mxu0 0
  %842 = vmatprep.subr.bf16.mxu0 0
  %843 = vmatpush1.bf16.msra.mxu0 0
  %844 = vmatprep.subr.bf16.mxu0 0
  %845 = vmatpush1.bf16.msra.mxu0 0
  %846 = vmatprep.subr.bf16.mxu0 0
  %847 = vmatpush1.bf16.msra.mxu0 0
  %848 = vmatprep.subr.bf16.mxu0 0
  %849 = vmatpush1.bf16.msra.mxu0 0
  %850 = vmatprep.subr.bf16.mxu0 0
  %851 = vmatpush1.bf16.msra.mxu0 0
  %852 = vmatprep.subr.bf16.mxu0 0
  %853 = vmatpush1.bf16.msra.mxu0 %v836
  %854 = vmatprep.subr.bf16.mxu0 0
  %855 = vmatpush2.bf16.msra.mxu0 0
  %856 = vmatprep.subr.bf16.mxu0 0
  %857 = vmatpush2.bf16.msra.mxu0 0
  %858 = vmatprep.subr.bf16.mxu0 0
  %859 = vmatpush2.bf16.msra.mxu0 0
  %860 = vmatprep.subr.bf16.mxu0 0
  %861 = vmatpush2.bf16.msra.mxu0 0
  %862 = vmatprep.subr.bf16.mxu0 0
  %863 = vmatpush2.bf16.msra.mxu0 0
  %864 = vmatprep.subr.bf16.mxu0 0
  %865 = vmatpush2.bf16.msra.mxu0 0
  %866 = vmatprep.subr.bf16.mxu0 0
  %867 = vmatpush2.bf16.msra.mxu0 0
  %868 = vmatprep.subr.bf16.mxu0 0
  %869 = vmatpush2.bf16.msra.mxu0 0
  %870 = vmatprep.mubr.bf16.mxu0 0
  %871 = vmatmul.mubr.bf16.gmra.mxu0 %v833
  %v872 = vpop.f32.mrf.mxu0
  %v873 = vadd.f32 0.0, %v872
  %v874 = vpop.f32.mrf.mxu0
  %v875 = vpop.f32.mrf.mxu0
  %v876 = vpop.f32.mrf.mxu0
  %877 = vdwg.mxu0
  %878 = vrot.lane.b32.xlu0 %v180, 64
  %v879 = vpop.permute.xlu0 %878
  %v881 = vsel %vm199, %v681, 0
  %v884 = vsel %vm690, %v879, 0
  %886 = vmatprep.subr.bf16.mxu0 0
  %887 = vmatpush1.bf16.msra.mxu0 0
  %888 = vmatprep.subr.bf16.mxu0 0
  %889 = vmatpush1.bf16.msra.mxu0 0
  %890 = vmatprep.subr.bf16.mxu0 0
  %891 = vmatpush1.bf16.msra.mxu0 0
  %892 = vmatprep.subr.bf16.mxu0 0
  %893 = vmatpush1.bf16.msra.mxu0 0
  %894 = vmatprep.subr.bf16.mxu0 0
  %895 = vmatpush1.bf16.msra.mxu0 0
  %896 = vmatprep.subr.bf16.mxu0 0
  %897 = vmatpush1.bf16.msra.mxu0 0
  %898 = vmatprep.subr.bf16.mxu0 0
  %899 = vmatpush1.bf16.msra.mxu0 0
  %900 = vmatprep.subr.bf16.mxu0 0
  %901 = vmatpush1.bf16.msra.mxu0 %v884
  %902 = vmatprep.subr.bf16.mxu0 0
  %903 = vmatpush2.bf16.msra.mxu0 0
  %904 = vmatprep.subr.bf16.mxu0 0
  %905 = vmatpush2.bf16.msra.mxu0 0
  %906 = vmatprep.subr.bf16.mxu0 0
  %907 = vmatpush2.bf16.msra.mxu0 0
  %908 = vmatprep.subr.bf16.mxu0 0
  %909 = vmatpush2.bf16.msra.mxu0 0
  %910 = vmatprep.subr.bf16.mxu0 0
  %911 = vmatpush2.bf16.msra.mxu0 0
  %912 = vmatprep.subr.bf16.mxu0 0
  %913 = vmatpush2.bf16.msra.mxu0 0
  %914 = vmatprep.subr.bf16.mxu0 0
  %915 = vmatpush2.bf16.msra.mxu0 0
  %916 = vmatprep.subr.bf16.mxu0 0
  %917 = vmatpush2.bf16.msra.mxu0 0
  %918 = vmatprep.mubr.bf16.mxu0 0
  %919 = vmatmul.mubr.bf16.gmra.mxu0 %v881
  %v920 = vpop.f32.mrf.mxu0
  %v921 = vadd.f32 0.0, %v920
  %v922 = vpop.f32.mrf.mxu0
  %v923 = vpop.f32.mrf.mxu0
  %v924 = vpop.f32.mrf.mxu0
  %925 = vdwg.mxu0
  %926 = vrot.lane.b32.xlu0 %v181, 64
  %v927 = vpop.permute.xlu0 %926
  %v929 = vsel %vm199, %v682, 0
  %v932 = vsel %vm690, %v927, 0
  %934 = vmatprep.subr.bf16.mxu0 0
  %935 = vmatpush1.bf16.msra.mxu0 0
  %936 = vmatprep.subr.bf16.mxu0 0
  %937 = vmatpush1.bf16.msra.mxu0 0
  %938 = vmatprep.subr.bf16.mxu0 0
  %939 = vmatpush1.bf16.msra.mxu0 0
  %940 = vmatprep.subr.bf16.mxu0 0
  %941 = vmatpush1.bf16.msra.mxu0 0
  %942 = vmatprep.subr.bf16.mxu0 0
  %943 = vmatpush1.bf16.msra.mxu0 0
  %944 = vmatprep.subr.bf16.mxu0 0
  %945 = vmatpush1.bf16.msra.mxu0 0
  %946 = vmatprep.subr.bf16.mxu0 0
  %947 = vmatpush1.bf16.msra.mxu0 0
  %948 = vmatprep.subr.bf16.mxu0 0
  %949 = vmatpush1.bf16.msra.mxu0 %v932
  %950 = vmatprep.subr.bf16.mxu0 0
  %951 = vmatpush2.bf16.msra.mxu0 0
  %952 = vmatprep.subr.bf16.mxu0 0
  %953 = vmatpush2.bf16.msra.mxu0 0
  %954 = vmatprep.subr.bf16.mxu0 0
  %955 = vmatpush2.bf16.msra.mxu0 0
  %956 = vmatprep.subr.bf16.mxu0 0
  %957 = vmatpush2.bf16.msra.mxu0 0
  %958 = vmatprep.subr.bf16.mxu0 0
  %959 = vmatpush2.bf16.msra.mxu0 0
  %960 = vmatprep.subr.bf16.mxu0 0
  %961 = vmatpush2.bf16.msra.mxu0 0
  %962 = vmatprep.subr.bf16.mxu0 0
  %963 = vmatpush2.bf16.msra.mxu0 0
  %964 = vmatprep.subr.bf16.mxu0 0
  %965 = vmatpush2.bf16.msra.mxu0 0
  %966 = vmatprep.mubr.bf16.mxu0 0
  %967 = vmatmul.mubr.bf16.gmra.mxu0 %v929
  %v968 = vpop.f32.mrf.mxu0
  %v969 = vadd.f32 0.0, %v968
  %v970 = vpop.f32.mrf.mxu0
  %v971 = vpop.f32.mrf.mxu0
  %v972 = vpop.f32.mrf.mxu0
  %973 = vdwg.mxu0
  %974 = vrot.lane.b32.xlu0 %v182, 64
  %v975 = vpop.permute.xlu0 %974
  %v977 = vsel %vm199, %v683, 0
  %v980 = vsel %vm690, %v975, 0
  %982 = vmatprep.subr.bf16.mxu0 0
  %983 = vmatpush1.bf16.msra.mxu0 0
  %984 = vmatprep.subr.bf16.mxu0 0
  %985 = vmatpush1.bf16.msra.mxu0 0
  %986 = vmatprep.subr.bf16.mxu0 0
  %987 = vmatpush1.bf16.msra.mxu0 0
  %988 = vmatprep.subr.bf16.mxu0 0
  %989 = vmatpush1.bf16.msra.mxu0 0
  %990 = vmatprep.subr.bf16.mxu0 0
  %991 = vmatpush1.bf16.msra.mxu0 0
  %992 = vmatprep.subr.bf16.mxu0 0
  %993 = vmatpush1.bf16.msra.mxu0 0
  %994 = vmatprep.subr.bf16.mxu0 0
  %995 = vmatpush1.bf16.msra.mxu0 0
  %996 = vmatprep.subr.bf16.mxu0 0
  %997 = vmatpush1.bf16.msra.mxu0 %v980
  %998 = vmatprep.subr.bf16.mxu0 0
  %999 = vmatpush2.bf16.msra.mxu0 0
  %1000 = vmatprep.subr.bf16.mxu0 0
  %1001 = vmatpush2.bf16.msra.mxu0 0
  %1002 = vmatprep.subr.bf16.mxu0 0
  %1003 = vmatpush2.bf16.msra.mxu0 0
  %1004 = vmatprep.subr.bf16.mxu0 0
  %1005 = vmatpush2.bf16.msra.mxu0 0
  %1006 = vmatprep.subr.bf16.mxu0 0
  %1007 = vmatpush2.bf16.msra.mxu0 0
  %1008 = vmatprep.subr.bf16.mxu0 0
  %1009 = vmatpush2.bf16.msra.mxu0 0
  %1010 = vmatprep.subr.bf16.mxu0 0
  %1011 = vmatpush2.bf16.msra.mxu0 0
  %1012 = vmatprep.subr.bf16.mxu0 0
  %1013 = vmatpush2.bf16.msra.mxu0 0
  %1014 = vmatprep.mubr.bf16.mxu0 0
  %1015 = vmatmul.mubr.bf16.gmra.mxu0 %v977
  %v1016 = vpop.f32.mrf.mxu0
  %v1017 = vadd.f32 0.0, %v1016
  %v1018 = vpop.f32.mrf.mxu0
  %v1019 = vpop.f32.mrf.mxu0
  %v1020 = vpop.f32.mrf.mxu0
  %1021 = vdwg.mxu0
  %1022 = vrot.lane.b32.xlu0 %v183, 64
  %v1023 = vpop.permute.xlu0 %1022
  %v1025 = vsel %vm199, %v684, 0
  %v1028 = vsel %vm690, %v1023, 0
  %1030 = vmatprep.subr.bf16.mxu0 0
  %1031 = vmatpush1.bf16.msra.mxu0 0
  %1032 = vmatprep.subr.bf16.mxu0 0
  %1033 = vmatpush1.bf16.msra.mxu0 0
  %1034 = vmatprep.subr.bf16.mxu0 0
  %1035 = vmatpush1.bf16.msra.mxu0 0
  %1036 = vmatprep.subr.bf16.mxu0 0
  %1037 = vmatpush1.bf16.msra.mxu0 0
  %1038 = vmatprep.subr.bf16.mxu0 0
  %1039 = vmatpush1.bf16.msra.mxu0 0
  %1040 = vmatprep.subr.bf16.mxu0 0
  %1041 = vmatpush1.bf16.msra.mxu0 0
  %1042 = vmatprep.subr.bf16.mxu0 0
  %1043 = vmatpush1.bf16.msra.mxu0 0
  %1044 = vmatprep.subr.bf16.mxu0 0
  %1045 = vmatpush1.bf16.msra.mxu0 %v1028
  %1046 = vmatprep.subr.bf16.mxu0 0
  %1047 = vmatpush2.bf16.msra.mxu0 0
  %1048 = vmatprep.subr.bf16.mxu0 0
  %1049 = vmatpush2.bf16.msra.mxu0 0
  %1050 = vmatprep.subr.bf16.mxu0 0
  %1051 = vmatpush2.bf16.msra.mxu0 0
  %1052 = vmatprep.subr.bf16.mxu0 0
  %1053 = vmatpush2.bf16.msra.mxu0 0
  %1054 = vmatprep.subr.bf16.mxu0 0
  %1055 = vmatpush2.bf16.msra.mxu0 0
  %1056 = vmatprep.subr.bf16.mxu0 0
  %1057 = vmatpush2.bf16.msra.mxu0 0
  %1058 = vmatprep.subr.bf16.mxu0 0
  %1059 = vmatpush2.bf16.msra.mxu0 0
  %1060 = vmatprep.subr.bf16.mxu0 0
  %1061 = vmatpush2.bf16.msra.mxu0 0
  %1062 = vmatprep.mubr.bf16.mxu0 0
  %1063 = vmatmul.mubr.bf16.gmra.mxu0 %v1025
  %v1064 = vpop.f32.mrf.mxu0
  %v1065 = vadd.f32 0.0, %v1064
  %v1066 = vpop.f32.mrf.mxu0
  %v1067 = vpop.f32.mrf.mxu0
  %v1068 = vpop.f32.mrf.mxu0
  %1069 = vdwg.mxu0
  %v1070 = vpack.c.bf16 %v777, %v729
  %v1071 = vpack.c.bf16 %v873, %v825
  %v1073 = vsel %vm199, %v1071, 0
  %v1076 = vsel %vm690, %v122, 0
  %1078 = vmatprep.subr.bf16.mxu0 0
  %1079 = vmatpush1.bf16.msra.mxu0 0
  %1080 = vmatprep.subr.bf16.mxu0 0
  %1081 = vmatpush1.bf16.msra.mxu0 0
  %1082 = vmatprep.subr.bf16.mxu0 0
  %1083 = vmatpush1.bf16.msra.mxu0 0
  %1084 = vmatprep.subr.bf16.mxu0 0
  %1085 = vmatpush1.bf16.msra.mxu0 0
  %1086 = vmatprep.subr.bf16.mxu0 0
  %1087 = vmatpush1.bf16.msra.mxu0 0
  %1088 = vmatprep.subr.bf16.mxu0 0
  %1089 = vmatpush1.bf16.msra.mxu0 0
  %1090 = vmatprep.subr.bf16.mxu0 0
  %1091 = vmatpush1.bf16.msra.mxu0 0
  %1092 = vmatprep.subr.bf16.mxu0 0
  %1093 = vmatpush1.bf16.msra.mxu0 %v1076
  %1094 = vmatprep.subr.bf16.mxu0 0
  %1095 = vmatpush2.bf16.msra.mxu0 0
  %1096 = vmatprep.subr.bf16.mxu0 0
  %1097 = vmatpush2.bf16.msra.mxu0 0
  %1098 = vmatprep.subr.bf16.mxu0 0
  %1099 = vmatpush2.bf16.msra.mxu0 0
  %1100 = vmatprep.subr.bf16.mxu0 0
  %1101 = vmatpush2.bf16.msra.mxu0 0
  %1102 = vmatprep.subr.bf16.mxu0 0
  %1103 = vmatpush2.bf16.msra.mxu0 0
  %1104 = vmatprep.subr.bf16.mxu0 0
  %1105 = vmatpush2.bf16.msra.mxu0 0
  %1106 = vmatprep.subr.bf16.mxu0 0
  %1107 = vmatpush2.bf16.msra.mxu0 0
  %1108 = vmatprep.subr.bf16.mxu0 0
  %1109 = vmatpush2.bf16.msra.mxu0 0
  %1110 = vmatprep.mubr.bf16.mxu0 0
  %1111 = vmatmul.mubr.bf16.gmra.mxu0 %v1073
  %v1112 = vpop.f32.mrf.mxu0
  %v1113 = vadd.f32 0.0, %v1112
  %v1114 = vpop.f32.mrf.mxu0
  %v1115 = vpop.f32.mrf.mxu0
  %v1116 = vadd.f32 0.0, %v1115
  %v1117 = vpop.f32.mrf.mxu0
  %1118 = vdwg.mxu0
  %v1120 = vsel %vm199, %v1070, 0
  %v1123 = vsel %vm690, %v121, 0
  %1125 = vmatprep.subr.bf16.mxu0 0
  %1126 = vmatpush1.bf16.msra.mxu0 0
  %1127 = vmatprep.subr.bf16.mxu0 0
  %1128 = vmatpush1.bf16.msra.mxu0 0
  %1129 = vmatprep.subr.bf16.mxu0 0
  %1130 = vmatpush1.bf16.msra.mxu0 0
  %1131 = vmatprep.subr.bf16.mxu0 0
  %1132 = vmatpush1.bf16.msra.mxu0 0
  %1133 = vmatprep.subr.bf16.mxu0 0
  %1134 = vmatpush1.bf16.msra.mxu0 0
  %1135 = vmatprep.subr.bf16.mxu0 0
  %1136 = vmatpush1.bf16.msra.mxu0 0
  %1137 = vmatprep.subr.bf16.mxu0 0
  %1138 = vmatpush1.bf16.msra.mxu0 0
  %1139 = vmatprep.subr.bf16.mxu0 0
  %1140 = vmatpush1.bf16.msra.mxu0 %v1123
  %1141 = vmatprep.subr.bf16.mxu0 0
  %1142 = vmatpush2.bf16.msra.mxu0 0
  %1143 = vmatprep.subr.bf16.mxu0 0
  %1144 = vmatpush2.bf16.msra.mxu0 0
  %1145 = vmatprep.subr.bf16.mxu0 0
  %1146 = vmatpush2.bf16.msra.mxu0 0
  %1147 = vmatprep.subr.bf16.mxu0 0
  %1148 = vmatpush2.bf16.msra.mxu0 0
  %1149 = vmatprep.subr.bf16.mxu0 0
  %1150 = vmatpush2.bf16.msra.mxu0 0
  %1151 = vmatprep.subr.bf16.mxu0 0
  %1152 = vmatpush2.bf16.msra.mxu0 0
  %1153 = vmatprep.subr.bf16.mxu0 0
  %1154 = vmatpush2.bf16.msra.mxu0 0
  %1155 = vmatprep.subr.bf16.mxu0 0
  %1156 = vmatpush2.bf16.msra.mxu0 0
  %1157 = vmatprep.mubr.bf16.mxu0 0
  %1158 = vmatmul.mubr.bf16.gmra.mxu0 %v1120
  %v1159 = vpop.f32.mrf.mxu0
  %v1160 = vadd.f32 %v1113, %v1159
  %v1161 = vpop.f32.mrf.mxu0
  %v1162 = vpop.f32.mrf.mxu0
  %v1163 = vadd.f32 %v1116, %v1162
  %v1164 = vpop.f32.mrf.mxu0
  %1165 = vdwg.mxu0
  %v1166 = vpack.c.bf16 %v969, %v921
  %v1168 = vsel %vm199, %v1166, 0
  %v1171 = vsel %vm690, %v123, 0
  %1173 = vmatprep.subr.bf16.mxu0 0
  %1174 = vmatpush1.bf16.msra.mxu0 0
  %1175 = vmatprep.subr.bf16.mxu0 0
  %1176 = vmatpush1.bf16.msra.mxu0 0
  %1177 = vmatprep.subr.bf16.mxu0 0
  %1178 = vmatpush1.bf16.msra.mxu0 0
  %1179 = vmatprep.subr.bf16.mxu0 0
  %1180 = vmatpush1.bf16.msra.mxu0 0
  %1181 = vmatprep.subr.bf16.mxu0 0
  %1182 = vmatpush1.bf16.msra.mxu0 0
  %1183 = vmatprep.subr.bf16.mxu0 0
  %1184 = vmatpush1.bf16.msra.mxu0 0
  %1185 = vmatprep.subr.bf16.mxu0 0
  %1186 = vmatpush1.bf16.msra.mxu0 0
  %1187 = vmatprep.subr.bf16.mxu0 0
  %1188 = vmatpush1.bf16.msra.mxu0 %v1171
  %1189 = vmatprep.subr.bf16.mxu0 0
  %1190 = vmatpush2.bf16.msra.mxu0 0
  %1191 = vmatprep.subr.bf16.mxu0 0
  %1192 = vmatpush2.bf16.msra.mxu0 0
  %1193 = vmatprep.subr.bf16.mxu0 0
  %1194 = vmatpush2.bf16.msra.mxu0 0
  %1195 = vmatprep.subr.bf16.mxu0 0
  %1196 = vmatpush2.bf16.msra.mxu0 0
  %1197 = vmatprep.subr.bf16.mxu0 0
  %1198 = vmatpush2.bf16.msra.mxu0 0
  %1199 = vmatprep.subr.bf16.mxu0 0
  %1200 = vmatpush2.bf16.msra.mxu0 0
  %1201 = vmatprep.subr.bf16.mxu0 0
  %1202 = vmatpush2.bf16.msra.mxu0 0
  %1203 = vmatprep.subr.bf16.mxu0 0
  %1204 = vmatpush2.bf16.msra.mxu0 0
  %1205 = vmatprep.mubr.bf16.mxu0 0
  %1206 = vmatmul.mubr.bf16.gmra.mxu0 %v1168
  %v1207 = vpop.f32.mrf.mxu0
  %v1208 = vadd.f32 0.0, %v1207
  %v1209 = vpop.f32.mrf.mxu0
  %v1210 = vpop.f32.mrf.mxu0
  %v1211 = vadd.f32 0.0, %v1210
  %v1212 = vpop.f32.mrf.mxu0
  %1213 = vdwg.mxu0
  %v1214 = vadd.f32 %v1160, %v1208
  %v1215 = vadd.f32 %v1163, %v1211
  %v1216 = vpack.c.bf16 %v1065, %v1017
  %v1218 = vsel %vm199, %v1216, 0
  %v1221 = vsel %vm690, %v124, 0
  %1223 = vmatprep.subr.bf16.mxu0 0
  %1224 = vmatpush1.bf16.msra.mxu0 0
  %1225 = vmatprep.subr.bf16.mxu0 0
  %1226 = vmatpush1.bf16.msra.mxu0 0
  %1227 = vmatprep.subr.bf16.mxu0 0
  %1228 = vmatpush1.bf16.msra.mxu0 0
  %1229 = vmatprep.subr.bf16.mxu0 0
  %1230 = vmatpush1.bf16.msra.mxu0 0
  %1231 = vmatprep.subr.bf16.mxu0 0
  %1232 = vmatpush1.bf16.msra.mxu0 0
  %1233 = vmatprep.subr.bf16.mxu0 0
  %1234 = vmatpush1.bf16.msra.mxu0 0
  %1235 = vmatprep.subr.bf16.mxu0 0
  %1236 = vmatpush1.bf16.msra.mxu0 0
  %1237 = vmatprep.subr.bf16.mxu0 0
  %1238 = vmatpush1.bf16.msra.mxu0 %v1221
  %1239 = vmatprep.subr.bf16.mxu0 0
  %1240 = vmatpush2.bf16.msra.mxu0 0
  %1241 = vmatprep.subr.bf16.mxu0 0
  %1242 = vmatpush2.bf16.msra.mxu0 0
  %1243 = vmatprep.subr.bf16.mxu0 0
  %1244 = vmatpush2.bf16.msra.mxu0 0
  %1245 = vmatprep.subr.bf16.mxu0 0
  %1246 = vmatpush2.bf16.msra.mxu0 0
  %1247 = vmatprep.subr.bf16.mxu0 0
  %1248 = vmatpush2.bf16.msra.mxu0 0
  %1249 = vmatprep.subr.bf16.mxu0 0
  %1250 = vmatpush2.bf16.msra.mxu0 0
  %1251 = vmatprep.subr.bf16.mxu0 0
  %1252 = vmatpush2.bf16.msra.mxu0 0
  %1253 = vmatprep.subr.bf16.mxu0 0
  %1254 = vmatpush2.bf16.msra.mxu0 0
  %1255 = vmatprep.mubr.bf16.mxu0 0
  %1256 = vmatmul.mubr.bf16.gmra.mxu0 %v1218
  %v1257 = vpop.f32.mrf.mxu0
  %v1258 = vadd.f32 0.0, %v1257
  %v1259 = vpop.f32.mrf.mxu0
  %v1260 = vpop.f32.mrf.mxu0
  %v1261 = vadd.f32 0.0, %v1260
  %v1262 = vpop.f32.mrf.mxu0
  %1263 = vdwg.mxu0
  %v1264 = vadd.f32 %v1214, %v1258
  %v1265 = vadd.f32 %v1215, %v1261
  %v1267 = vlaneseq
  %v1268 = vshrl.u32 %v1267, 7
  %v1269 = vsub.s32 0, %v1268
  %v1270 = vrot.slane %v125, %v1269
  %v1272 = vadd.f32 %v1264, %v1270
  %v1273 = vadd.f32 %v1265, %v1270
  %v1274 = vld [vmem:[%s5] sm:$0x1]
  %v1275 = vld [vmem:[%s6] sm:$0x1]
  %v1276 = vld [vmem:[%s7] sm:$0xf]
  %v1277 = vld [vmem:[%s7 + $0x4] sm:$0xf]
  %v1278 = vld [vmem:[%s7 + $0x8] sm:$0xf]
  %v1279 = vld [vmem:[%s7 + $0xc] sm:$0xf]
  %v1280 = vld [vmem:[%s8] sm:$0x1]
  %v1281 = vld [vmem:[%s9] sm:$0xf]
  %v1282 = vld [vmem:[%s9 + $0x4] sm:$0xf]
  %v1283 = vld [vmem:[%s9 + $0x8] sm:$0xf]
  %v1284 = vld [vmem:[%s9 + $0xc] sm:$0xf]
  %v1285 = vld [vmem:[%s9 + $0x10] sm:$0xf]
  %v1286 = vld [vmem:[%s9 + $0x14] sm:$0xf]
  %v1287 = vld [vmem:[%s9 + $0x18] sm:$0xf]
  %v1288 = vld [vmem:[%s9 + $0x1c] sm:$0xf]
  %v1289 = vld [vmem:[%s10] sm:$0x1]
  %v1290 = vld [vmem:[%s11] sm:$0x1]
  %v1291 = vld [vmem:[%s12] sm:$0x1]
  %v1292 = vadd.f32 %v1272, %v47
  %v1293 = vadd.f32 %v1273, %v48
  %v1294 = vsel %vm70, %v1292, 0.0
  %1295 = vadd.xlane.f32.xlu0 %v1294
  %v1296 = vpop.xlane.xlu0 %1295
  %v1297 = vsel %vm70, %v1293, 0.0
  %1298 = vadd.xlane.f32.xlu0 %v1297
  %v1299 = vpop.xlane.xlu0 %1298
  %v1300 = vrcp.pop 32.0
  %v1301 = vmul.f32 %v1296, %v1300
  %v1302 = vmul.f32 %v1299, %v1300
  %v1303 = vsub.f32 %v1292, %v1301
  %v1304 = vsub.f32 %v1293, %v1302
  %v1305 = vmul.f32 %v1303, %v1303
  %v1306 = vmul.f32 %v1304, %v1304
  %v1307 = vsel %vm70, %v1305, 0.0
  %1308 = vadd.xlane.f32.xlu0 %v1307
  %v1309 = vpop.xlane.xlu0 %1308
  %v1310 = vsel %vm70, %v1306, 0.0
  %1311 = vadd.xlane.f32.xlu0 %v1310
  %v1312 = vpop.xlane.xlu0 %1311
  %v1313 = vmul.f32 %v1309, %v1300
  %v1314 = vmul.f32 %v1312, %v1300
  %v1315 = vadd.f32 %v1313, 1e-05
  %v1316 = vadd.f32 %v1314, 1e-05
  %v1317 = vrsqrt.pop %v1315
  %v1318 = vrsqrt.pop %v1316
  %v1319 = vmul.f32 %v1303, %v1317
  %v1320 = vmul.f32 %v1304, %v1318
  %v1322 = vlaneseq
  %v1323 = vshrl.u32 %v1322, 7
  %v1324 = vsub.s32 0, %v1323
  %v1325 = vrot.slane %v1274, %v1324
  %v1327 = vmul.f32 %v1319, %v1325
  %v1328 = vmul.f32 %v1320, %v1325
  %v1330 = vlaneseq
  %v1331 = vshrl.u32 %v1330, 7
  %v1332 = vsub.s32 0, %v1331
  %v1333 = vrot.slane %v1275, %v1332
  %v1335 = vadd.f32 %v1327, %v1333
  %v1336 = vadd.f32 %v1328, %v1333
  %v1337 = vpack.c.bf16 %v1336, %v1335
  %v1339 = vlaneseq
  %v1340 = vshrl.u32 %v1339, 7
  %v1341 = vsub.s32 0, %v1340
  %v1342 = vrot.slane %v1280, %v1341
  %v1348 = vunpack.c.l.b16 %v1276
  %v1349 = vunpack.c.l.b16 %v1277
  %v1350 = vunpack.c.l.b16 %v1278
  %v1351 = vunpack.c.l.b16 %v1279
  %v1352 = vpack.c.b16 %v1349, %v1348
  %v1353 = vpack.c.b16 %v1351, %v1350
  %v1357 = vsel %vm70, %v1337, 0
  %1359 = vmatprep.subr.bf16.mxu0 0
  %1360 = vmatpush1.bf16.msra.mxu0 0
  %1361 = vmatprep.subr.bf16.mxu0 0
  %1362 = vmatpush1.bf16.msra.mxu0 0
  %1363 = vmatprep.subr.bf16.mxu0 0
  %1364 = vmatpush1.bf16.msra.mxu0 0
  %1365 = vmatprep.subr.bf16.mxu0 0
  %1366 = vmatpush1.bf16.msra.mxu0 0
  %1367 = vmatprep.subr.bf16.mxu0 0
  %1368 = vmatpush1.bf16.msra.mxu0 0
  %1369 = vmatprep.subr.bf16.mxu0 0
  %1370 = vmatpush1.bf16.msra.mxu0 0
  %1371 = vmatprep.subr.bf16.mxu0 0
  %1372 = vmatpush1.bf16.msra.mxu0 %v1353
  %1373 = vmatprep.subr.bf16.mxu0 0
  %1374 = vmatpush1.bf16.msra.mxu0 %v1352
  %1375 = vmatprep.subr.bf16.mxu0 0
  %1376 = vmatpush2.bf16.msra.mxu0 0
  %1377 = vmatprep.subr.bf16.mxu0 0
  %1378 = vmatpush2.bf16.msra.mxu0 0
  %1379 = vmatprep.subr.bf16.mxu0 0
  %1380 = vmatpush2.bf16.msra.mxu0 0
  %1381 = vmatprep.subr.bf16.mxu0 0
  %1382 = vmatpush2.bf16.msra.mxu0 0
  %1383 = vmatprep.subr.bf16.mxu0 0
  %1384 = vmatpush2.bf16.msra.mxu0 0
  %1385 = vmatprep.subr.bf16.mxu0 0
  %1386 = vmatpush2.bf16.msra.mxu0 0
  %1387 = vmatprep.subr.bf16.mxu0 0
  %1388 = vmatpush2.bf16.msra.mxu0 0
  %1389 = vmatprep.subr.bf16.mxu0 0
  %1390 = vmatpush2.bf16.msra.mxu0 0
  %1391 = vmatprep.mubr.bf16.mxu0 0
  %1392 = vmatmul.mubr.bf16.gmra.mxu0 %v1357
  %v1393 = vpop.f32.mrf.mxu0
  %v1394 = vadd.f32 %v1342, %v1393
  %v1395 = vpop.f32.mrf.mxu0
  %v1396 = vpop.f32.mrf.mxu0
  %v1397 = vadd.f32 %v1342, %v1396
  %v1398 = vpop.f32.mrf.mxu0
  %1399 = vdwg.mxu0
  %vm1400 = vcmp.ge.f32.partialorder %v1394, 0.0
  %vm1401 = vcmp.ge.f32.partialorder %v1397, 0.0
  %v1402 = vmul.f32 %v1394, 0.01
  %v1403 = vmul.f32 %v1397, 0.01
  %v1404 = vsel %vm1400, %v1394, %v1402
  %v1405 = vsel %vm1401, %v1397, %v1403
  %v1406 = vpack.c.bf16 %v1405, %v1404
  %v1408 = vlaneseq
  %v1409 = vshrl.u32 %v1408, 7
  %v1410 = vsub.s32 0, %v1409
  %v1411 = vrot.slane %v1289, %v1410
  %v1421 = vunpack.c.l.b16 %v1281
  %v1422 = vunpack.c.l.b16 %v1282
  %v1423 = vunpack.c.l.b16 %v1283
  %v1424 = vunpack.c.l.b16 %v1284
  %v1425 = vunpack.c.l.b16 %v1285
  %v1426 = vunpack.c.l.b16 %v1286
  %v1427 = vunpack.c.l.b16 %v1287
  %v1428 = vunpack.c.l.b16 %v1288
  %v1429 = vpack.c.b16 %v1422, %v1421
  %v1430 = vpack.c.b16 %v1424, %v1423
  %v1431 = vpack.c.b16 %v1426, %v1425
  %v1432 = vpack.c.b16 %v1428, %v1427
  %vm1437 = vcmask 523264
  %v1439 = vsel %vm1437, %v1406, 0
  %1441 = vmatprep.subr.bf16.mxu0 0
  %1442 = vmatpush1.bf16.msra.mxu0 0
  %1443 = vmatprep.subr.bf16.mxu0 0
  %1444 = vmatpush1.bf16.msra.mxu0 0
  %1445 = vmatprep.subr.bf16.mxu0 0
  %1446 = vmatpush1.bf16.msra.mxu0 0
  %1447 = vmatprep.subr.bf16.mxu0 0
  %1448 = vmatpush1.bf16.msra.mxu0 0
  %1449 = vmatprep.subr.bf16.mxu0 0
  %1450 = vmatpush1.bf16.msra.mxu0 %v1432
  %1451 = vmatprep.subr.bf16.mxu0 0
  %1452 = vmatpush1.bf16.msra.mxu0 %v1431
  %1453 = vmatprep.subr.bf16.mxu0 0
  %1454 = vmatpush1.bf16.msra.mxu0 %v1430
  %1455 = vmatprep.subr.bf16.mxu0 0
  %1456 = vmatpush1.bf16.msra.mxu0 %v1429
  %1457 = vmatprep.subr.bf16.mxu0 0
  %1458 = vmatpush2.bf16.msra.mxu0 0
  %1459 = vmatprep.subr.bf16.mxu0 0
  %1460 = vmatpush2.bf16.msra.mxu0 0
  %1461 = vmatprep.subr.bf16.mxu0 0
  %1462 = vmatpush2.bf16.msra.mxu0 0
  %1463 = vmatprep.subr.bf16.mxu0 0
  %1464 = vmatpush2.bf16.msra.mxu0 0
  %1465 = vmatprep.subr.bf16.mxu0 0
  %1466 = vmatpush2.bf16.msra.mxu0 0
  %1467 = vmatprep.subr.bf16.mxu0 0
  %1468 = vmatpush2.bf16.msra.mxu0 0
  %1469 = vmatprep.subr.bf16.mxu0 0
  %1470 = vmatpush2.bf16.msra.mxu0 0
  %1471 = vmatprep.subr.bf16.mxu0 0
  %1472 = vmatpush2.bf16.msra.mxu0 0
  %1473 = vmatprep.mubr.bf16.mxu0 0
  %1474 = vmatmul.mubr.bf16.gmra.mxu0 %v1439
  %v1475 = vpop.f32.mrf.mxu0
  %v1476 = vadd.f32 %v1411, %v1475
  %v1477 = vpop.f32.mrf.mxu0
  %v1478 = vpop.f32.mrf.mxu0
  %v1479 = vadd.f32 %v1411, %v1478
  %v1480 = vpop.f32.mrf.mxu0
  %1481 = vdwg.mxu0
  %v1482 = vadd.f32 %v1476, %v1335
  %v1483 = vadd.f32 %v1479, %v1336
  %v1484 = vsel %vm70, %v1482, 0.0
  %1485 = vadd.xlane.f32.xlu0 %v1484
  %v1486 = vpop.xlane.xlu0 %1485
  %v1487 = vsel %vm70, %v1483, 0.0
  %1488 = vadd.xlane.f32.xlu0 %v1487
  %v1489 = vpop.xlane.xlu0 %1488
  %v1490 = vmul.f32 %v1486, %v1300
  %v1491 = vmul.f32 %v1489, %v1300
  %v1492 = vsub.f32 %v1482, %v1490
  %v1493 = vsub.f32 %v1483, %v1491
  %v1494 = vmul.f32 %v1492, %v1492
  %v1495 = vmul.f32 %v1493, %v1493
  %v1496 = vsel %vm70, %v1494, 0.0
  %1497 = vadd.xlane.f32.xlu0 %v1496
  %v1498 = vpop.xlane.xlu0 %1497
  %v1499 = vsel %vm70, %v1495, 0.0
  %1500 = vadd.xlane.f32.xlu0 %v1499
  %v1501 = vpop.xlane.xlu0 %1500
  %v1502 = vmul.f32 %v1498, %v1300
  %v1503 = vmul.f32 %v1501, %v1300
  %v1504 = vadd.f32 %v1502, 1e-05
  %v1505 = vadd.f32 %v1503, 1e-05
  %v1506 = vrsqrt.pop %v1504
  %v1507 = vrsqrt.pop %v1505
  %v1508 = vmul.f32 %v1492, %v1506
  %v1509 = vmul.f32 %v1493, %v1507
  %v1511 = vlaneseq
  %v1512 = vshrl.u32 %v1511, 7
  %v1513 = vsub.s32 0, %v1512
  %v1514 = vrot.slane %v1290, %v1513
  %v1516 = vmul.f32 %v1508, %v1514
  %v1517 = vmul.f32 %v1509, %v1514
  %v1519 = vlaneseq
  %v1520 = vshrl.u32 %v1519, 7
  %v1521 = vsub.s32 0, %v1520
  %v1522 = vrot.slane %v1291, %v1521
  %v1524 = vadd.f32 %v1516, %v1522
  %v1525 = vadd.f32 %v1517, %v1522
  %v1526 = vpack.c.bf16 %v1524, %v1524
  %v1527 = vpack.c.bf16 %v1525, %v1525
  %vm1528 = vcmask 257024
  %1529 = vst.msk [vmem:[%s13] sm:$0xf] %vm1528, %v1526
  %1530 = vst.msk [vmem:[%s13 + $0x4] sm:$0xf] %vm1528, %v1527
  // Predicated region
  $region54: #{transformer_forward.5} parent=0 // pred_check
    _
  $region55: #{transformer_forward.5} parent=0 // pred_check_branch
    %1532 = sbr.rel (0) target = $region57
  $region56: #{transformer_forward.5} parent=0 // pred_region
    _
  $region57: #{transformer_forward.5} parent=0 // pred_fallthru
    _
  // Predicated region
  $region58: #{transformer_forward.5} parent=0 // pred_check
    _
  $region59: #{transformer_forward.5} parent=0 // pred_check_branch
    %1534 = sbr.rel (0) target = $region61
  $region60: #{transformer_forward.5} parent=0 // pred_region
    _
  $region61: #{transformer_forward.5} parent=0 // pred_fallthru
    _

// kernel: transformer_forward.7
$region0: #{transformer_forward.7}
  #allocation0 [shape = 'u32[]', space=smem, size = 0x4, offset = 0x4, fixed_abs, tag = 'smem constant byte address 0x4 - core index']
  #allocation1 [shape = 'u32[144,128]{1,0:T(1,128)}', space=vmem, size = 0x12000, scoped, tag = 'internal scratch']
  %s0 = inlined_call_operand.vmem [shape: bf16[2,8,32], index: 0, kind: input, shape index: {}]
  %s1 = inlined_call_operand.vmem [shape: bf16[2,8,32], index: 1, kind: input, shape index: {}]
  %s2 = inlined_call_operand.vmem [shape: f32[2,1,8], index: 2, kind: input, shape index: {}]
  %s3 = inlined_call_operand.vmem [shape: bf16[32,96], index: 3, kind: input, shape index: {}]
  %s4 = inlined_call_operand.vmem [shape: bf16[32,32], index: 4, kind: input, shape index: {}]
  %s5 = inlined_call_operand.vmem [shape: f32[1,32], index: 5, kind: input, shape index: {}]
  %s6 = inlined_call_operand.vmem [shape: f32[1,32], index: 6, kind: input, shape index: {}]
  %s7 = inlined_call_operand.vmem [shape: f32[1,32], index: 7, kind: input, shape index: {}]
  %s8 = inlined_call_operand.vmem [shape: bf16[32,32], index: 8, kind: input, shape index: {}]
  %s9 = inlined_call_operand.vmem [shape: bf16[32,64], index: 9, kind: input, shape index: {}]
  %s10 = inlined_call_operand.vmem [shape: bf16[32,32], index: 10, kind: input, shape index: {}]
  %s11 = inlined_call_operand.vmem [shape: f32[1,32], index: 11, kind: input, shape index: {}]
  %s12 = inlined_call_operand.vmem [shape: f32[1,32], index: 12, kind: input, shape index: {}]
  %s13 = inlined_call_operand.vmem [shape: f32[1,32], index: 13, kind: input, shape index: {}]
  %s14 = inlined_call_operand.vmem [shape: bf16[32,64], index: 14, kind: input, shape index: {}]
  %s15 = inlined_call_operand.vmem [shape: f32[1,64], index: 15, kind: input, shape index: {}]
  %s16 = inlined_call_operand.vmem [shape: bf16[64,32], index: 16, kind: input, shape index: {}]
  %s17 = inlined_call_operand.vmem [shape: f32[1,32], index: 17, kind: input, shape index: {}]
  %s18 = inlined_call_operand.vmem [shape: f32[1,32], index: 18, kind: input, shape index: {}]
  %s19 = inlined_call_operand.vmem [shape: f32[1,32], index: 19, kind: input, shape index: {}]
  %s20 = inlined_call_operand.vmem [shape: bf16[2,8,32], index: 20, kind: output, shape index: {}]
  %s21 = sld [smem:[#allocation0]]
  $region90: #{transformer_forward.7} parent=0
    _
  %s23 = ssub.s32 1, %s21
  %s24 = scalar_select 0, %s23, %s21
  // Predicated region
  $region2: #{transformer_forward.7} parent=0 // pred_check
    _
  $region3: #{transformer_forward.7} parent=0 // pred_check_branch
    %26 = sbr.rel (0) target = $region5
  $region4: #{transformer_forward.7} parent=0 // pred_region
    _
  $region5: #{transformer_forward.7} parent=0 // pred_fallthru
    _
  // Predicated region
  $region6: #{transformer_forward.7} parent=0 // pred_check
    _
  $region7: #{transformer_forward.7} parent=0 // pred_check_branch
    %28 = sbr.rel (0) target = $region9
  $region8: #{transformer_forward.7} parent=0 // pred_region
    _
  $region9: #{transformer_forward.7} parent=0 // pred_fallthru
    _
  // Predicated region
  $region10: #{transformer_forward.7} parent=0 // pred_check
    _
  $region11: #{transformer_forward.7} parent=0 // pred_check_branch
    %30 = sbr.rel (0) target = $region13
  $region12: #{transformer_forward.7} parent=0 // pred_region
    _
  $region13: #{transformer_forward.7} parent=0 // pred_fallthru
    _
  // Predicated region
  $region14: #{transformer_forward.7} parent=0 // pred_check
    _
  $region15: #{transformer_forward.7} parent=0 // pred_check_branch
    %32 = sbr.rel (0) target = $region17
  $region16: #{transformer_forward.7} parent=0 // pred_region
    _
  $region17: #{transformer_forward.7} parent=0 // pred_fallthru
    _
  // Predicated region
  $region18: #{transformer_forward.7} parent=0 // pred_check
    _
  $region19: #{transformer_forward.7} parent=0 // pred_check_branch
    %34 = sbr.rel (0) target = $region21
  $region20: #{transformer_forward.7} parent=0 // pred_region
    _
  $region21: #{transformer_forward.7} parent=0 // pred_fallthru
    _
  // Predicated region
  $region22: #{transformer_forward.7} parent=0 // pred_check
    _
  $region23: #{transformer_forward.7} parent=0 // pred_check_branch
    %36 = sbr.rel (0) target = $region25
  $region24: #{transformer_forward.7} parent=0 // pred_region
    _
  $region25: #{transformer_forward.7} parent=0 // pred_fallthru
    _
  // Predicated region
  $region26: #{transformer_forward.7} parent=0 // pred_check
    _
  $region27: #{transformer_forward.7} parent=0 // pred_check_branch
    %38 = sbr.rel (0) target = $region29
  $region28: #{transformer_forward.7} parent=0 // pred_region
    _
  $region29: #{transformer_forward.7} parent=0 // pred_fallthru
    _
  // Predicated region
  $region30: #{transformer_forward.7} parent=0 // pred_check
    _
  $region31: #{transformer_forward.7} parent=0 // pred_check_branch
    %40 = sbr.rel (0) target = $region33
  $region32: #{transformer_forward.7} parent=0 // pred_region
    _
  $region33: #{transformer_forward.7} parent=0 // pred_fallthru
    _
  // Predicated region
  $region34: #{transformer_forward.7} parent=0 // pred_check
    _
  $region35: #{transformer_forward.7} parent=0 // pred_check_branch
    %42 = sbr.rel (0) target = $region37
  $region36: #{transformer_forward.7} parent=0 // pred_region
    _
  $region37: #{transformer_forward.7} parent=0 // pred_fallthru
    _
  // Predicated region
  $region38: #{transformer_forward.7} parent=0 // pred_check
    _
  $region39: #{transformer_forward.7} parent=0 // pred_check_branch
    %44 = sbr.rel (0) target = $region41
  $region40: #{transformer_forward.7} parent=0 // pred_region
    _
  $region41: #{transformer_forward.7} parent=0 // pred_fallthru
    _
  // Predicated region
  $region42: #{transformer_forward.7} parent=0 // pred_check
    _
  $region43: #{transformer_forward.7} parent=0 // pred_check_branch
    %46 = sbr.rel (0) target = $region45
  $region44: #{transformer_forward.7} parent=0 // pred_region
    _
  $region45: #{transformer_forward.7} parent=0 // pred_fallthru
    _
  // Predicated region
  $region46: #{transformer_forward.7} parent=0 // pred_check
    _
  $region47: #{transformer_forward.7} parent=0 // pred_check_branch
    %48 = sbr.rel (0) target = $region49
  $region48: #{transformer_forward.7} parent=0 // pred_region
    _
  $region49: #{transformer_forward.7} parent=0 // pred_fallthru
    _
  // Predicated region
  $region50: #{transformer_forward.7} parent=0 // pred_check
    _
  $region51: #{transformer_forward.7} parent=0 // pred_check_branch
    %50 = sbr.rel (0) target = $region53
  $region52: #{transformer_forward.7} parent=0 // pred_region
    _
  $region53: #{transformer_forward.7} parent=0 // pred_fallthru
    _
  // Predicated region
  $region54: #{transformer_forward.7} parent=0 // pred_check
    _
  $region55: #{transformer_forward.7} parent=0 // pred_check_branch
    %52 = sbr.rel (0) target = $region57
  $region56: #{transformer_forward.7} parent=0 // pred_region
    _
  $region57: #{transformer_forward.7} parent=0 // pred_fallthru
    _
  // Predicated region
  $region58: #{transformer_forward.7} parent=0 // pred_check
    _
  $region59: #{transformer_forward.7} parent=0 // pred_check_branch
    %54 = sbr.rel (0) target = $region61
  $region60: #{transformer_forward.7} parent=0 // pred_region
    _
  $region61: #{transformer_forward.7} parent=0 // pred_fallthru
    _
  // Predicated region
  $region62: #{transformer_forward.7} parent=0 // pred_check
    _
  $region63: #{transformer_forward.7} parent=0 // pred_check_branch
    %56 = sbr.rel (0) target = $region65
  $region64: #{transformer_forward.7} parent=0 // pred_region
    _
  $region65: #{transformer_forward.7} parent=0 // pred_fallthru
    _
  // Predicated region
  $region66: #{transformer_forward.7} parent=0 // pred_check
    _
  $region67: #{transformer_forward.7} parent=0 // pred_check_branch
    %58 = sbr.rel (0) target = $region69
  $region68: #{transformer_forward.7} parent=0 // pred_region
    _
  $region69: #{transformer_forward.7} parent=0 // pred_fallthru
    _
  // Predicated region
  $region70: #{transformer_forward.7} parent=0 // pred_check
    _
  $region71: #{transformer_forward.7} parent=0 // pred_check_branch
    %60 = sbr.rel (0) target = $region73
  $region72: #{transformer_forward.7} parent=0 // pred_region
    _
  $region73: #{transformer_forward.7} parent=0 // pred_fallthru
    _
  // Predicated region
  $region74: #{transformer_forward.7} parent=0 // pred_check
    _
  $region75: #{transformer_forward.7} parent=0 // pred_check_branch
    %62 = sbr.rel (0) target = $region77
  $region76: #{transformer_forward.7} parent=0 // pred_region
    _
  $region77: #{transformer_forward.7} parent=0 // pred_fallthru
    _
  // Predicated region
  $region78: #{transformer_forward.7} parent=0 // pred_check
    _
  $region79: #{transformer_forward.7} parent=0 // pred_check_branch
    %64 = sbr.rel (0) target = $region81
  $region80: #{transformer_forward.7} parent=0 // pred_region
    _
  $region81: #{transformer_forward.7} parent=0 // pred_fallthru
    _
  %v66 = vld [vmem:[%s0] sm:$0xf]
  %v67 = vld [vmem:[%s0 + $0x4] sm:$0xf]
  %v68 = vunpack.c.l.bf16 %v66
  %v69 = vunpack.c.l.bf16 %v67
  %v70 = vld [vmem:[%s3] sm:$0xf]
  %v71 = vld [vmem:[%s3 + $0x4] sm:$0xf]
  %v72 = vld [vmem:[%s3 + $0x8] sm:$0xf]
  %v73 = vld [vmem:[%s3 + $0xc] sm:$0xf]
  %v76 = vunpack.c.l.b16 %v66
  %v77 = vunpack.c.l.b16 %v67
  %v78 = vpack.c.b16 %v77, %v76
  %v83 = vunpack.c.l.b16 %v70
  %v84 = vunpack.c.l.b16 %v71
  %v85 = vunpack.c.l.b16 %v72
  %v86 = vunpack.c.l.b16 %v73
  %v87 = vpack.c.b16 %v84, %v83
  %v88 = vpack.c.b16 %v86, %v85
  %vm91 = vcmask 261120
  %v93 = vsel %vm91, %v78, 0
  %95 = vmatprep.subr.bf16.mxu0 0
  %96 = vmatpush1.bf16.msra.mxu0 0
  %97 = vmatprep.subr.bf16.mxu0 0
  %98 = vmatpush1.bf16.msra.mxu0 0
  %99 = vmatprep.subr.bf16.mxu0 0
  %100 = vmatpush1.bf16.msra.mxu0 0
  %101 = vmatprep.subr.bf16.mxu0 0
  %102 = vmatpush1.bf16.msra.mxu0 0
  %103 = vmatprep.subr.bf16.mxu0 0
  %104 = vmatpush1.bf16.msra.mxu0 0
  %105 = vmatprep.subr.bf16.mxu0 0
  %106 = vmatpush1.bf16.msra.mxu0 0
  %107 = vmatprep.subr.bf16.mxu0 0
  %108 = vmatpush1.bf16.msra.mxu0 %v88
  %109 = vmatprep.subr.bf16.mxu0 0
  %110 = vmatpush1.bf16.msra.mxu0 %v87
  %111 = vmatprep.subr.bf16.mxu0 0
  %112 = vmatpush2.bf16.msra.mxu0 0
  %113 = vmatprep.subr.bf16.mxu0 0
  %114 = vmatpush2.bf16.msra.mxu0 0
  %115 = vmatprep.subr.bf16.mxu0 0
  %116 = vmatpush2.bf16.msra.mxu0 0
  %117 = vmatprep.subr.bf16.mxu0 0
  %118 = vmatpush2.bf16.msra.mxu0 0
  %119 = vmatprep.subr.bf16.mxu0 0
  %120 = vmatpush2.bf16.msra.mxu0 0
  %121 = vmatprep.subr.bf16.mxu0 0
  %122 = vmatpush2.bf16.msra.mxu0 0
  %123 = vmatprep.subr.bf16.mxu0 0
  %124 = vmatpush2.bf16.msra.mxu0 0
  %125 = vmatprep.subr.bf16.mxu0 0
  %126 = vmatpush2.bf16.msra.mxu0 0
  %127 = vmatprep.mubr.bf16.mxu0 0
  %128 = vmatmul.mubr.bf16.gmra.mxu0 %v93
  %v129 = vpop.f32.mrf.mxu0
  %v130 = vadd.f32 0.0, %v129
  %v131 = vpop.f32.mrf.mxu0
  %v132 = vpop.f32.mrf.mxu0
  %v133 = vadd.f32 0.0, %v132
  %v134 = vpop.f32.mrf.mxu0
  %135 = vdwg.mxu0
  %v136 = vlaneseq
  %v137 = vshrl.u32 %v136, 7
  %v138 = vlaneseq
  %v139 = vand.u32 %v138, 127
  %vm140 = vcmp.ge.s32.totalorder %v137, %v139
  %v141 = vsel %vm140, 0.0, -1e+20
  %v142 = vld [vmem:[%s4] sm:$0xf]
  %v143 = vld [vmem:[%s4 + $0x4] sm:$0xf]
  %v144 = vld [vmem:[%s4 + $0x8] sm:$0xf]
  %v145 = vld [vmem:[%s4 + $0xc] sm:$0xf]
  %v146 = vld [vmem:[%s5] sm:$0x1]
  %v147 = vmul.f32 %v130, 0.17677669
  %v148 = vmul.f32 %v133, 0.17677669
  %151 = vrot.lane.b32.xlu0 %v147, 120
  %v152 = vpop.permute.xlu0 %151
  %153 = vrot.lane.b32.xlu0 %v148, 120
  %v154 = vpop.permute.xlu0 %153
  %157 = vrot.lane.b32.xlu0 %v147, 112
  %v158 = vpop.permute.xlu0 %157
  %159 = vrot.lane.b32.xlu0 %v148, 112
  %v160 = vpop.permute.xlu0 %159
  %163 = vrot.lane.b32.xlu0 %v147, 104
  %v164 = vpop.permute.xlu0 %163
  %165 = vrot.lane.b32.xlu0 %v148, 104
  %v166 = vpop.permute.xlu0 %165
  %v169 = vpack.c.bf16 %v147, %v147
  %v170 = vpack.c.bf16 %v148, %v148
  %v171 = vpack.c.bf16 %v152, %v152
  %v172 = vpack.c.bf16 %v154, %v154
  %v173 = vpack.c.bf16 %v158, %v158
  %v174 = vpack.c.bf16 %v160, %v160
  %v175 = vpack.c.bf16 %v164, %v164
  %v176 = vpack.c.bf16 %v166, %v166
  %179 = vrot.lane.b32.xlu0 %v130, 120
  %v180 = vpop.permute.xlu0 %179
  %181 = vrot.lane.b32.xlu0 %v133, 120
  %v182 = vpop.permute.xlu0 %181
  %185 = vrot.lane.b32.xlu0 %v130, 112
  %v186 = vpop.permute.xlu0 %185
  %187 = vrot.lane.b32.xlu0 %v133, 112
  %v188 = vpop.permute.xlu0 %187
  %191 = vrot.lane.b32.xlu0 %v130, 104
  %v192 = vpop.permute.xlu0 %191
  %193 = vrot.lane.b32.xlu0 %v133, 104
  %v194 = vpop.permute.xlu0 %193
  %v197 = vpack.c.bf16 %v130, %v130
  %v198 = vpack.c.bf16 %v133, %v133
  %v199 = vpack.c.bf16 %v180, %v180
  %v200 = vpack.c.bf16 %v182, %v182
  %v201 = vpack.c.bf16 %v186, %v186
  %v202 = vpack.c.bf16 %v188, %v188
  %v203 = vpack.c.bf16 %v192, %v192
  %v204 = vpack.c.bf16 %v194, %v194
  %206 = vrot.lane.b32.xlu0 %v197, 96
  %v207 = vpop.permute.xlu0 %206
  %vm208 = vcmask 64512
  %v210 = vsel %vm208, %v169, 0
  %v213 = vsel %vm208, %v207, 0
  %215 = vmatprep.subr.bf16.mxu0 0
  %216 = vmatpush1.bf16.xpose.msra.mxu0 0
  %217 = vmatprep.subr.bf16.mxu0 0
  %218 = vmatpush1.bf16.xpose.msra.mxu0 0
  %219 = vmatprep.subr.bf16.mxu0 0
  %220 = vmatpush1.bf16.xpose.msra.mxu0 0
  %221 = vmatprep.subr.bf16.mxu0 0
  %222 = vmatpush1.bf16.xpose.msra.mxu0 0
  %223 = vmatprep.subr.bf16.mxu0 0
  %224 = vmatpush1.bf16.xpose.msra.mxu0 0
  %225 = vmatprep.subr.bf16.mxu0 0
  %226 = vmatpush1.bf16.xpose.msra.mxu0 0
  %227 = vmatprep.subr.bf16.mxu0 0
  %228 = vmatpush1.bf16.xpose.msra.mxu0 0
  %229 = vmatprep.subr.bf16.mxu0 0
  %230 = vmatpush1.bf16.xpose.msra.mxu0 %v213
  %231 = vmatprep.subr.bf16.mxu0 0
  %232 = vmatpush2.bf16.xpose.msra.mxu0 0
  %233 = vmatprep.subr.bf16.mxu0 0
  %234 = vmatpush2.bf16.xpose.msra.mxu0 0
  %235 = vmatprep.subr.bf16.mxu0 0
  %236 = vmatpush2.bf16.xpose.msra.mxu0 0
  %237 = vmatprep.subr.bf16.mxu0 0
  %238 = vmatpush2.bf16.xpose.msra.mxu0 0
  %239 = vmatprep.subr.bf16.mxu0 0
  %240 = vmatpush2.bf16.xpose.msra.mxu0 0
  %241 = vmatprep.subr.bf16.mxu0 0
  %242 = vmatpush2.bf16.xpose.msra.mxu0 0
  %243 = vmatprep.subr.bf16.mxu0 0
  %244 = vmatpush2.bf16.xpose.msra.mxu0 0
  %245 = vmatprep.subr.bf16.mxu0 0
  %246 = vmatpush2.bf16.xpose.msra.mxu0 0
  %247 = vmatprep.mubr.bf16.mxu0 0
  %248 = vmatmul.mubr.bf16.gmra.mxu0 %v210
  %v249 = vpop.f32.mrf.mxu0
  %v250 = vadd.f32 %v141, %v249
  %v251 = vpop.f32.mrf.mxu0
  %v252 = vpop.f32.mrf.mxu0
  %v253 = vpop.f32.mrf.mxu0
  %254 = vdwg.mxu0
  %256 = vrot.lane.b32.xlu0 %v198, 96
  %v257 = vpop.permute.xlu0 %256
  %v259 = vsel %vm208, %v170, 0
  %v262 = vsel %vm208, %v257, 0
  %264 = vmatprep.subr.bf16.mxu0 0
  %265 = vmatpush1.bf16.xpose.msra.mxu0 0
  %266 = vmatprep.subr.bf16.mxu0 0
  %267 = vmatpush1.bf16.xpose.msra.mxu0 0
  %268 = vmatprep.subr.bf16.mxu0 0
  %269 = vmatpush1.bf16.xpose.msra.mxu0 0
  %270 = vmatprep.subr.bf16.mxu0 0
  %271 = vmatpush1.bf16.xpose.msra.mxu0 0
  %272 = vmatprep.subr.bf16.mxu0 0
  %273 = vmatpush1.bf16.xpose.msra.mxu0 0
  %274 = vmatprep.subr.bf16.mxu0 0
  %275 = vmatpush1.bf16.xpose.msra.mxu0 0
  %276 = vmatprep.subr.bf16.mxu0 0
  %277 = vmatpush1.bf16.xpose.msra.mxu0 0
  %278 = vmatprep.subr.bf16.mxu0 0
  %279 = vmatpush1.bf16.xpose.msra.mxu0 %v262
  %280 = vmatprep.subr.bf16.mxu0 0
  %281 = vmatpush2.bf16.xpose.msra.mxu0 0
  %282 = vmatprep.subr.bf16.mxu0 0
  %283 = vmatpush2.bf16.xpose.msra.mxu0 0
  %284 = vmatprep.subr.bf16.mxu0 0
  %285 = vmatpush2.bf16.xpose.msra.mxu0 0
  %286 = vmatprep.subr.bf16.mxu0 0
  %287 = vmatpush2.bf16.xpose.msra.mxu0 0
  %288 = vmatprep.subr.bf16.mxu0 0
  %289 = vmatpush2.bf16.xpose.msra.mxu0 0
  %290 = vmatprep.subr.bf16.mxu0 0
  %291 = vmatpush2.bf16.xpose.msra.mxu0 0
  %292 = vmatprep.subr.bf16.mxu0 0
  %293 = vmatpush2.bf16.xpose.msra.mxu0 0
  %294 = vmatprep.subr.bf16.mxu0 0
  %295 = vmatpush2.bf16.xpose.msra.mxu0 0
  %296 = vmatprep.mubr.bf16.mxu0 0
  %297 = vmatmul.mubr.bf16.gmra.mxu0 %v259
  %v298 = vpop.f32.mrf.mxu0
  %v299 = vadd.f32 %v141, %v298
  %v300 = vpop.f32.mrf.mxu0
  %v301 = vpop.f32.mrf.mxu0
  %v302 = vpop.f32.mrf.mxu0
  %303 = vdwg.mxu0
  %305 = vrot.lane.b32.xlu0 %v199, 96
  %v306 = vpop.permute.xlu0 %305
  %v308 = vsel %vm208, %v171, 0
  %v311 = vsel %vm208, %v306, 0
  %313 = vmatprep.subr.bf16.mxu0 0
  %314 = vmatpush1.bf16.xpose.msra.mxu0 0
  %315 = vmatprep.subr.bf16.mxu0 0
  %316 = vmatpush1.bf16.xpose.msra.mxu0 0
  %317 = vmatprep.subr.bf16.mxu0 0
  %318 = vmatpush1.bf16.xpose.msra.mxu0 0
  %319 = vmatprep.subr.bf16.mxu0 0
  %320 = vmatpush1.bf16.xpose.msra.mxu0 0
  %321 = vmatprep.subr.bf16.mxu0 0
  %322 = vmatpush1.bf16.xpose.msra.mxu0 0
  %323 = vmatprep.subr.bf16.mxu0 0
  %324 = vmatpush1.bf16.xpose.msra.mxu0 0
  %325 = vmatprep.subr.bf16.mxu0 0
  %326 = vmatpush1.bf16.xpose.msra.mxu0 0
  %327 = vmatprep.subr.bf16.mxu0 0
  %328 = vmatpush1.bf16.xpose.msra.mxu0 %v311
  %329 = vmatprep.subr.bf16.mxu0 0
  %330 = vmatpush2.bf16.xpose.msra.mxu0 0
  %331 = vmatprep.subr.bf16.mxu0 0
  %332 = vmatpush2.bf16.xpose.msra.mxu0 0
  %333 = vmatprep.subr.bf16.mxu0 0
  %334 = vmatpush2.bf16.xpose.msra.mxu0 0
  %335 = vmatprep.subr.bf16.mxu0 0
  %336 = vmatpush2.bf16.xpose.msra.mxu0 0
  %337 = vmatprep.subr.bf16.mxu0 0
  %338 = vmatpush2.bf16.xpose.msra.mxu0 0
  %339 = vmatprep.subr.bf16.mxu0 0
  %340 = vmatpush2.bf16.xpose.msra.mxu0 0
  %341 = vmatprep.subr.bf16.mxu0 0
  %342 = vmatpush2.bf16.xpose.msra.mxu0 0
  %343 = vmatprep.subr.bf16.mxu0 0
  %344 = vmatpush2.bf16.xpose.msra.mxu0 0
  %345 = vmatprep.mubr.bf16.mxu0 0
  %346 = vmatmul.mubr.bf16.gmra.mxu0 %v308
  %v347 = vpop.f32.mrf.mxu0
  %v348 = vadd.f32 %v141, %v347
  %v349 = vpop.f32.mrf.mxu0
  %v350 = vpop.f32.mrf.mxu0
  %v351 = vpop.f32.mrf.mxu0
  %352 = vdwg.mxu0
  %354 = vrot.lane.b32.xlu0 %v200, 96
  %v355 = vpop.permute.xlu0 %354
  %v357 = vsel %vm208, %v172, 0
  %v360 = vsel %vm208, %v355, 0
  %362 = vmatprep.subr.bf16.mxu0 0
  %363 = vmatpush1.bf16.xpose.msra.mxu0 0
  %364 = vmatprep.subr.bf16.mxu0 0
  %365 = vmatpush1.bf16.xpose.msra.mxu0 0
  %366 = vmatprep.subr.bf16.mxu0 0
  %367 = vmatpush1.bf16.xpose.msra.mxu0 0
  %368 = vmatprep.subr.bf16.mxu0 0
  %369 = vmatpush1.bf16.xpose.msra.mxu0 0
  %370 = vmatprep.subr.bf16.mxu0 0
  %371 = vmatpush1.bf16.xpose.msra.mxu0 0
  %372 = vmatprep.subr.bf16.mxu0 0
  %373 = vmatpush1.bf16.xpose.msra.mxu0 0
  %374 = vmatprep.subr.bf16.mxu0 0
  %375 = vmatpush1.bf16.xpose.msra.mxu0 0
  %376 = vmatprep.subr.bf16.mxu0 0
  %377 = vmatpush1.bf16.xpose.msra.mxu0 %v360
  %378 = vmatprep.subr.bf16.mxu0 0
  %379 = vmatpush2.bf16.xpose.msra.mxu0 0
  %380 = vmatprep.subr.bf16.mxu0 0
  %381 = vmatpush2.bf16.xpose.msra.mxu0 0
  %382 = vmatprep.subr.bf16.mxu0 0
  %383 = vmatpush2.bf16.xpose.msra.mxu0 0
  %384 = vmatprep.subr.bf16.mxu0 0
  %385 = vmatpush2.bf16.xpose.msra.mxu0 0
  %386 = vmatprep.subr.bf16.mxu0 0
  %387 = vmatpush2.bf16.xpose.msra.mxu0 0
  %388 = vmatprep.subr.bf16.mxu0 0
  %389 = vmatpush2.bf16.xpose.msra.mxu0 0
  %390 = vmatprep.subr.bf16.mxu0 0
  %391 = vmatpush2.bf16.xpose.msra.mxu0 0
  %392 = vmatprep.subr.bf16.mxu0 0
  %393 = vmatpush2.bf16.xpose.msra.mxu0 0
  %394 = vmatprep.mubr.bf16.mxu0 0
  %395 = vmatmul.mubr.bf16.gmra.mxu0 %v357
  %v396 = vpop.f32.mrf.mxu0
  %v397 = vadd.f32 %v141, %v396
  %v398 = vpop.f32.mrf.mxu0
  %v399 = vpop.f32.mrf.mxu0
  %v400 = vpop.f32.mrf.mxu0
  %401 = vdwg.mxu0
  %403 = vrot.lane.b32.xlu0 %v201, 96
  %v404 = vpop.permute.xlu0 %403
  %v406 = vsel %vm208, %v173, 0
  %v409 = vsel %vm208, %v404, 0
  %411 = vmatprep.subr.bf16.mxu0 0
  %412 = vmatpush1.bf16.xpose.msra.mxu0 0
  %413 = vmatprep.subr.bf16.mxu0 0
  %414 = vmatpush1.bf16.xpose.msra.mxu0 0
  %415 = vmatprep.subr.bf16.mxu0 0
  %416 = vmatpush1.bf16.xpose.msra.mxu0 0
  %417 = vmatprep.subr.bf16.mxu0 0
  %418 = vmatpush1.bf16.xpose.msra.mxu0 0
  %419 = vmatprep.subr.bf16.mxu0 0
  %420 = vmatpush1.bf16.xpose.msra.mxu0 0
  %421 = vmatprep.subr.bf16.mxu0 0
  %422 = vmatpush1.bf16.xpose.msra.mxu0 0
  %423 = vmatprep.subr.bf16.mxu0 0
  %424 = vmatpush1.bf16.xpose.msra.mxu0 0
  %425 = vmatprep.subr.bf16.mxu0 0
  %426 = vmatpush1.bf16.xpose.msra.mxu0 %v409
  %427 = vmatprep.subr.bf16.mxu0 0
  %428 = vmatpush2.bf16.xpose.msra.mxu0 0
  %429 = vmatprep.subr.bf16.mxu0 0
  %430 = vmatpush2.bf16.xpose.msra.mxu0 0
  %431 = vmatprep.subr.bf16.mxu0 0
  %432 = vmatpush2.bf16.xpose.msra.mxu0 0
  %433 = vmatprep.subr.bf16.mxu0 0
  %434 = vmatpush2.bf16.xpose.msra.mxu0 0
  %435 = vmatprep.subr.bf16.mxu0 0
  %436 = vmatpush2.bf16.xpose.msra.mxu0 0
  %437 = vmatprep.subr.bf16.mxu0 0
  %438 = vmatpush2.bf16.xpose.msra.mxu0 0
  %439 = vmatprep.subr.bf16.mxu0 0
  %440 = vmatpush2.bf16.xpose.msra.mxu0 0
  %441 = vmatprep.subr.bf16.mxu0 0
  %442 = vmatpush2.bf16.xpose.msra.mxu0 0
  %443 = vmatprep.mubr.bf16.mxu0 0
  %444 = vmatmul.mubr.bf16.gmra.mxu0 %v406
  %v445 = vpop.f32.mrf.mxu0
  %v446 = vadd.f32 %v141, %v445
  %v447 = vpop.f32.mrf.mxu0
  %v448 = vpop.f32.mrf.mxu0
  %v449 = vpop.f32.mrf.mxu0
  %450 = vdwg.mxu0
  %452 = vrot.lane.b32.xlu0 %v202, 96
  %v453 = vpop.permute.xlu0 %452
  %v455 = vsel %vm208, %v174, 0
  %v458 = vsel %vm208, %v453, 0
  %460 = vmatprep.subr.bf16.mxu0 0
  %461 = vmatpush1.bf16.xpose.msra.mxu0 0
  %462 = vmatprep.subr.bf16.mxu0 0
  %463 = vmatpush1.bf16.xpose.msra.mxu0 0
  %464 = vmatprep.subr.bf16.mxu0 0
  %465 = vmatpush1.bf16.xpose.msra.mxu0 0
  %466 = vmatprep.subr.bf16.mxu0 0
  %467 = vmatpush1.bf16.xpose.msra.mxu0 0
  %468 = vmatprep.subr.bf16.mxu0 0
  %469 = vmatpush1.bf16.xpose.msra.mxu0 0
  %470 = vmatprep.subr.bf16.mxu0 0
  %471 = vmatpush1.bf16.xpose.msra.mxu0 0
  %472 = vmatprep.subr.bf16.mxu0 0
  %473 = vmatpush1.bf16.xpose.msra.mxu0 0
  %474 = vmatprep.subr.bf16.mxu0 0
  %475 = vmatpush1.bf16.xpose.msra.mxu0 %v458
  %476 = vmatprep.subr.bf16.mxu0 0
  %477 = vmatpush2.bf16.xpose.msra.mxu0 0
  %478 = vmatprep.subr.bf16.mxu0 0
  %479 = vmatpush2.bf16.xpose.msra.mxu0 0
  %480 = vmatprep.subr.bf16.mxu0 0
  %481 = vmatpush2.bf16.xpose.msra.mxu0 0
  %482 = vmatprep.subr.bf16.mxu0 0
  %483 = vmatpush2.bf16.xpose.msra.mxu0 0
  %484 = vmatprep.subr.bf16.mxu0 0
  %485 = vmatpush2.bf16.xpose.msra.mxu0 0
  %486 = vmatprep.subr.bf16.mxu0 0
  %487 = vmatpush2.bf16.xpose.msra.mxu0 0
  %488 = vmatprep.subr.bf16.mxu0 0
  %489 = vmatpush2.bf16.xpose.msra.mxu0 0
  %490 = vmatprep.subr.bf16.mxu0 0
  %491 = vmatpush2.bf16.xpose.msra.mxu0 0
  %492 = vmatprep.mubr.bf16.mxu0 0
  %493 = vmatmul.mubr.bf16.gmra.mxu0 %v455
  %v494 = vpop.f32.mrf.mxu0
  %v495 = vadd.f32 %v141, %v494
  %v496 = vpop.f32.mrf.mxu0
  %v497 = vpop.f32.mrf.mxu0
  %v498 = vpop.f32.mrf.mxu0
  %499 = vdwg.mxu0
  %501 = vrot.lane.b32.xlu0 %v203, 96
  %v502 = vpop.permute.xlu0 %501
  %v504 = vsel %vm208, %v175, 0
  %v507 = vsel %vm208, %v502, 0
  %509 = vmatprep.subr.bf16.mxu0 0
  %510 = vmatpush1.bf16.xpose.msra.mxu0 0
  %511 = vmatprep.subr.bf16.mxu0 0
  %512 = vmatpush1.bf16.xpose.msra.mxu0 0
  %513 = vmatprep.subr.bf16.mxu0 0
  %514 = vmatpush1.bf16.xpose.msra.mxu0 0
  %515 = vmatprep.subr.bf16.mxu0 0
  %516 = vmatpush1.bf16.xpose.msra.mxu0 0
  %517 = vmatprep.subr.bf16.mxu0 0
  %518 = vmatpush1.bf16.xpose.msra.mxu0 0
  %519 = vmatprep.subr.bf16.mxu0 0
  %520 = vmatpush1.bf16.xpose.msra.mxu0 0
  %521 = vmatprep.subr.bf16.mxu0 0
  %522 = vmatpush1.bf16.xpose.msra.mxu0 0
  %523 = vmatprep.subr.bf16.mxu0 0
  %524 = vmatpush1.bf16.xpose.msra.mxu0 %v507
  %525 = vmatprep.subr.bf16.mxu0 0
  %526 = vmatpush2.bf16.xpose.msra.mxu0 0
  %527 = vmatprep.subr.bf16.mxu0 0
  %528 = vmatpush2.bf16.xpose.msra.mxu0 0
  %529 = vmatprep.subr.bf16.mxu0 0
  %530 = vmatpush2.bf16.xpose.msra.mxu0 0
  %531 = vmatprep.subr.bf16.mxu0 0
  %532 = vmatpush2.bf16.xpose.msra.mxu0 0
  %533 = vmatprep.subr.bf16.mxu0 0
  %534 = vmatpush2.bf16.xpose.msra.mxu0 0
  %535 = vmatprep.subr.bf16.mxu0 0
  %536 = vmatpush2.bf16.xpose.msra.mxu0 0
  %537 = vmatprep.subr.bf16.mxu0 0
  %538 = vmatpush2.bf16.xpose.msra.mxu0 0
  %539 = vmatprep.subr.bf16.mxu0 0
  %540 = vmatpush2.bf16.xpose.msra.mxu0 0
  %541 = vmatprep.mubr.bf16.mxu0 0
  %542 = vmatmul.mubr.bf16.gmra.mxu0 %v504
  %v543 = vpop.f32.mrf.mxu0
  %v544 = vadd.f32 %v141, %v543
  %v545 = vpop.f32.mrf.mxu0
  %v546 = vpop.f32.mrf.mxu0
  %v547 = vpop.f32.mrf.mxu0
  %548 = vdwg.mxu0
  %550 = vrot.lane.b32.xlu0 %v204, 96
  %v551 = vpop.permute.xlu0 %550
  %v553 = vsel %vm208, %v176, 0
  %v556 = vsel %vm208, %v551, 0
  %558 = vmatprep.subr.bf16.mxu0 0
  %559 = vmatpush1.bf16.xpose.msra.mxu0 0
  %560 = vmatprep.subr.bf16.mxu0 0
  %561 = vmatpush1.bf16.xpose.msra.mxu0 0
  %562 = vmatprep.subr.bf16.mxu0 0
  %563 = vmatpush1.bf16.xpose.msra.mxu0 0
  %564 = vmatprep.subr.bf16.mxu0 0
  %565 = vmatpush1.bf16.xpose.msra.mxu0 0
  %566 = vmatprep.subr.bf16.mxu0 0
  %567 = vmatpush1.bf16.xpose.msra.mxu0 0
  %568 = vmatprep.subr.bf16.mxu0 0
  %569 = vmatpush1.bf16.xpose.msra.mxu0 0
  %570 = vmatprep.subr.bf16.mxu0 0
  %571 = vmatpush1.bf16.xpose.msra.mxu0 0
  %572 = vmatprep.subr.bf16.mxu0 0
  %573 = vmatpush1.bf16.xpose.msra.mxu0 %v556
  %574 = vmatprep.subr.bf16.mxu0 0
  %575 = vmatpush2.bf16.xpose.msra.mxu0 0
  %576 = vmatprep.subr.bf16.mxu0 0
  %577 = vmatpush2.bf16.xpose.msra.mxu0 0
  %578 = vmatprep.subr.bf16.mxu0 0
  %579 = vmatpush2.bf16.xpose.msra.mxu0 0
  %580 = vmatprep.subr.bf16.mxu0 0
  %581 = vmatpush2.bf16.xpose.msra.mxu0 0
  %582 = vmatprep.subr.bf16.mxu0 0
  %583 = vmatpush2.bf16.xpose.msra.mxu0 0
  %584 = vmatprep.subr.bf16.mxu0 0
  %585 = vmatpush2.bf16.xpose.msra.mxu0 0
  %586 = vmatprep.subr.bf16.mxu0 0
  %587 = vmatpush2.bf16.xpose.msra.mxu0 0
  %588 = vmatprep.subr.bf16.mxu0 0
  %589 = vmatpush2.bf16.xpose.msra.mxu0 0
  %590 = vmatprep.mubr.bf16.mxu0 0
  %591 = vmatmul.mubr.bf16.gmra.mxu0 %v553
  %v592 = vpop.f32.mrf.mxu0
  %v593 = vadd.f32 %v141, %v592
  %v594 = vpop.f32.mrf.mxu0
  %v595 = vpop.f32.mrf.mxu0
  %v596 = vpop.f32.mrf.mxu0
  %597 = vdwg.mxu0
  %v598 = vsel %vm208, %v250, -inf
  %599 = vmax.xlane.f32.xlu0 %v598
  %v600 = vpop.xlane.xlu0 %599
  %v601 = vsel %vm208, %v299, -inf
  %602 = vmax.xlane.f32.xlu0 %v601
  %v603 = vpop.xlane.xlu0 %602
  %v604 = vsel %vm208, %v348, -inf
  %605 = vmax.xlane.f32.xlu0 %v604
  %v606 = vpop.xlane.xlu0 %605
  %v607 = vsel %vm208, %v397, -inf
  %608 = vmax.xlane.f32.xlu0 %v607
  %v609 = vpop.xlane.xlu0 %608
  %v610 = vsel %vm208, %v446, -inf
  %611 = vmax.xlane.f32.xlu0 %v610
  %v612 = vpop.xlane.xlu0 %611
  %v613 = vsel %vm208, %v495, -inf
  %614 = vmax.xlane.f32.xlu0 %v613
  %v615 = vpop.xlane.xlu0 %614
  %v616 = vsel %vm208, %v544, -inf
  %617 = vmax.xlane.f32.xlu0 %v616
  %v618 = vpop.xlane.xlu0 %617
  %v619 = vsel %vm208, %v593, -inf
  %620 = vmax.xlane.f32.xlu0 %v619
  %v621 = vpop.xlane.xlu0 %620
  %v622 = vsub.f32 %v250, %v600
  %v623 = vsub.f32 %v299, %v603
  %v624 = vsub.f32 %v348, %v606
  %v625 = vsub.f32 %v397, %v609
  %v626 = vsub.f32 %v446, %v612
  %v627 = vsub.f32 %v495, %v615
  %v628 = vsub.f32 %v544, %v618
  %v629 = vsub.f32 %v593, %v621
  %v630 = vmul.f32 %v622, 1.442695
  %v631 = vpow.pop %v630
  %v632 = vmul.f32 %v623, 1.442695
  %v633 = vpow.pop %v632
  %v634 = vmul.f32 %v624, 1.442695
  %v635 = vpow.pop %v634
  %v636 = vmul.f32 %v625, 1.442695
  %v637 = vpow.pop %v636
  %v638 = vmul.f32 %v626, 1.442695
  %v639 = vpow.pop %v638
  %v640 = vmul.f32 %v627, 1.442695
  %v641 = vpow.pop %v640
  %v642 = vmul.f32 %v628, 1.442695
  %v643 = vpow.pop %v642
  %v644 = vmul.f32 %v629, 1.442695
  %v645 = vpow.pop %v644
  %v646 = vsel %vm208, %v631, 0.0
  %647 = vadd.xlane.f32.xlu0 %v646
  %v648 = vpop.xlane.xlu0 %647
  %v649 = vsel %vm208, %v633, 0.0
  %650 = vadd.xlane.f32.xlu0 %v649
  %v651 = vpop.xlane.xlu0 %650
  %v652 = vsel %vm208, %v635, 0.0
  %653 = vadd.xlane.f32.xlu0 %v652
  %v654 = vpop.xlane.xlu0 %653
  %v655 = vsel %vm208, %v637, 0.0
  %656 = vadd.xlane.f32.xlu0 %v655
  %v657 = vpop.xlane.xlu0 %656
  %v658 = vsel %vm208, %v639, 0.0
  %659 = vadd.xlane.f32.xlu0 %v658
  %v660 = vpop.xlane.xlu0 %659
  %v661 = vsel %vm208, %v641, 0.0
  %662 = vadd.xlane.f32.xlu0 %v661
  %v663 = vpop.xlane.xlu0 %662
  %v664 = vsel %vm208, %v643, 0.0
  %665 = vadd.xlane.f32.xlu0 %v664
  %v666 = vpop.xlane.xlu0 %665
  %v667 = vsel %vm208, %v645, 0.0
  %668 = vadd.xlane.f32.xlu0 %v667
  %v669 = vpop.xlane.xlu0 %668
  %v670 = vrcp.pop %v648
  %v671 = vrcp.pop %v651
  %v672 = vrcp.pop %v654
  %v673 = vrcp.pop %v657
  %v674 = vrcp.pop %v660
  %v675 = vrcp.pop %v663
  %v676 = vrcp.pop %v666
  %v677 = vrcp.pop %v669
  %v678 = vmul.f32 %v631, %v670
  %v679 = vmul.f32 %v633, %v671
  %v680 = vmul.f32 %v635, %v672
  %v681 = vmul.f32 %v637, %v673
  %v682 = vmul.f32 %v639, %v674
  %v683 = vmul.f32 %v641, %v675
  %v684 = vmul.f32 %v643, %v676
  %v685 = vmul.f32 %v645, %v677
  %v686 = vpack.c.bf16 %v678, %v678
  %v687 = vpack.c.bf16 %v679, %v679
  %v688 = vpack.c.bf16 %v680, %v680
  %v689 = vpack.c.bf16 %v681, %v681
  %v690 = vpack.c.bf16 %v682, %v682
  %v691 = vpack.c.bf16 %v683, %v683
  %v692 = vpack.c.bf16 %v684, %v684
  %v693 = vpack.c.bf16 %v685, %v685
  %694 = vrot.lane.b32.xlu0 %v197, 64
  %v695 = vpop.permute.xlu0 %694
  %v697 = vsel %vm208, %v686, 0
  %vm699 = vcmask 1043456
  %v701 = vsel %vm699, %v695, 0
  %703 = vmatprep.subr.bf16.mxu0 0
  %704 = vmatpush1.bf16.msra.mxu0 0
  %705 = vmatprep.subr.bf16.mxu0 0
  %706 = vmatpush1.bf16.msra.mxu0 0
  %707 = vmatprep.subr.bf16.mxu0 0
  %708 = vmatpush1.bf16.msra.mxu0 0
  %709 = vmatprep.subr.bf16.mxu0 0
  %710 = vmatpush1.bf16.msra.mxu0 0
  %711 = vmatprep.subr.bf16.mxu0 0
  %712 = vmatpush1.bf16.msra.mxu0 0
  %713 = vmatprep.subr.bf16.mxu0 0
  %714 = vmatpush1.bf16.msra.mxu0 0
  %715 = vmatprep.subr.bf16.mxu0 0
  %716 = vmatpush1.bf16.msra.mxu0 0
  %717 = vmatprep.subr.bf16.mxu0 0
  %718 = vmatpush1.bf16.msra.mxu0 %v701
  %719 = vmatprep.subr.bf16.mxu0 0
  %720 = vmatpush2.bf16.msra.mxu0 0
  %721 = vmatprep.subr.bf16.mxu0 0
  %722 = vmatpush2.bf16.msra.mxu0 0
  %723 = vmatprep.subr.bf16.mxu0 0
  %724 = vmatpush2.bf16.msra.mxu0 0
  %725 = vmatprep.subr.bf16.mxu0 0
  %726 = vmatpush2.bf16.msra.mxu0 0
  %727 = vmatprep.subr.bf16.mxu0 0
  %728 = vmatpush2.bf16.msra.mxu0 0
  %729 = vmatprep.subr.bf16.mxu0 0
  %730 = vmatpush2.bf16.msra.mxu0 0
  %731 = vmatprep.subr.bf16.mxu0 0
  %732 = vmatpush2.bf16.msra.mxu0 0
  %733 = vmatprep.subr.bf16.mxu0 0
  %734 = vmatpush2.bf16.msra.mxu0 0
  %735 = vmatprep.mubr.bf16.mxu0 0
  %736 = vmatmul.mubr.bf16.gmra.mxu0 %v697
  %v737 = vpop.f32.mrf.mxu0
  %v738 = vadd.f32 0.0, %v737
  %v739 = vpop.f32.mrf.mxu0
  %v740 = vpop.f32.mrf.mxu0
  %v741 = vpop.f32.mrf.mxu0
  %742 = vdwg.mxu0
  %743 = vrot.lane.b32.xlu0 %v198, 64
  %v744 = vpop.permute.xlu0 %743
  %v746 = vsel %vm208, %v687, 0
  %v749 = vsel %vm699, %v744, 0
  %751 = vmatprep.subr.bf16.mxu0 0
  %752 = vmatpush1.bf16.msra.mxu0 0
  %753 = vmatprep.subr.bf16.mxu0 0
  %754 = vmatpush1.bf16.msra.mxu0 0
  %755 = vmatprep.subr.bf16.mxu0 0
  %756 = vmatpush1.bf16.msra.mxu0 0
  %757 = vmatprep.subr.bf16.mxu0 0
  %758 = vmatpush1.bf16.msra.mxu0 0
  %759 = vmatprep.subr.bf16.mxu0 0
  %760 = vmatpush1.bf16.msra.mxu0 0
  %761 = vmatprep.subr.bf16.mxu0 0
  %762 = vmatpush1.bf16.msra.mxu0 0
  %763 = vmatprep.subr.bf16.mxu0 0
  %764 = vmatpush1.bf16.msra.mxu0 0
  %765 = vmatprep.subr.bf16.mxu0 0
  %766 = vmatpush1.bf16.msra.mxu0 %v749
  %767 = vmatprep.subr.bf16.mxu0 0
  %768 = vmatpush2.bf16.msra.mxu0 0
  %769 = vmatprep.subr.bf16.mxu0 0
  %770 = vmatpush2.bf16.msra.mxu0 0
  %771 = vmatprep.subr.bf16.mxu0 0
  %772 = vmatpush2.bf16.msra.mxu0 0
  %773 = vmatprep.subr.bf16.mxu0 0
  %774 = vmatpush2.bf16.msra.mxu0 0
  %775 = vmatprep.subr.bf16.mxu0 0
  %776 = vmatpush2.bf16.msra.mxu0 0
  %777 = vmatprep.subr.bf16.mxu0 0
  %778 = vmatpush2.bf16.msra.mxu0 0
  %779 = vmatprep.subr.bf16.mxu0 0
  %780 = vmatpush2.bf16.msra.mxu0 0
  %781 = vmatprep.subr.bf16.mxu0 0
  %782 = vmatpush2.bf16.msra.mxu0 0
  %783 = vmatprep.mubr.bf16.mxu0 0
  %784 = vmatmul.mubr.bf16.gmra.mxu0 %v746
  %v785 = vpop.f32.mrf.mxu0
  %v786 = vadd.f32 0.0, %v785
  %v787 = vpop.f32.mrf.mxu0
  %v788 = vpop.f32.mrf.mxu0
  %v789 = vpop.f32.mrf.mxu0
  %790 = vdwg.mxu0
  %791 = vrot.lane.b32.xlu0 %v199, 64
  %v792 = vpop.permute.xlu0 %791
  %v794 = vsel %vm208, %v688, 0
  %v797 = vsel %vm699, %v792, 0
  %799 = vmatprep.subr.bf16.mxu0 0
  %800 = vmatpush1.bf16.msra.mxu0 0
  %801 = vmatprep.subr.bf16.mxu0 0
  %802 = vmatpush1.bf16.msra.mxu0 0
  %803 = vmatprep.subr.bf16.mxu0 0
  %804 = vmatpush1.bf16.msra.mxu0 0
  %805 = vmatprep.subr.bf16.mxu0 0
  %806 = vmatpush1.bf16.msra.mxu0 0
  %807 = vmatprep.subr.bf16.mxu0 0
  %808 = vmatpush1.bf16.msra.mxu0 0
  %809 = vmatprep.subr.bf16.mxu0 0
  %810 = vmatpush1.bf16.msra.mxu0 0
  %811 = vmatprep.subr.bf16.mxu0 0
  %812 = vmatpush1.bf16.msra.mxu0 0
  %813 = vmatprep.subr.bf16.mxu0 0
  %814 = vmatpush1.bf16.msra.mxu0 %v797
  %815 = vmatprep.subr.bf16.mxu0 0
  %816 = vmatpush2.bf16.msra.mxu0 0
  %817 = vmatprep.subr.bf16.mxu0 0
  %818 = vmatpush2.bf16.msra.mxu0 0
  %819 = vmatprep.subr.bf16.mxu0 0
  %820 = vmatpush2.bf16.msra.mxu0 0
  %821 = vmatprep.subr.bf16.mxu0 0
  %822 = vmatpush2.bf16.msra.mxu0 0
  %823 = vmatprep.subr.bf16.mxu0 0
  %824 = vmatpush2.bf16.msra.mxu0 0
  %825 = vmatprep.subr.bf16.mxu0 0
  %826 = vmatpush2.bf16.msra.mxu0 0
  %827 = vmatprep.subr.bf16.mxu0 0
  %828 = vmatpush2.bf16.msra.mxu0 0
  %829 = vmatprep.subr.bf16.mxu0 0
  %830 = vmatpush2.bf16.msra.mxu0 0
  %831 = vmatprep.mubr.bf16.mxu0 0
  %832 = vmatmul.mubr.bf16.gmra.mxu0 %v794
  %v833 = vpop.f32.mrf.mxu0
  %v834 = vadd.f32 0.0, %v833
  %v835 = vpop.f32.mrf.mxu0
  %v836 = vpop.f32.mrf.mxu0
  %v837 = vpop.f32.mrf.mxu0
  %838 = vdwg.mxu0
  %839 = vrot.lane.b32.xlu0 %v200, 64
  %v840 = vpop.permute.xlu0 %839
  %v842 = vsel %vm208, %v689, 0
  %v845 = vsel %vm699, %v840, 0
  %847 = vmatprep.subr.bf16.mxu0 0
  %848 = vmatpush1.bf16.msra.mxu0 0
  %849 = vmatprep.subr.bf16.mxu0 0
  %850 = vmatpush1.bf16.msra.mxu0 0
  %851 = vmatprep.subr.bf16.mxu0 0
  %852 = vmatpush1.bf16.msra.mxu0 0
  %853 = vmatprep.subr.bf16.mxu0 0
  %854 = vmatpush1.bf16.msra.mxu0 0
  %855 = vmatprep.subr.bf16.mxu0 0
  %856 = vmatpush1.bf16.msra.mxu0 0
  %857 = vmatprep.subr.bf16.mxu0 0
  %858 = vmatpush1.bf16.msra.mxu0 0
  %859 = vmatprep.subr.bf16.mxu0 0
  %860 = vmatpush1.bf16.msra.mxu0 0
  %861 = vmatprep.subr.bf16.mxu0 0
  %862 = vmatpush1.bf16.msra.mxu0 %v845
  %863 = vmatprep.subr.bf16.mxu0 0
  %864 = vmatpush2.bf16.msra.mxu0 0
  %865 = vmatprep.subr.bf16.mxu0 0
  %866 = vmatpush2.bf16.msra.mxu0 0
  %867 = vmatprep.subr.bf16.mxu0 0
  %868 = vmatpush2.bf16.msra.mxu0 0
  %869 = vmatprep.subr.bf16.mxu0 0
  %870 = vmatpush2.bf16.msra.mxu0 0
  %871 = vmatprep.subr.bf16.mxu0 0
  %872 = vmatpush2.bf16.msra.mxu0 0
  %873 = vmatprep.subr.bf16.mxu0 0
  %874 = vmatpush2.bf16.msra.mxu0 0
  %875 = vmatprep.subr.bf16.mxu0 0
  %876 = vmatpush2.bf16.msra.mxu0 0
  %877 = vmatprep.subr.bf16.mxu0 0
  %878 = vmatpush2.bf16.msra.mxu0 0
  %879 = vmatprep.mubr.bf16.mxu0 0
  %880 = vmatmul.mubr.bf16.gmra.mxu0 %v842
  %v881 = vpop.f32.mrf.mxu0
  %v882 = vadd.f32 0.0, %v881
  %v883 = vpop.f32.mrf.mxu0
  %v884 = vpop.f32.mrf.mxu0
  %v885 = vpop.f32.mrf.mxu0
  %886 = vdwg.mxu0
  %887 = vrot.lane.b32.xlu0 %v201, 64
  %v888 = vpop.permute.xlu0 %887
  %v890 = vsel %vm208, %v690, 0
  %v893 = vsel %vm699, %v888, 0
  %895 = vmatprep.subr.bf16.mxu0 0
  %896 = vmatpush1.bf16.msra.mxu0 0
  %897 = vmatprep.subr.bf16.mxu0 0
  %898 = vmatpush1.bf16.msra.mxu0 0
  %899 = vmatprep.subr.bf16.mxu0 0
  %900 = vmatpush1.bf16.msra.mxu0 0
  %901 = vmatprep.subr.bf16.mxu0 0
  %902 = vmatpush1.bf16.msra.mxu0 0
  %903 = vmatprep.subr.bf16.mxu0 0
  %904 = vmatpush1.bf16.msra.mxu0 0
  %905 = vmatprep.subr.bf16.mxu0 0
  %906 = vmatpush1.bf16.msra.mxu0 0
  %907 = vmatprep.subr.bf16.mxu0 0
  %908 = vmatpush1.bf16.msra.mxu0 0
  %909 = vmatprep.subr.bf16.mxu0 0
  %910 = vmatpush1.bf16.msra.mxu0 %v893
  %911 = vmatprep.subr.bf16.mxu0 0
  %912 = vmatpush2.bf16.msra.mxu0 0
  %913 = vmatprep.subr.bf16.mxu0 0
  %914 = vmatpush2.bf16.msra.mxu0 0
  %915 = vmatprep.subr.bf16.mxu0 0
  %916 = vmatpush2.bf16.msra.mxu0 0
  %917 = vmatprep.subr.bf16.mxu0 0
  %918 = vmatpush2.bf16.msra.mxu0 0
  %919 = vmatprep.subr.bf16.mxu0 0
  %920 = vmatpush2.bf16.msra.mxu0 0
  %921 = vmatprep.subr.bf16.mxu0 0
  %922 = vmatpush2.bf16.msra.mxu0 0
  %923 = vmatprep.subr.bf16.mxu0 0
  %924 = vmatpush2.bf16.msra.mxu0 0
  %925 = vmatprep.subr.bf16.mxu0 0
  %926 = vmatpush2.bf16.msra.mxu0 0
  %927 = vmatprep.mubr.bf16.mxu0 0
  %928 = vmatmul.mubr.bf16.gmra.mxu0 %v890
  %v929 = vpop.f32.mrf.mxu0
  %v930 = vadd.f32 0.0, %v929
  %v931 = vpop.f32.mrf.mxu0
  %v932 = vpop.f32.mrf.mxu0
  %v933 = vpop.f32.mrf.mxu0
  %934 = vdwg.mxu0
  %935 = vrot.lane.b32.xlu0 %v202, 64
  %v936 = vpop.permute.xlu0 %935
  %v938 = vsel %vm208, %v691, 0
  %v941 = vsel %vm699, %v936, 0
  %943 = vmatprep.subr.bf16.mxu0 0
  %944 = vmatpush1.bf16.msra.mxu0 0
  %945 = vmatprep.subr.bf16.mxu0 0
  %946 = vmatpush1.bf16.msra.mxu0 0
  %947 = vmatprep.subr.bf16.mxu0 0
  %948 = vmatpush1.bf16.msra.mxu0 0
  %949 = vmatprep.subr.bf16.mxu0 0
  %950 = vmatpush1.bf16.msra.mxu0 0
  %951 = vmatprep.subr.bf16.mxu0 0
  %952 = vmatpush1.bf16.msra.mxu0 0
  %953 = vmatprep.subr.bf16.mxu0 0
  %954 = vmatpush1.bf16.msra.mxu0 0
  %955 = vmatprep.subr.bf16.mxu0 0
  %956 = vmatpush1.bf16.msra.mxu0 0
  %957 = vmatprep.subr.bf16.mxu0 0
  %958 = vmatpush1.bf16.msra.mxu0 %v941
  %959 = vmatprep.subr.bf16.mxu0 0
  %960 = vmatpush2.bf16.msra.mxu0 0
  %961 = vmatprep.subr.bf16.mxu0 0
  %962 = vmatpush2.bf16.msra.mxu0 0
  %963 = vmatprep.subr.bf16.mxu0 0
  %964 = vmatpush2.bf16.msra.mxu0 0
  %965 = vmatprep.subr.bf16.mxu0 0
  %966 = vmatpush2.bf16.msra.mxu0 0
  %967 = vmatprep.subr.bf16.mxu0 0
  %968 = vmatpush2.bf16.msra.mxu0 0
  %969 = vmatprep.subr.bf16.mxu0 0
  %970 = vmatpush2.bf16.msra.mxu0 0
  %971 = vmatprep.subr.bf16.mxu0 0
  %972 = vmatpush2.bf16.msra.mxu0 0
  %973 = vmatprep.subr.bf16.mxu0 0
  %974 = vmatpush2.bf16.msra.mxu0 0
  %975 = vmatprep.mubr.bf16.mxu0 0
  %976 = vmatmul.mubr.bf16.gmra.mxu0 %v938
  %v977 = vpop.f32.mrf.mxu0
  %v978 = vadd.f32 0.0, %v977
  %v979 = vpop.f32.mrf.mxu0
  %v980 = vpop.f32.mrf.mxu0
  %v981 = vpop.f32.mrf.mxu0
  %982 = vdwg.mxu0
  %983 = vrot.lane.b32.xlu0 %v203, 64
  %v984 = vpop.permute.xlu0 %983
  %v986 = vsel %vm208, %v692, 0
  %v989 = vsel %vm699, %v984, 0
  %991 = vmatprep.subr.bf16.mxu0 0
  %992 = vmatpush1.bf16.msra.mxu0 0
  %993 = vmatprep.subr.bf16.mxu0 0
  %994 = vmatpush1.bf16.msra.mxu0 0
  %995 = vmatprep.subr.bf16.mxu0 0
  %996 = vmatpush1.bf16.msra.mxu0 0
  %997 = vmatprep.subr.bf16.mxu0 0
  %998 = vmatpush1.bf16.msra.mxu0 0
  %999 = vmatprep.subr.bf16.mxu0 0
  %1000 = vmatpush1.bf16.msra.mxu0 0
  %1001 = vmatprep.subr.bf16.mxu0 0
  %1002 = vmatpush1.bf16.msra.mxu0 0
  %1003 = vmatprep.subr.bf16.mxu0 0
  %1004 = vmatpush1.bf16.msra.mxu0 0
  %1005 = vmatprep.subr.bf16.mxu0 0
  %1006 = vmatpush1.bf16.msra.mxu0 %v989
  %1007 = vmatprep.subr.bf16.mxu0 0
  %1008 = vmatpush2.bf16.msra.mxu0 0
  %1009 = vmatprep.subr.bf16.mxu0 0
  %1010 = vmatpush2.bf16.msra.mxu0 0
  %1011 = vmatprep.subr.bf16.mxu0 0
  %1012 = vmatpush2.bf16.msra.mxu0 0
  %1013 = vmatprep.subr.bf16.mxu0 0
  %1014 = vmatpush2.bf16.msra.mxu0 0
  %1015 = vmatprep.subr.bf16.mxu0 0
  %1016 = vmatpush2.bf16.msra.mxu0 0
  %1017 = vmatprep.subr.bf16.mxu0 0
  %1018 = vmatpush2.bf16.msra.mxu0 0
  %1019 = vmatprep.subr.bf16.mxu0 0
  %1020 = vmatpush2.bf16.msra.mxu0 0
  %1021 = vmatprep.subr.bf16.mxu0 0
  %1022 = vmatpush2.bf16.msra.mxu0 0
  %1023 = vmatprep.mubr.bf16.mxu0 0
  %1024 = vmatmul.mubr.bf16.gmra.mxu0 %v986
  %v1025 = vpop.f32.mrf.mxu0
  %v1026 = vadd.f32 0.0, %v1025
  %v1027 = vpop.f32.mrf.mxu0
  %v1028 = vpop.f32.mrf.mxu0
  %v1029 = vpop.f32.mrf.mxu0
  %1030 = vdwg.mxu0
  %1031 = vrot.lane.b32.xlu0 %v204, 64
  %v1032 = vpop.permute.xlu0 %1031
  %v1034 = vsel %vm208, %v693, 0
  %v1037 = vsel %vm699, %v1032, 0
  %1039 = vmatprep.subr.bf16.mxu0 0
  %1040 = vmatpush1.bf16.msra.mxu0 0
  %1041 = vmatprep.subr.bf16.mxu0 0
  %1042 = vmatpush1.bf16.msra.mxu0 0
  %1043 = vmatprep.subr.bf16.mxu0 0
  %1044 = vmatpush1.bf16.msra.mxu0 0
  %1045 = vmatprep.subr.bf16.mxu0 0
  %1046 = vmatpush1.bf16.msra.mxu0 0
  %1047 = vmatprep.subr.bf16.mxu0 0
  %1048 = vmatpush1.bf16.msra.mxu0 0
  %1049 = vmatprep.subr.bf16.mxu0 0
  %1050 = vmatpush1.bf16.msra.mxu0 0
  %1051 = vmatprep.subr.bf16.mxu0 0
  %1052 = vmatpush1.bf16.msra.mxu0 0
  %1053 = vmatprep.subr.bf16.mxu0 0
  %1054 = vmatpush1.bf16.msra.mxu0 %v1037
  %1055 = vmatprep.subr.bf16.mxu0 0
  %1056 = vmatpush2.bf16.msra.mxu0 0
  %1057 = vmatprep.subr.bf16.mxu0 0
  %1058 = vmatpush2.bf16.msra.mxu0 0
  %1059 = vmatprep.subr.bf16.mxu0 0
  %1060 = vmatpush2.bf16.msra.mxu0 0
  %1061 = vmatprep.subr.bf16.mxu0 0
  %1062 = vmatpush2.bf16.msra.mxu0 0
  %1063 = vmatprep.subr.bf16.mxu0 0
  %1064 = vmatpush2.bf16.msra.mxu0 0
  %1065 = vmatprep.subr.bf16.mxu0 0
  %1066 = vmatpush2.bf16.msra.mxu0 0
  %1067 = vmatprep.subr.bf16.mxu0 0
  %1068 = vmatpush2.bf16.msra.mxu0 0
  %1069 = vmatprep.subr.bf16.mxu0 0
  %1070 = vmatpush2.bf16.msra.mxu0 0
  %1071 = vmatprep.mubr.bf16.mxu0 0
  %1072 = vmatmul.mubr.bf16.gmra.mxu0 %v1034
  %v1073 = vpop.f32.mrf.mxu0
  %v1074 = vadd.f32 0.0, %v1073
  %v1075 = vpop.f32.mrf.mxu0
  %v1076 = vpop.f32.mrf.mxu0
  %v1077 = vpop.f32.mrf.mxu0
  %1078 = vdwg.mxu0
  %v1079 = vpack.c.bf16 %v786, %v738
  %v1080 = vpack.c.bf16 %v882, %v834
  %v1082 = vsel %vm208, %v1080, 0
  %v1085 = vsel %vm699, %v143, 0
  %1087 = vmatprep.subr.bf16.mxu0 0
  %1088 = vmatpush1.bf16.msra.mxu0 0
  %1089 = vmatprep.subr.bf16.mxu0 0
  %1090 = vmatpush1.bf16.msra.mxu0 0
  %1091 = vmatprep.subr.bf16.mxu0 0
  %1092 = vmatpush1.bf16.msra.mxu0 0
  %1093 = vmatprep.subr.bf16.mxu0 0
  %1094 = vmatpush1.bf16.msra.mxu0 0
  %1095 = vmatprep.subr.bf16.mxu0 0
  %1096 = vmatpush1.bf16.msra.mxu0 0
  %1097 = vmatprep.subr.bf16.mxu0 0
  %1098 = vmatpush1.bf16.msra.mxu0 0
  %1099 = vmatprep.subr.bf16.mxu0 0
  %1100 = vmatpush1.bf16.msra.mxu0 0
  %1101 = vmatprep.subr.bf16.mxu0 0
  %1102 = vmatpush1.bf16.msra.mxu0 %v1085
  %1103 = vmatprep.subr.bf16.mxu0 0
  %1104 = vmatpush2.bf16.msra.mxu0 0
  %1105 = vmatprep.subr.bf16.mxu0 0
  %1106 = vmatpush2.bf16.msra.mxu0 0
  %1107 = vmatprep.subr.bf16.mxu0 0
  %1108 = vmatpush2.bf16.msra.mxu0 0
  %1109 = vmatprep.subr.bf16.mxu0 0
  %1110 = vmatpush2.bf16.msra.mxu0 0
  %1111 = vmatprep.subr.bf16.mxu0 0
  %1112 = vmatpush2.bf16.msra.mxu0 0
  %1113 = vmatprep.subr.bf16.mxu0 0
  %1114 = vmatpush2.bf16.msra.mxu0 0
  %1115 = vmatprep.subr.bf16.mxu0 0
  %1116 = vmatpush2.bf16.msra.mxu0 0
  %1117 = vmatprep.subr.bf16.mxu0 0
  %1118 = vmatpush2.bf16.msra.mxu0 0
  %1119 = vmatprep.mubr.bf16.mxu0 0
  %1120 = vmatmul.mubr.bf16.gmra.mxu0 %v1082
  %v1121 = vpop.f32.mrf.mxu0
  %v1122 = vadd.f32 0.0, %v1121
  %v1123 = vpop.f32.mrf.mxu0
  %v1124 = vpop.f32.mrf.mxu0
  %v1125 = vadd.f32 0.0, %v1124
  %v1126 = vpop.f32.mrf.mxu0
  %1127 = vdwg.mxu0
  %v1129 = vsel %vm208, %v1079, 0
  %v1132 = vsel %vm699, %v142, 0
  %1134 = vmatprep.subr.bf16.mxu0 0
  %1135 = vmatpush1.bf16.msra.mxu0 0
  %1136 = vmatprep.subr.bf16.mxu0 0
  %1137 = vmatpush1.bf16.msra.mxu0 0
  %1138 = vmatprep.subr.bf16.mxu0 0
  %1139 = vmatpush1.bf16.msra.mxu0 0
  %1140 = vmatprep.subr.bf16.mxu0 0
  %1141 = vmatpush1.bf16.msra.mxu0 0
  %1142 = vmatprep.subr.bf16.mxu0 0
  %1143 = vmatpush1.bf16.msra.mxu0 0
  %1144 = vmatprep.subr.bf16.mxu0 0
  %1145 = vmatpush1.bf16.msra.mxu0 0
  %1146 = vmatprep.subr.bf16.mxu0 0
  %1147 = vmatpush1.bf16.msra.mxu0 0
  %1148 = vmatprep.subr.bf16.mxu0 0
  %1149 = vmatpush1.bf16.msra.mxu0 %v1132
  %1150 = vmatprep.subr.bf16.mxu0 0
  %1151 = vmatpush2.bf16.msra.mxu0 0
  %1152 = vmatprep.subr.bf16.mxu0 0
  %1153 = vmatpush2.bf16.msra.mxu0 0
  %1154 = vmatprep.subr.bf16.mxu0 0
  %1155 = vmatpush2.bf16.msra.mxu0 0
  %1156 = vmatprep.subr.bf16.mxu0 0
  %1157 = vmatpush2.bf16.msra.mxu0 0
  %1158 = vmatprep.subr.bf16.mxu0 0
  %1159 = vmatpush2.bf16.msra.mxu0 0
  %1160 = vmatprep.subr.bf16.mxu0 0
  %1161 = vmatpush2.bf16.msra.mxu0 0
  %1162 = vmatprep.subr.bf16.mxu0 0
  %1163 = vmatpush2.bf16.msra.mxu0 0
  %1164 = vmatprep.subr.bf16.mxu0 0
  %1165 = vmatpush2.bf16.msra.mxu0 0
  %1166 = vmatprep.mubr.bf16.mxu0 0
  %1167 = vmatmul.mubr.bf16.gmra.mxu0 %v1129
  %v1168 = vpop.f32.mrf.mxu0
  %v1169 = vadd.f32 %v1122, %v1168
  %v1170 = vpop.f32.mrf.mxu0
  %v1171 = vpop.f32.mrf.mxu0
  %v1172 = vadd.f32 %v1125, %v1171
  %v1173 = vpop.f32.mrf.mxu0
  %1174 = vdwg.mxu0
  %v1175 = vpack.c.bf16 %v978, %v930
  %v1177 = vsel %vm208, %v1175, 0
  %v1180 = vsel %vm699, %v144, 0
  %1182 = vmatprep.subr.bf16.mxu0 0
  %1183 = vmatpush1.bf16.msra.mxu0 0
  %1184 = vmatprep.subr.bf16.mxu0 0
  %1185 = vmatpush1.bf16.msra.mxu0 0
  %1186 = vmatprep.subr.bf16.mxu0 0
  %1187 = vmatpush1.bf16.msra.mxu0 0
  %1188 = vmatprep.subr.bf16.mxu0 0
  %1189 = vmatpush1.bf16.msra.mxu0 0
  %1190 = vmatprep.subr.bf16.mxu0 0
  %1191 = vmatpush1.bf16.msra.mxu0 0
  %1192 = vmatprep.subr.bf16.mxu0 0
  %1193 = vmatpush1.bf16.msra.mxu0 0
  %1194 = vmatprep.subr.bf16.mxu0 0
  %1195 = vmatpush1.bf16.msra.mxu0 0
  %1196 = vmatprep.subr.bf16.mxu0 0
  %1197 = vmatpush1.bf16.msra.mxu0 %v1180
  %1198 = vmatprep.subr.bf16.mxu0 0
  %1199 = vmatpush2.bf16.msra.mxu0 0
  %1200 = vmatprep.subr.bf16.mxu0 0
  %1201 = vmatpush2.bf16.msra.mxu0 0
  %1202 = vmatprep.subr.bf16.mxu0 0
  %1203 = vmatpush2.bf16.msra.mxu0 0
  %1204 = vmatprep.subr.bf16.mxu0 0
  %1205 = vmatpush2.bf16.msra.mxu0 0
  %1206 = vmatprep.subr.bf16.mxu0 0
  %1207 = vmatpush2.bf16.msra.mxu0 0
  %1208 = vmatprep.subr.bf16.mxu0 0
  %1209 = vmatpush2.bf16.msra.mxu0 0
  %1210 = vmatprep.subr.bf16.mxu0 0
  %1211 = vmatpush2.bf16.msra.mxu0 0
  %1212 = vmatprep.subr.bf16.mxu0 0
  %1213 = vmatpush2.bf16.msra.mxu0 0
  %1214 = vmatprep.mubr.bf16.mxu0 0
  %1215 = vmatmul.mubr.bf16.gmra.mxu0 %v1177
  %v1216 = vpop.f32.mrf.mxu0
  %v1217 = vadd.f32 0.0, %v1216
  %v1218 = vpop.f32.mrf.mxu0
  %v1219 = vpop.f32.mrf.mxu0
  %v1220 = vadd.f32 0.0, %v1219
  %v1221 = vpop.f32.mrf.mxu0
  %1222 = vdwg.mxu0
  %v1223 = vadd.f32 %v1169, %v1217
  %v1224 = vadd.f32 %v1172, %v1220
  %v1225 = vpack.c.bf16 %v1074, %v1026
  %v1227 = vsel %vm208, %v1225, 0
  %v1230 = vsel %vm699, %v145, 0
  %1232 = vmatprep.subr.bf16.mxu0 0
  %1233 = vmatpush1.bf16.msra.mxu0 0
  %1234 = vmatprep.subr.bf16.mxu0 0
  %1235 = vmatpush1.bf16.msra.mxu0 0
  %1236 = vmatprep.subr.bf16.mxu0 0
  %1237 = vmatpush1.bf16.msra.mxu0 0
  %1238 = vmatprep.subr.bf16.mxu0 0
  %1239 = vmatpush1.bf16.msra.mxu0 0
  %1240 = vmatprep.subr.bf16.mxu0 0
  %1241 = vmatpush1.bf16.msra.mxu0 0
  %1242 = vmatprep.subr.bf16.mxu0 0
  %1243 = vmatpush1.bf16.msra.mxu0 0
  %1244 = vmatprep.subr.bf16.mxu0 0
  %1245 = vmatpush1.bf16.msra.mxu0 0
  %1246 = vmatprep.subr.bf16.mxu0 0
  %1247 = vmatpush1.bf16.msra.mxu0 %v1230
  %1248 = vmatprep.subr.bf16.mxu0 0
  %1249 = vmatpush2.bf16.msra.mxu0 0
  %1250 = vmatprep.subr.bf16.mxu0 0
  %1251 = vmatpush2.bf16.msra.mxu0 0
  %1252 = vmatprep.subr.bf16.mxu0 0
  %1253 = vmatpush2.bf16.msra.mxu0 0
  %1254 = vmatprep.subr.bf16.mxu0 0
  %1255 = vmatpush2.bf16.msra.mxu0 0
  %1256 = vmatprep.subr.bf16.mxu0 0
  %1257 = vmatpush2.bf16.msra.mxu0 0
  %1258 = vmatprep.subr.bf16.mxu0 0
  %1259 = vmatpush2.bf16.msra.mxu0 0
  %1260 = vmatprep.subr.bf16.mxu0 0
  %1261 = vmatpush2.bf16.msra.mxu0 0
  %1262 = vmatprep.subr.bf16.mxu0 0
  %1263 = vmatpush2.bf16.msra.mxu0 0
  %1264 = vmatprep.mubr.bf16.mxu0 0
  %1265 = vmatmul.mubr.bf16.gmra.mxu0 %v1227
  %v1266 = vpop.f32.mrf.mxu0
  %v1267 = vadd.f32 0.0, %v1266
  %v1268 = vpop.f32.mrf.mxu0
  %v1269 = vpop.f32.mrf.mxu0
  %v1270 = vadd.f32 0.0, %v1269
  %v1271 = vpop.f32.mrf.mxu0
  %1272 = vdwg.mxu0
  %v1273 = vadd.f32 %v1223, %v1267
  %v1274 = vadd.f32 %v1224, %v1270
  %v1276 = vlaneseq
  %v1277 = vshrl.u32 %v1276, 7
  %v1278 = vsub.s32 0, %v1277
  %v1279 = vrot.slane %v146, %v1278
  %v1281 = vadd.f32 %v1273, %v1279
  %v1282 = vadd.f32 %v1274, %v1279
  %v1283 = vadd.f32 %v1281, %v68
  %v1284 = vadd.f32 %v1282, %v69
  %v1285 = vld [vmem:[%s6] sm:$0x1]
  %v1286 = vld [vmem:[%s7] sm:$0x1]
  %v1287 = vsel %vm91, %v1283, 0.0
  %1288 = vadd.xlane.f32.xlu0 %v1287
  %v1289 = vpop.xlane.xlu0 %1288
  %v1290 = vsel %vm91, %v1284, 0.0
  %1291 = vadd.xlane.f32.xlu0 %v1290
  %v1292 = vpop.xlane.xlu0 %1291
  %v1293 = vrcp.pop 32.0
  %v1294 = vmul.f32 %v1289, %v1293
  %v1295 = vmul.f32 %v1292, %v1293
  %v1296 = vsub.f32 %v1283, %v1294
  %v1297 = vsub.f32 %v1284, %v1295
  %v1298 = vmul.f32 %v1296, %v1296
  %v1299 = vmul.f32 %v1297, %v1297
  %v1300 = vsel %vm91, %v1298, 0.0
  %1301 = vadd.xlane.f32.xlu0 %v1300
  %v1302 = vpop.xlane.xlu0 %1301
  %v1303 = vsel %vm91, %v1299, 0.0
  %1304 = vadd.xlane.f32.xlu0 %v1303
  %v1305 = vpop.xlane.xlu0 %1304
  %v1306 = vmul.f32 %v1302, %v1293
  %v1307 = vmul.f32 %v1305, %v1293
  %v1308 = vadd.f32 %v1306, 1e-05
  %v1309 = vadd.f32 %v1307, 1e-05
  %v1310 = vrsqrt.pop %v1308
  %v1311 = vrsqrt.pop %v1309
  %v1312 = vmul.f32 %v1296, %v1310
  %v1313 = vmul.f32 %v1297, %v1311
  %v1315 = vlaneseq
  %v1316 = vshrl.u32 %v1315, 7
  %v1317 = vsub.s32 0, %v1316
  %v1318 = vrot.slane %v1285, %v1317
  %v1320 = vmul.f32 %v1312, %v1318
  %v1321 = vmul.f32 %v1313, %v1318
  %v1323 = vlaneseq
  %v1324 = vshrl.u32 %v1323, 7
  %v1325 = vsub.s32 0, %v1324
  %v1326 = vrot.slane %v1286, %v1325
  %v1328 = vadd.f32 %v1320, %v1326
  %v1329 = vadd.f32 %v1321, %v1326
  %v1330 = vld [vmem:[%s1] sm:$0xf]
  %v1331 = vld [vmem:[%s1 + $0x4] sm:$0xf]
  %v1332 = vpack.c.bf16 %v1329, %v1328
  %v1333 = vld [vmem:[%s8] sm:$0xf]
  %v1334 = vld [vmem:[%s8 + $0x4] sm:$0xf]
  %v1335 = vld [vmem:[%s8 + $0x8] sm:$0xf]
  %v1336 = vld [vmem:[%s8 + $0xc] sm:$0xf]
  %v1341 = vunpack.c.l.b16 %v1333
  %v1342 = vunpack.c.l.b16 %v1334
  %v1343 = vunpack.c.l.b16 %v1335
  %v1344 = vunpack.c.l.b16 %v1336
  %v1345 = vpack.c.b16 %v1342, %v1341
  %v1346 = vpack.c.b16 %v1344, %v1343
  %v1350 = vsel %vm91, %v1332, 0
  %1352 = vmatprep.subr.bf16.mxu0 0
  %1353 = vmatpush1.bf16.msra.mxu0 0
  %1354 = vmatprep.subr.bf16.mxu0 0
  %1355 = vmatpush1.bf16.msra.mxu0 0
  %1356 = vmatprep.subr.bf16.mxu0 0
  %1357 = vmatpush1.bf16.msra.mxu0 0
  %1358 = vmatprep.subr.bf16.mxu0 0
  %1359 = vmatpush1.bf16.msra.mxu0 0
  %1360 = vmatprep.subr.bf16.mxu0 0
  %1361 = vmatpush1.bf16.msra.mxu0 0
  %1362 = vmatprep.subr.bf16.mxu0 0
  %1363 = vmatpush1.bf16.msra.mxu0 0
  %1364 = vmatprep.subr.bf16.mxu0 0
  %1365 = vmatpush1.bf16.msra.mxu0 %v1346
  %1366 = vmatprep.subr.bf16.mxu0 0
  %1367 = vmatpush1.bf16.msra.mxu0 %v1345
  %1368 = vmatprep.subr.bf16.mxu0 0
  %1369 = vmatpush2.bf16.msra.mxu0 0
  %1370 = vmatprep.subr.bf16.mxu0 0
  %1371 = vmatpush2.bf16.msra.mxu0 0
  %1372 = vmatprep.subr.bf16.mxu0 0
  %1373 = vmatpush2.bf16.msra.mxu0 0
  %1374 = vmatprep.subr.bf16.mxu0 0
  %1375 = vmatpush2.bf16.msra.mxu0 0
  %1376 = vmatprep.subr.bf16.mxu0 0
  %1377 = vmatpush2.bf16.msra.mxu0 0
  %1378 = vmatprep.subr.bf16.mxu0 0
  %1379 = vmatpush2.bf16.msra.mxu0 0
  %1380 = vmatprep.subr.bf16.mxu0 0
  %1381 = vmatpush2.bf16.msra.mxu0 0
  %1382 = vmatprep.subr.bf16.mxu0 0
  %1383 = vmatpush2.bf16.msra.mxu0 0
  %1384 = vmatprep.mubr.bf16.mxu0 0
  %1385 = vmatmul.mubr.bf16.gmra.mxu0 %v1350
  %v1386 = vpop.f32.mrf.mxu0
  %v1387 = vadd.f32 0.0, %v1386
  %v1388 = vpop.f32.mrf.mxu0
  %v1389 = vpop.f32.mrf.mxu0
  %v1390 = vadd.f32 0.0, %v1389
  %v1391 = vpop.f32.mrf.mxu0
  %1392 = vdwg.mxu0
  %v1393 = vld [vmem:[%s9] sm:$0xf]
  %v1394 = vld [vmem:[%s9 + $0x4] sm:$0xf]
  %v1395 = vld [vmem:[%s9 + $0x8] sm:$0xf]
  %v1396 = vld [vmem:[%s9 + $0xc] sm:$0xf]
  %v1399 = vunpack.c.l.b16 %v1330
  %v1400 = vunpack.c.l.b16 %v1331
  %v1401 = vpack.c.b16 %v1400, %v1399
  %v1406 = vunpack.c.l.b16 %v1393
  %v1407 = vunpack.c.l.b16 %v1394
  %v1408 = vunpack.c.l.b16 %v1395
  %v1409 = vunpack.c.l.b16 %v1396
  %v1410 = vpack.c.b16 %v1407, %v1406
  %v1411 = vpack.c.b16 %v1409, %v1408
  %v1415 = vsel %vm91, %v1401, 0
  %1417 = vmatprep.subr.bf16.mxu0 0
  %1418 = vmatpush1.bf16.msra.mxu0 0
  %1419 = vmatprep.subr.bf16.mxu0 0
  %1420 = vmatpush1.bf16.msra.mxu0 0
  %1421 = vmatprep.subr.bf16.mxu0 0
  %1422 = vmatpush1.bf16.msra.mxu0 0
  %1423 = vmatprep.subr.bf16.mxu0 0
  %1424 = vmatpush1.bf16.msra.mxu0 0
  %1425 = vmatprep.subr.bf16.mxu0 0
  %1426 = vmatpush1.bf16.msra.mxu0 0
  %1427 = vmatprep.subr.bf16.mxu0 0
  %1428 = vmatpush1.bf16.msra.mxu0 0
  %1429 = vmatprep.subr.bf16.mxu0 0
  %1430 = vmatpush1.bf16.msra.mxu0 %v1411
  %1431 = vmatprep.subr.bf16.mxu0 0
  %1432 = vmatpush1.bf16.msra.mxu0 %v1410
  %1433 = vmatprep.subr.bf16.mxu0 0
  %1434 = vmatpush2.bf16.msra.mxu0 0
  %1435 = vmatprep.subr.bf16.mxu0 0
  %1436 = vmatpush2.bf16.msra.mxu0 0
  %1437 = vmatprep.subr.bf16.mxu0 0
  %1438 = vmatpush2.bf16.msra.mxu0 0
  %1439 = vmatprep.subr.bf16.mxu0 0
  %1440 = vmatpush2.bf16.msra.mxu0 0
  %1441 = vmatprep.subr.bf16.mxu0 0
  %1442 = vmatpush2.bf16.msra.mxu0 0
  %1443 = vmatprep.subr.bf16.mxu0 0
  %1444 = vmatpush2.bf16.msra.mxu0 0
  %1445 = vmatprep.subr.bf16.mxu0 0
  %1446 = vmatpush2.bf16.msra.mxu0 0
  %1447 = vmatprep.subr.bf16.mxu0 0
  %1448 = vmatpush2.bf16.msra.mxu0 0
  %1449 = vmatprep.mubr.bf16.mxu0 0
  %1450 = vmatmul.mubr.bf16.gmra.mxu0 %v1415
  %v1451 = vpop.f32.mrf.mxu0
  %v1452 = vadd.f32 0.0, %v1451
  %v1453 = vpop.f32.mrf.mxu0
  %v1454 = vpop.f32.mrf.mxu0
  %v1455 = vadd.f32 0.0, %v1454
  %v1456 = vpop.f32.mrf.mxu0
  %1457 = vdwg.mxu0
  %v1458 = vld [vmem:[%s2] sm:$0x1]
  %v1459 = vld [vmem:[%s2 + $0x1] sm:$0x1]
  %v1460 = vsub.f32 %v1458, 1.0
  %v1461 = vsub.f32 %v1459, 1.0
  %v1462 = vmul.f32 %v1460, 1e+20
  %v1463 = vmul.f32 %v1461, 1e+20
  %v1464 = vld [vmem:[%s10] sm:$0xf]
  %v1465 = vld [vmem:[%s10 + $0x4] sm:$0xf]
  %v1466 = vld [vmem:[%s10 + $0x8] sm:$0xf]
  %v1467 = vld [vmem:[%s10 + $0xc] sm:$0xf]
  %v1468 = vld [vmem:[%s11] sm:$0x1]
  %v1469 = vmul.f32 %v1387, 0.17677669
  %v1470 = vmul.f32 %v1390, 0.17677669
  %1473 = vrot.lane.b32.xlu0 %v1469, 120
  %v1474 = vpop.permute.xlu0 %1473
  %1475 = vrot.lane.b32.xlu0 %v1470, 120
  %v1476 = vpop.permute.xlu0 %1475
  %1479 = vrot.lane.b32.xlu0 %v1469, 112
  %v1480 = vpop.permute.xlu0 %1479
  %1481 = vrot.lane.b32.xlu0 %v1470, 112
  %v1482 = vpop.permute.xlu0 %1481
  %1485 = vrot.lane.b32.xlu0 %v1469, 104
  %v1486 = vpop.permute.xlu0 %1485
  %1487 = vrot.lane.b32.xlu0 %v1470, 104
  %v1488 = vpop.permute.xlu0 %1487
  %v1491 = vpack.c.bf16 %v1469, %v1469
  %v1492 = vpack.c.bf16 %v1470, %v1470
  %v1493 = vpack.c.bf16 %v1474, %v1474
  %v1494 = vpack.c.bf16 %v1476, %v1476
  %v1495 = vpack.c.bf16 %v1480, %v1480
  %v1496 = vpack.c.bf16 %v1482, %v1482
  %v1497 = vpack.c.bf16 %v1486, %v1486
  %v1498 = vpack.c.bf16 %v1488, %v1488
  %1501 = vrot.lane.b32.xlu0 %v1452, 120
  %v1502 = vpop.permute.xlu0 %1501
  %1503 = vrot.lane.b32.xlu0 %v1455, 120
  %v1504 = vpop.permute.xlu0 %1503
  %1507 = vrot.lane.b32.xlu0 %v1452, 112
  %v1508 = vpop.permute.xlu0 %1507
  %1509 = vrot.lane.b32.xlu0 %v1455, 112
  %v1510 = vpop.permute.xlu0 %1509
  %1513 = vrot.lane.b32.xlu0 %v1452, 104
  %v1514 = vpop.permute.xlu0 %1513
  %1515 = vrot.lane.b32.xlu0 %v1455, 104
  %v1516 = vpop.permute.xlu0 %1515
  %v1519 = vpack.c.bf16 %v1452, %v1452
  %v1520 = vpack.c.bf16 %v1455, %v1455
  %v1521 = vpack.c.bf16 %v1502, %v1502
  %v1522 = vpack.c.bf16 %v1504, %v1504
  %v1523 = vpack.c.bf16 %v1508, %v1508
  %v1524 = vpack.c.bf16 %v1510, %v1510
  %v1525 = vpack.c.bf16 %v1514, %v1514
  %v1526 = vpack.c.bf16 %v1516, %v1516
  %v1529 = vlaneseq
  %v1530 = vshrl.u32 %v1529, 7
  %v1531 = vsub.s32 0, %v1530
  %v1532 = vrot.slane %v1462, %v1531
  %v1533 = vlaneseq
  %v1534 = vshrl.u32 %v1533, 7
  %v1535 = vsub.s32 0, %v1534
  %v1536 = vrot.slane %v1463, %v1535
  %v1540 = vsel %vm208, %v1491, 0
  %v1543 = vsel %vm208, %v1519, 0
  %1545 = vmatprep.subr.bf16.mxu0 0
  %1546 = vmatpush1.bf16.xpose.msra.mxu0 0
  %1547 = vmatprep.subr.bf16.mxu0 0
  %1548 = vmatpush1.bf16.xpose.msra.mxu0 0
  %1549 = vmatprep.subr.bf16.mxu0 0
  %1550 = vmatpush1.bf16.xpose.msra.mxu0 0
  %1551 = vmatprep.subr.bf16.mxu0 0
  %1552 = vmatpush1.bf16.xpose.msra.mxu0 0
  %1553 = vmatprep.subr.bf16.mxu0 0
  %1554 = vmatpush1.bf16.xpose.msra.mxu0 0
  %1555 = vmatprep.subr.bf16.mxu0 0
  %1556 = vmatpush1.bf16.xpose.msra.mxu0 0
  %1557 = vmatprep.subr.bf16.mxu0 0
  %1558 = vmatpush1.bf16.xpose.msra.mxu0 0
  %1559 = vmatprep.subr.bf16.mxu0 0
  %1560 = vmatpush1.bf16.xpose.msra.mxu0 %v1543
  %1561 = vmatprep.subr.bf16.mxu0 0
  %1562 = vmatpush2.bf16.xpose.msra.mxu0 0
  %1563 = vmatprep.subr.bf16.mxu0 0
  %1564 = vmatpush2.bf16.xpose.msra.mxu0 0
  %1565 = vmatprep.subr.bf16.mxu0 0
  %1566 = vmatpush2.bf16.xpose.msra.mxu0 0
  %1567 = vmatprep.subr.bf16.mxu0 0
  %1568 = vmatpush2.bf16.xpose.msra.mxu0 0
  %1569 = vmatprep.subr.bf16.mxu0 0
  %1570 = vmatpush2.bf16.xpose.msra.mxu0 0
  %1571 = vmatprep.subr.bf16.mxu0 0
  %1572 = vmatpush2.bf16.xpose.msra.mxu0 0
  %1573 = vmatprep.subr.bf16.mxu0 0
  %1574 = vmatpush2.bf16.xpose.msra.mxu0 0
  %1575 = vmatprep.subr.bf16.mxu0 0
  %1576 = vmatpush2.bf16.xpose.msra.mxu0 0
  %1577 = vmatprep.mubr.bf16.mxu0 0
  %1578 = vmatmul.mubr.bf16.gmra.mxu0 %v1540
  %v1579 = vpop.f32.mrf.mxu0
  %v1580 = vadd.f32 %v1532, %v1579
  %v1581 = vpop.f32.mrf.mxu0
  %v1582 = vpop.f32.mrf.mxu0
  %v1583 = vpop.f32.mrf.mxu0
  %1584 = vdwg.mxu0
  %v1586 = vsel %vm208, %v1492, 0
  %v1589 = vsel %vm208, %v1520, 0
  %1591 = vmatprep.subr.bf16.mxu0 0
  %1592 = vmatpush1.bf16.xpose.msra.mxu0 0
  %1593 = vmatprep.subr.bf16.mxu0 0
  %1594 = vmatpush1.bf16.xpose.msra.mxu0 0
  %1595 = vmatprep.subr.bf16.mxu0 0
  %1596 = vmatpush1.bf16.xpose.msra.mxu0 0
  %1597 = vmatprep.subr.bf16.mxu0 0
  %1598 = vmatpush1.bf16.xpose.msra.mxu0 0
  %1599 = vmatprep.subr.bf16.mxu0 0
  %1600 = vmatpush1.bf16.xpose.msra.mxu0 0
  %1601 = vmatprep.subr.bf16.mxu0 0
  %1602 = vmatpush1.bf16.xpose.msra.mxu0 0
  %1603 = vmatprep.subr.bf16.mxu0 0
  %1604 = vmatpush1.bf16.xpose.msra.mxu0 0
  %1605 = vmatprep.subr.bf16.mxu0 0
  %1606 = vmatpush1.bf16.xpose.msra.mxu0 %v1589
  %1607 = vmatprep.subr.bf16.mxu0 0
  %1608 = vmatpush2.bf16.xpose.msra.mxu0 0
  %1609 = vmatprep.subr.bf16.mxu0 0
  %1610 = vmatpush2.bf16.xpose.msra.mxu0 0
  %1611 = vmatprep.subr.bf16.mxu0 0
  %1612 = vmatpush2.bf16.xpose.msra.mxu0 0
  %1613 = vmatprep.subr.bf16.mxu0 0
  %1614 = vmatpush2.bf16.xpose.msra.mxu0 0
  %1615 = vmatprep.subr.bf16.mxu0 0
  %1616 = vmatpush2.bf16.xpose.msra.mxu0 0
  %1617 = vmatprep.subr.bf16.mxu0 0
  %1618 = vmatpush2.bf16.xpose.msra.mxu0 0
  %1619 = vmatprep.subr.bf16.mxu0 0
  %1620 = vmatpush2.bf16.xpose.msra.mxu0 0
  %1621 = vmatprep.subr.bf16.mxu0 0
  %1622 = vmatpush2.bf16.xpose.msra.mxu0 0
  %1623 = vmatprep.mubr.bf16.mxu0 0
  %1624 = vmatmul.mubr.bf16.gmra.mxu0 %v1586
  %v1625 = vpop.f32.mrf.mxu0
  %v1626 = vadd.f32 %v1536, %v1625
  %v1627 = vpop.f32.mrf.mxu0
  %v1628 = vpop.f32.mrf.mxu0
  %v1629 = vpop.f32.mrf.mxu0
  %1630 = vdwg.mxu0
  %v1632 = vsel %vm208, %v1493, 0
  %v1635 = vsel %vm208, %v1521, 0
  %1637 = vmatprep.subr.bf16.mxu0 0
  %1638 = vmatpush1.bf16.xpose.msra.mxu0 0
  %1639 = vmatprep.subr.bf16.mxu0 0
  %1640 = vmatpush1.bf16.xpose.msra.mxu0 0
  %1641 = vmatprep.subr.bf16.mxu0 0
  %1642 = vmatpush1.bf16.xpose.msra.mxu0 0
  %1643 = vmatprep.subr.bf16.mxu0 0
  %1644 = vmatpush1.bf16.xpose.msra.mxu0 0
  %1645 = vmatprep.subr.bf16.mxu0 0
  %1646 = vmatpush1.bf16.xpose.msra.mxu0 0
  %1647 = vmatprep.subr.bf16.mxu0 0
  %1648 = vmatpush1.bf16.xpose.msra.mxu0 0
  %1649 = vmatprep.subr.bf16.mxu0 0
  %1650 = vmatpush1.bf16.xpose.msra.mxu0 0
  %1651 = vmatprep.subr.bf16.mxu0 0
  %1652 = vmatpush1.bf16.xpose.msra.mxu0 %v1635
  %1653 = vmatprep.subr.bf16.mxu0 0
  %1654 = vmatpush2.bf16.xpose.msra.mxu0 0
  %1655 = vmatprep.subr.bf16.mxu0 0
  %1656 = vmatpush2.bf16.xpose.msra.mxu0 0
  %1657 = vmatprep.subr.bf16.mxu0 0
  %1658 = vmatpush2.bf16.xpose.msra.mxu0 0
  %1659 = vmatprep.subr.bf16.mxu0 0
  %1660 = vmatpush2.bf16.xpose.msra.mxu0 0
  %1661 = vmatprep.subr.bf16.mxu0 0
  %1662 = vmatpush2.bf16.xpose.msra.mxu0 0
  %1663 = vmatprep.subr.bf16.mxu0 0
  %1664 = vmatpush2.bf16.xpose.msra.mxu0 0
  %1665 = vmatprep.subr.bf16.mxu0 0
  %1666 = vmatpush2.bf16.xpose.msra.mxu0 0
  %1667 = vmatprep.subr.bf16.mxu0 0
  %1668 = vmatpush2.bf16.xpose.msra.mxu0 0
  %1669 = vmatprep.mubr.bf16.mxu0 0
  %1670 = vmatmul.mubr.bf16.gmra.mxu0 %v1632
  %v1671 = vpop.f32.mrf.mxu0
  %v1672 = vadd.f32 %v1532, %v1671
  %v1673 = vpop.f32.mrf.mxu0
  %v1674 = vpop.f32.mrf.mxu0
  %v1675 = vpop.f32.mrf.mxu0
  %1676 = vdwg.mxu0
  %v1678 = vsel %vm208, %v1494, 0
  %v1681 = vsel %vm208, %v1522, 0
  %1683 = vmatprep.subr.bf16.mxu0 0
  %1684 = vmatpush1.bf16.xpose.msra.mxu0 0
  %1685 = vmatprep.subr.bf16.mxu0 0
  %1686 = vmatpush1.bf16.xpose.msra.mxu0 0
  %1687 = vmatprep.subr.bf16.mxu0 0
  %1688 = vmatpush1.bf16.xpose.msra.mxu0 0
  %1689 = vmatprep.subr.bf16.mxu0 0
  %1690 = vmatpush1.bf16.xpose.msra.mxu0 0
  %1691 = vmatprep.subr.bf16.mxu0 0
  %1692 = vmatpush1.bf16.xpose.msra.mxu0 0
  %1693 = vmatprep.subr.bf16.mxu0 0
  %1694 = vmatpush1.bf16.xpose.msra.mxu0 0
  %1695 = vmatprep.subr.bf16.mxu0 0
  %1696 = vmatpush1.bf16.xpose.msra.mxu0 0
  %1697 = vmatprep.subr.bf16.mxu0 0
  %1698 = vmatpush1.bf16.xpose.msra.mxu0 %v1681
  %1699 = vmatprep.subr.bf16.mxu0 0
  %1700 = vmatpush2.bf16.xpose.msra.mxu0 0
  %1701 = vmatprep.subr.bf16.mxu0 0
  %1702 = vmatpush2.bf16.xpose.msra.mxu0 0
  %1703 = vmatprep.subr.bf16.mxu0 0
  %1704 = vmatpush2.bf16.xpose.msra.mxu0 0
  %1705 = vmatprep.subr.bf16.mxu0 0
  %1706 = vmatpush2.bf16.xpose.msra.mxu0 0
  %1707 = vmatprep.subr.bf16.mxu0 0
  %1708 = vmatpush2.bf16.xpose.msra.mxu0 0
  %1709 = vmatprep.subr.bf16.mxu0 0
  %1710 = vmatpush2.bf16.xpose.msra.mxu0 0
  %1711 = vmatprep.subr.bf16.mxu0 0
  %1712 = vmatpush2.bf16.xpose.msra.mxu0 0
  %1713 = vmatprep.subr.bf16.mxu0 0
  %1714 = vmatpush2.bf16.xpose.msra.mxu0 0
  %1715 = vmatprep.mubr.bf16.mxu0 0
  %1716 = vmatmul.mubr.bf16.gmra.mxu0 %v1678
  %v1717 = vpop.f32.mrf.mxu0
  %v1718 = vadd.f32 %v1536, %v1717
  %v1719 = vpop.f32.mrf.mxu0
  %v1720 = vpop.f32.mrf.mxu0
  %v1721 = vpop.f32.mrf.mxu0
  %1722 = vdwg.mxu0
  %v1724 = vsel %vm208, %v1495, 0
  %v1727 = vsel %vm208, %v1523, 0
  %1729 = vmatprep.subr.bf16.mxu0 0
  %1730 = vmatpush1.bf16.xpose.msra.mxu0 0
  %1731 = vmatprep.subr.bf16.mxu0 0
  %1732 = vmatpush1.bf16.xpose.msra.mxu0 0
  %1733 = vmatprep.subr.bf16.mxu0 0
  %1734 = vmatpush1.bf16.xpose.msra.mxu0 0
  %1735 = vmatprep.subr.bf16.mxu0 0
  %1736 = vmatpush1.bf16.xpose.msra.mxu0 0
  %1737 = vmatprep.subr.bf16.mxu0 0
  %1738 = vmatpush1.bf16.xpose.msra.mxu0 0
  %1739 = vmatprep.subr.bf16.mxu0 0
  %1740 = vmatpush1.bf16.xpose.msra.mxu0 0
  %1741 = vmatprep.subr.bf16.mxu0 0
  %1742 = vmatpush1.bf16.xpose.msra.mxu0 0
  %1743 = vmatprep.subr.bf16.mxu0 0
  %1744 = vmatpush1.bf16.xpose.msra.mxu0 %v1727
  %1745 = vmatprep.subr.bf16.mxu0 0
  %1746 = vmatpush2.bf16.xpose.msra.mxu0 0
  %1747 = vmatprep.subr.bf16.mxu0 0
  %1748 = vmatpush2.bf16.xpose.msra.mxu0 0
  %1749 = vmatprep.subr.bf16.mxu0 0
  %1750 = vmatpush2.bf16.xpose.msra.mxu0 0
  %1751 = vmatprep.subr.bf16.mxu0 0
  %1752 = vmatpush2.bf16.xpose.msra.mxu0 0
  %1753 = vmatprep.subr.bf16.mxu0 0
  %1754 = vmatpush2.bf16.xpose.msra.mxu0 0
  %1755 = vmatprep.subr.bf16.mxu0 0
  %1756 = vmatpush2.bf16.xpose.msra.mxu0 0
  %1757 = vmatprep.subr.bf16.mxu0 0
  %1758 = vmatpush2.bf16.xpose.msra.mxu0 0
  %1759 = vmatprep.subr.bf16.mxu0 0
  %1760 = vmatpush2.bf16.xpose.msra.mxu0 0
  %1761 = vmatprep.mubr.bf16.mxu0 0
  %1762 = vmatmul.mubr.bf16.gmra.mxu0 %v1724
  %v1763 = vpop.f32.mrf.mxu0
  %v1764 = vadd.f32 %v1532, %v1763
  %v1765 = vpop.f32.mrf.mxu0
  %v1766 = vpop.f32.mrf.mxu0
  %v1767 = vpop.f32.mrf.mxu0
  %1768 = vdwg.mxu0
  %v1770 = vsel %vm208, %v1496, 0
  %v1773 = vsel %vm208, %v1524, 0
  %1775 = vmatprep.subr.bf16.mxu0 0
  %1776 = vmatpush1.bf16.xpose.msra.mxu0 0
  %1777 = vmatprep.subr.bf16.mxu0 0
  %1778 = vmatpush1.bf16.xpose.msra.mxu0 0
  %1779 = vmatprep.subr.bf16.mxu0 0
  %1780 = vmatpush1.bf16.xpose.msra.mxu0 0
  %1781 = vmatprep.subr.bf16.mxu0 0
  %1782 = vmatpush1.bf16.xpose.msra.mxu0 0
  %1783 = vmatprep.subr.bf16.mxu0 0
  %1784 = vmatpush1.bf16.xpose.msra.mxu0 0
  %1785 = vmatprep.subr.bf16.mxu0 0
  %1786 = vmatpush1.bf16.xpose.msra.mxu0 0
  %1787 = vmatprep.subr.bf16.mxu0 0
  %1788 = vmatpush1.bf16.xpose.msra.mxu0 0
  %1789 = vmatprep.subr.bf16.mxu0 0
  %1790 = vmatpush1.bf16.xpose.msra.mxu0 %v1773
  %1791 = vmatprep.subr.bf16.mxu0 0
  %1792 = vmatpush2.bf16.xpose.msra.mxu0 0
  %1793 = vmatprep.subr.bf16.mxu0 0
  %1794 = vmatpush2.bf16.xpose.msra.mxu0 0
  %1795 = vmatprep.subr.bf16.mxu0 0
  %1796 = vmatpush2.bf16.xpose.msra.mxu0 0
  %1797 = vmatprep.subr.bf16.mxu0 0
  %1798 = vmatpush2.bf16.xpose.msra.mxu0 0
  %1799 = vmatprep.subr.bf16.mxu0 0
  %1800 = vmatpush2.bf16.xpose.msra.mxu0 0
  %1801 = vmatprep.subr.bf16.mxu0 0
  %1802 = vmatpush2.bf16.xpose.msra.mxu0 0
  %1803 = vmatprep.subr.bf16.mxu0 0
  %1804 = vmatpush2.bf16.xpose.msra.mxu0 0
  %1805 = vmatprep.subr.bf16.mxu0 0
  %1806 = vmatpush2.bf16.xpose.msra.mxu0 0
  %1807 = vmatprep.mubr.bf16.mxu0 0
  %1808 = vmatmul.mubr.bf16.gmra.mxu0 %v1770
  %v1809 = vpop.f32.mrf.mxu0
  %v1810 = vadd.f32 %v1536, %v1809
  %v1811 = vpop.f32.mrf.mxu0
  %v1812 = vpop.f32.mrf.mxu0
  %v1813 = vpop.f32.mrf.mxu0
  %1814 = vdwg.mxu0
  %v1816 = vsel %vm208, %v1497, 0
  %v1819 = vsel %vm208, %v1525, 0
  %1821 = vmatprep.subr.bf16.mxu0 0
  %1822 = vmatpush1.bf16.xpose.msra.mxu0 0
  %1823 = vmatprep.subr.bf16.mxu0 0
  %1824 = vmatpush1.bf16.xpose.msra.mxu0 0
  %1825 = vmatprep.subr.bf16.mxu0 0
  %1826 = vmatpush1.bf16.xpose.msra.mxu0 0
  %1827 = vmatprep.subr.bf16.mxu0 0
  %1828 = vmatpush1.bf16.xpose.msra.mxu0 0
  %1829 = vmatprep.subr.bf16.mxu0 0
  %1830 = vmatpush1.bf16.xpose.msra.mxu0 0
  %1831 = vmatprep.subr.bf16.mxu0 0
  %1832 = vmatpush1.bf16.xpose.msra.mxu0 0
  %1833 = vmatprep.subr.bf16.mxu0 0
  %1834 = vmatpush1.bf16.xpose.msra.mxu0 0
  %1835 = vmatprep.subr.bf16.mxu0 0
  %1836 = vmatpush1.bf16.xpose.msra.mxu0 %v1819
  %1837 = vmatprep.subr.bf16.mxu0 0
  %1838 = vmatpush2.bf16.xpose.msra.mxu0 0
  %1839 = vmatprep.subr.bf16.mxu0 0
  %1840 = vmatpush2.bf16.xpose.msra.mxu0 0
  %1841 = vmatprep.subr.bf16.mxu0 0
  %1842 = vmatpush2.bf16.xpose.msra.mxu0 0
  %1843 = vmatprep.subr.bf16.mxu0 0
  %1844 = vmatpush2.bf16.xpose.msra.mxu0 0
  %1845 = vmatprep.subr.bf16.mxu0 0
  %1846 = vmatpush2.bf16.xpose.msra.mxu0 0
  %1847 = vmatprep.subr.bf16.mxu0 0
  %1848 = vmatpush2.bf16.xpose.msra.mxu0 0
  %1849 = vmatprep.subr.bf16.mxu0 0
  %1850 = vmatpush2.bf16.xpose.msra.mxu0 0
  %1851 = vmatprep.subr.bf16.mxu0 0
  %1852 = vmatpush2.bf16.xpose.msra.mxu0 0
  %1853 = vmatprep.mubr.bf16.mxu0 0
  %1854 = vmatmul.mubr.bf16.gmra.mxu0 %v1816
  %v1855 = vpop.f32.mrf.mxu0
  %v1856 = vadd.f32 %v1532, %v1855
  %v1857 = vpop.f32.mrf.mxu0
  %v1858 = vpop.f32.mrf.mxu0
  %v1859 = vpop.f32.mrf.mxu0
  %1860 = vdwg.mxu0
  %v1862 = vsel %vm208, %v1498, 0
  %v1865 = vsel %vm208, %v1526, 0
  %1867 = vmatprep.subr.bf16.mxu0 0
  %1868 = vmatpush1.bf16.xpose.msra.mxu0 0
  %1869 = vmatprep.subr.bf16.mxu0 0
  %1870 = vmatpush1.bf16.xpose.msra.mxu0 0
  %1871 = vmatprep.subr.bf16.mxu0 0
  %1872 = vmatpush1.bf16.xpose.msra.mxu0 0
  %1873 = vmatprep.subr.bf16.mxu0 0
  %1874 = vmatpush1.bf16.xpose.msra.mxu0 0
  %1875 = vmatprep.subr.bf16.mxu0 0
  %1876 = vmatpush1.bf16.xpose.msra.mxu0 0
  %1877 = vmatprep.subr.bf16.mxu0 0
  %1878 = vmatpush1.bf16.xpose.msra.mxu0 0
  %1879 = vmatprep.subr.bf16.mxu0 0
  %1880 = vmatpush1.bf16.xpose.msra.mxu0 0
  %1881 = vmatprep.subr.bf16.mxu0 0
  %1882 = vmatpush1.bf16.xpose.msra.mxu0 %v1865
  %1883 = vmatprep.subr.bf16.mxu0 0
  %1884 = vmatpush2.bf16.xpose.msra.mxu0 0
  %1885 = vmatprep.subr.bf16.mxu0 0
  %1886 = vmatpush2.bf16.xpose.msra.mxu0 0
  %1887 = vmatprep.subr.bf16.mxu0 0
  %1888 = vmatpush2.bf16.xpose.msra.mxu0 0
  %1889 = vmatprep.subr.bf16.mxu0 0
  %1890 = vmatpush2.bf16.xpose.msra.mxu0 0
  %1891 = vmatprep.subr.bf16.mxu0 0
  %1892 = vmatpush2.bf16.xpose.msra.mxu0 0
  %1893 = vmatprep.subr.bf16.mxu0 0
  %1894 = vmatpush2.bf16.xpose.msra.mxu0 0
  %1895 = vmatprep.subr.bf16.mxu0 0
  %1896 = vmatpush2.bf16.xpose.msra.mxu0 0
  %1897 = vmatprep.subr.bf16.mxu0 0
  %1898 = vmatpush2.bf16.xpose.msra.mxu0 0
  %1899 = vmatprep.mubr.bf16.mxu0 0
  %1900 = vmatmul.mubr.bf16.gmra.mxu0 %v1862
  %v1901 = vpop.f32.mrf.mxu0
  %v1902 = vadd.f32 %v1536, %v1901
  %v1903 = vpop.f32.mrf.mxu0
  %v1904 = vpop.f32.mrf.mxu0
  %v1905 = vpop.f32.mrf.mxu0
  %1906 = vdwg.mxu0
  %v1907 = vsel %vm208, %v1580, -inf
  %1908 = vmax.xlane.f32.xlu0 %v1907
  %v1909 = vpop.xlane.xlu0 %1908
  %v1910 = vsel %vm208, %v1626, -inf
  %1911 = vmax.xlane.f32.xlu0 %v1910
  %v1912 = vpop.xlane.xlu0 %1911
  %v1913 = vsel %vm208, %v1672, -inf
  %1914 = vmax.xlane.f32.xlu0 %v1913
  %v1915 = vpop.xlane.xlu0 %1914
  %v1916 = vsel %vm208, %v1718, -inf
  %1917 = vmax.xlane.f32.xlu0 %v1916
  %v1918 = vpop.xlane.xlu0 %1917
  %v1919 = vsel %vm208, %v1764, -inf
  %1920 = vmax.xlane.f32.xlu0 %v1919
  %v1921 = vpop.xlane.xlu0 %1920
  %v1922 = vsel %vm208, %v1810, -inf
  %1923 = vmax.xlane.f32.xlu0 %v1922
  %v1924 = vpop.xlane.xlu0 %1923
  %v1925 = vsel %vm208, %v1856, -inf
  %1926 = vmax.xlane.f32.xlu0 %v1925
  %v1927 = vpop.xlane.xlu0 %1926
  %v1928 = vsel %vm208, %v1902, -inf
  %1929 = vmax.xlane.f32.xlu0 %v1928
  %v1930 = vpop.xlane.xlu0 %1929
  %v1931 = vsub.f32 %v1580, %v1909
  %v1932 = vsub.f32 %v1626, %v1912
  %v1933 = vsub.f32 %v1672, %v1915
  %v1934 = vsub.f32 %v1718, %v1918
  %v1935 = vsub.f32 %v1764, %v1921
  %v1936 = vsub.f32 %v1810, %v1924
  %v1937 = vsub.f32 %v1856, %v1927
  %v1938 = vsub.f32 %v1902, %v1930
  %v1939 = vmul.f32 %v1931, 1.442695
  %v1940 = vpow.pop %v1939
  %v1941 = vmul.f32 %v1932, 1.442695
  %v1942 = vpow.pop %v1941
  %v1943 = vmul.f32 %v1933, 1.442695
  %v1944 = vpow.pop %v1943
  %v1945 = vmul.f32 %v1934, 1.442695
  %v1946 = vpow.pop %v1945
  %v1947 = vmul.f32 %v1935, 1.442695
  %v1948 = vpow.pop %v1947
  %v1949 = vmul.f32 %v1936, 1.442695
  %v1950 = vpow.pop %v1949
  %v1951 = vmul.f32 %v1937, 1.442695
  %v1952 = vpow.pop %v1951
  %v1953 = vmul.f32 %v1938, 1.442695
  %v1954 = vpow.pop %v1953
  %v1955 = vsel %vm208, %v1940, 0.0
  %1956 = vadd.xlane.f32.xlu0 %v1955
  %v1957 = vpop.xlane.xlu0 %1956
  %v1958 = vsel %vm208, %v1942, 0.0
  %1959 = vadd.xlane.f32.xlu0 %v1958
  %v1960 = vpop.xlane.xlu0 %1959
  %v1961 = vsel %vm208, %v1944, 0.0
  %1962 = vadd.xlane.f32.xlu0 %v1961
  %v1963 = vpop.xlane.xlu0 %1962
  %v1964 = vsel %vm208, %v1946, 0.0
  %1965 = vadd.xlane.f32.xlu0 %v1964
  %v1966 = vpop.xlane.xlu0 %1965
  %v1967 = vsel %vm208, %v1948, 0.0
  %1968 = vadd.xlane.f32.xlu0 %v1967
  %v1969 = vpop.xlane.xlu0 %1968
  %v1970 = vsel %vm208, %v1950, 0.0
  %1971 = vadd.xlane.f32.xlu0 %v1970
  %v1972 = vpop.xlane.xlu0 %1971
  %v1973 = vsel %vm208, %v1952, 0.0
  %1974 = vadd.xlane.f32.xlu0 %v1973
  %v1975 = vpop.xlane.xlu0 %1974
  %v1976 = vsel %vm208, %v1954, 0.0
  %1977 = vadd.xlane.f32.xlu0 %v1976
  %v1978 = vpop.xlane.xlu0 %1977
  %v1979 = vrcp.pop %v1957
  %v1980 = vrcp.pop %v1960
  %v1981 = vrcp.pop %v1963
  %v1982 = vrcp.pop %v1966
  %v1983 = vrcp.pop %v1969
  %v1984 = vrcp.pop %v1972
  %v1985 = vrcp.pop %v1975
  %v1986 = vrcp.pop %v1978
  %v1987 = vmul.f32 %v1940, %v1979
  %v1988 = vmul.f32 %v1942, %v1980
  %v1989 = vmul.f32 %v1944, %v1981
  %v1990 = vmul.f32 %v1946, %v1982
  %v1991 = vmul.f32 %v1948, %v1983
  %v1992 = vmul.f32 %v1950, %v1984
  %v1993 = vmul.f32 %v1952, %v1985
  %v1994 = vmul.f32 %v1954, %v1986
  %v1995 = vpack.c.bf16 %v1987, %v1987
  %v1996 = vpack.c.bf16 %v1988, %v1988
  %v1997 = vpack.c.bf16 %v1989, %v1989
  %v1998 = vpack.c.bf16 %v1990, %v1990
  %v1999 = vpack.c.bf16 %v1991, %v1991
  %v2000 = vpack.c.bf16 %v1992, %v1992
  %v2001 = vpack.c.bf16 %v1993, %v1993
  %v2002 = vpack.c.bf16 %v1994, %v1994
  %2004 = vrot.lane.b32.xlu0 %v1519, 96
  %v2005 = vpop.permute.xlu0 %2004
  %v2007 = vsel %vm208, %v1995, 0
  %v2010 = vsel %vm699, %v2005, 0
  %2012 = vmatprep.subr.bf16.mxu0 0
  %2013 = vmatpush1.bf16.msra.mxu0 0
  %2014 = vmatprep.subr.bf16.mxu0 0
  %2015 = vmatpush1.bf16.msra.mxu0 0
  %2016 = vmatprep.subr.bf16.mxu0 0
  %2017 = vmatpush1.bf16.msra.mxu0 0
  %2018 = vmatprep.subr.bf16.mxu0 0
  %2019 = vmatpush1.bf16.msra.mxu0 0
  %2020 = vmatprep.subr.bf16.mxu0 0
  %2021 = vmatpush1.bf16.msra.mxu0 0
  %2022 = vmatprep.subr.bf16.mxu0 0
  %2023 = vmatpush1.bf16.msra.mxu0 0
  %2024 = vmatprep.subr.bf16.mxu0 0
  %2025 = vmatpush1.bf16.msra.mxu0 0
  %2026 = vmatprep.subr.bf16.mxu0 0
  %2027 = vmatpush1.bf16.msra.mxu0 %v2010
  %2028 = vmatprep.subr.bf16.mxu0 0
  %2029 = vmatpush2.bf16.msra.mxu0 0
  %2030 = vmatprep.subr.bf16.mxu0 0
  %2031 = vmatpush2.bf16.msra.mxu0 0
  %2032 = vmatprep.subr.bf16.mxu0 0
  %2033 = vmatpush2.bf16.msra.mxu0 0
  %2034 = vmatprep.subr.bf16.mxu0 0
  %2035 = vmatpush2.bf16.msra.mxu0 0
  %2036 = vmatprep.subr.bf16.mxu0 0
  %2037 = vmatpush2.bf16.msra.mxu0 0
  %2038 = vmatprep.subr.bf16.mxu0 0
  %2039 = vmatpush2.bf16.msra.mxu0 0
  %2040 = vmatprep.subr.bf16.mxu0 0
  %2041 = vmatpush2.bf16.msra.mxu0 0
  %2042 = vmatprep.subr.bf16.mxu0 0
  %2043 = vmatpush2.bf16.msra.mxu0 0
  %2044 = vmatprep.mubr.bf16.mxu0 0
  %2045 = vmatmul.mubr.bf16.gmra.mxu0 %v2007
  %v2046 = vpop.f32.mrf.mxu0
  %v2047 = vadd.f32 0.0, %v2046
  %v2048 = vpop.f32.mrf.mxu0
  %v2049 = vpop.f32.mrf.mxu0
  %v2050 = vpop.f32.mrf.mxu0
  %2051 = vdwg.mxu0
  %2053 = vrot.lane.b32.xlu0 %v1520, 96
  %v2054 = vpop.permute.xlu0 %2053
  %v2056 = vsel %vm208, %v1996, 0
  %v2059 = vsel %vm699, %v2054, 0
  %2061 = vmatprep.subr.bf16.mxu0 0
  %2062 = vmatpush1.bf16.msra.mxu0 0
  %2063 = vmatprep.subr.bf16.mxu0 0
  %2064 = vmatpush1.bf16.msra.mxu0 0
  %2065 = vmatprep.subr.bf16.mxu0 0
  %2066 = vmatpush1.bf16.msra.mxu0 0
  %2067 = vmatprep.subr.bf16.mxu0 0
  %2068 = vmatpush1.bf16.msra.mxu0 0
  %2069 = vmatprep.subr.bf16.mxu0 0
  %2070 = vmatpush1.bf16.msra.mxu0 0
  %2071 = vmatprep.subr.bf16.mxu0 0
  %2072 = vmatpush1.bf16.msra.mxu0 0
  %2073 = vmatprep.subr.bf16.mxu0 0
  %2074 = vmatpush1.bf16.msra.mxu0 0
  %2075 = vmatprep.subr.bf16.mxu0 0
  %2076 = vmatpush1.bf16.msra.mxu0 %v2059
  %2077 = vmatprep.subr.bf16.mxu0 0
  %2078 = vmatpush2.bf16.msra.mxu0 0
  %2079 = vmatprep.subr.bf16.mxu0 0
  %2080 = vmatpush2.bf16.msra.mxu0 0
  %2081 = vmatprep.subr.bf16.mxu0 0
  %2082 = vmatpush2.bf16.msra.mxu0 0
  %2083 = vmatprep.subr.bf16.mxu0 0
  %2084 = vmatpush2.bf16.msra.mxu0 0
  %2085 = vmatprep.subr.bf16.mxu0 0
  %2086 = vmatpush2.bf16.msra.mxu0 0
  %2087 = vmatprep.subr.bf16.mxu0 0
  %2088 = vmatpush2.bf16.msra.mxu0 0
  %2089 = vmatprep.subr.bf16.mxu0 0
  %2090 = vmatpush2.bf16.msra.mxu0 0
  %2091 = vmatprep.subr.bf16.mxu0 0
  %2092 = vmatpush2.bf16.msra.mxu0 0
  %2093 = vmatprep.mubr.bf16.mxu0 0
  %2094 = vmatmul.mubr.bf16.gmra.mxu0 %v2056
  %v2095 = vpop.f32.mrf.mxu0
  %v2096 = vadd.f32 0.0, %v2095
  %v2097 = vpop.f32.mrf.mxu0
  %v2098 = vpop.f32.mrf.mxu0
  %v2099 = vpop.f32.mrf.mxu0
  %2100 = vdwg.mxu0
  %2102 = vrot.lane.b32.xlu0 %v1521, 96
  %v2103 = vpop.permute.xlu0 %2102
  %v2105 = vsel %vm208, %v1997, 0
  %v2108 = vsel %vm699, %v2103, 0
  %2110 = vmatprep.subr.bf16.mxu0 0
  %2111 = vmatpush1.bf16.msra.mxu0 0
  %2112 = vmatprep.subr.bf16.mxu0 0
  %2113 = vmatpush1.bf16.msra.mxu0 0
  %2114 = vmatprep.subr.bf16.mxu0 0
  %2115 = vmatpush1.bf16.msra.mxu0 0
  %2116 = vmatprep.subr.bf16.mxu0 0
  %2117 = vmatpush1.bf16.msra.mxu0 0
  %2118 = vmatprep.subr.bf16.mxu0 0
  %2119 = vmatpush1.bf16.msra.mxu0 0
  %2120 = vmatprep.subr.bf16.mxu0 0
  %2121 = vmatpush1.bf16.msra.mxu0 0
  %2122 = vmatprep.subr.bf16.mxu0 0
  %2123 = vmatpush1.bf16.msra.mxu0 0
  %2124 = vmatprep.subr.bf16.mxu0 0
  %2125 = vmatpush1.bf16.msra.mxu0 %v2108
  %2126 = vmatprep.subr.bf16.mxu0 0
  %2127 = vmatpush2.bf16.msra.mxu0 0
  %2128 = vmatprep.subr.bf16.mxu0 0
  %2129 = vmatpush2.bf16.msra.mxu0 0
  %2130 = vmatprep.subr.bf16.mxu0 0
  %2131 = vmatpush2.bf16.msra.mxu0 0
  %2132 = vmatprep.subr.bf16.mxu0 0
  %2133 = vmatpush2.bf16.msra.mxu0 0
  %2134 = vmatprep.subr.bf16.mxu0 0
  %2135 = vmatpush2.bf16.msra.mxu0 0
  %2136 = vmatprep.subr.bf16.mxu0 0
  %2137 = vmatpush2.bf16.msra.mxu0 0
  %2138 = vmatprep.subr.bf16.mxu0 0
  %2139 = vmatpush2.bf16.msra.mxu0 0
  %2140 = vmatprep.subr.bf16.mxu0 0
  %2141 = vmatpush2.bf16.msra.mxu0 0
  %2142 = vmatprep.mubr.bf16.mxu0 0
  %2143 = vmatmul.mubr.bf16.gmra.mxu0 %v2105
  %v2144 = vpop.f32.mrf.mxu0
  %v2145 = vadd.f32 0.0, %v2144
  %v2146 = vpop.f32.mrf.mxu0
  %v2147 = vpop.f32.mrf.mxu0
  %v2148 = vpop.f32.mrf.mxu0
  %2149 = vdwg.mxu0
  %2151 = vrot.lane.b32.xlu0 %v1522, 96
  %v2152 = vpop.permute.xlu0 %2151
  %v2154 = vsel %vm208, %v1998, 0
  %v2157 = vsel %vm699, %v2152, 0
  %2159 = vmatprep.subr.bf16.mxu0 0
  %2160 = vmatpush1.bf16.msra.mxu0 0
  %2161 = vmatprep.subr.bf16.mxu0 0
  %2162 = vmatpush1.bf16.msra.mxu0 0
  %2163 = vmatprep.subr.bf16.mxu0 0
  %2164 = vmatpush1.bf16.msra.mxu0 0
  %2165 = vmatprep.subr.bf16.mxu0 0
  %2166 = vmatpush1.bf16.msra.mxu0 0
  %2167 = vmatprep.subr.bf16.mxu0 0
  %2168 = vmatpush1.bf16.msra.mxu0 0
  %2169 = vmatprep.subr.bf16.mxu0 0
  %2170 = vmatpush1.bf16.msra.mxu0 0
  %2171 = vmatprep.subr.bf16.mxu0 0
  %2172 = vmatpush1.bf16.msra.mxu0 0
  %2173 = vmatprep.subr.bf16.mxu0 0
  %2174 = vmatpush1.bf16.msra.mxu0 %v2157
  %2175 = vmatprep.subr.bf16.mxu0 0
  %2176 = vmatpush2.bf16.msra.mxu0 0
  %2177 = vmatprep.subr.bf16.mxu0 0
  %2178 = vmatpush2.bf16.msra.mxu0 0
  %2179 = vmatprep.subr.bf16.mxu0 0
  %2180 = vmatpush2.bf16.msra.mxu0 0
  %2181 = vmatprep.subr.bf16.mxu0 0
  %2182 = vmatpush2.bf16.msra.mxu0 0
  %2183 = vmatprep.subr.bf16.mxu0 0
  %2184 = vmatpush2.bf16.msra.mxu0 0
  %2185 = vmatprep.subr.bf16.mxu0 0
  %2186 = vmatpush2.bf16.msra.mxu0 0
  %2187 = vmatprep.subr.bf16.mxu0 0
  %2188 = vmatpush2.bf16.msra.mxu0 0
  %2189 = vmatprep.subr.bf16.mxu0 0
  %2190 = vmatpush2.bf16.msra.mxu0 0
  %2191 = vmatprep.mubr.bf16.mxu0 0
  %2192 = vmatmul.mubr.bf16.gmra.mxu0 %v2154
  %v2193 = vpop.f32.mrf.mxu0
  %v2194 = vadd.f32 0.0, %v2193
  %v2195 = vpop.f32.mrf.mxu0
  %v2196 = vpop.f32.mrf.mxu0
  %v2197 = vpop.f32.mrf.mxu0
  %2198 = vdwg.mxu0
  %2200 = vrot.lane.b32.xlu0 %v1523, 96
  %v2201 = vpop.permute.xlu0 %2200
  %v2203 = vsel %vm208, %v1999, 0
  %v2206 = vsel %vm699, %v2201, 0
  %2208 = vmatprep.subr.bf16.mxu0 0
  %2209 = vmatpush1.bf16.msra.mxu0 0
  %2210 = vmatprep.subr.bf16.mxu0 0
  %2211 = vmatpush1.bf16.msra.mxu0 0
  %2212 = vmatprep.subr.bf16.mxu0 0
  %2213 = vmatpush1.bf16.msra.mxu0 0
  %2214 = vmatprep.subr.bf16.mxu0 0
  %2215 = vmatpush1.bf16.msra.mxu0 0
  %2216 = vmatprep.subr.bf16.mxu0 0
  %2217 = vmatpush1.bf16.msra.mxu0 0
  %2218 = vmatprep.subr.bf16.mxu0 0
  %2219 = vmatpush1.bf16.msra.mxu0 0
  %2220 = vmatprep.subr.bf16.mxu0 0
  %2221 = vmatpush1.bf16.msra.mxu0 0
  %2222 = vmatprep.subr.bf16.mxu0 0
  %2223 = vmatpush1.bf16.msra.mxu0 %v2206
  %2224 = vmatprep.subr.bf16.mxu0 0
  %2225 = vmatpush2.bf16.msra.mxu0 0
  %2226 = vmatprep.subr.bf16.mxu0 0
  %2227 = vmatpush2.bf16.msra.mxu0 0
  %2228 = vmatprep.subr.bf16.mxu0 0
  %2229 = vmatpush2.bf16.msra.mxu0 0
  %2230 = vmatprep.subr.bf16.mxu0 0
  %2231 = vmatpush2.bf16.msra.mxu0 0
  %2232 = vmatprep.subr.bf16.mxu0 0
  %2233 = vmatpush2.bf16.msra.mxu0 0
  %2234 = vmatprep.subr.bf16.mxu0 0
  %2235 = vmatpush2.bf16.msra.mxu0 0
  %2236 = vmatprep.subr.bf16.mxu0 0
  %2237 = vmatpush2.bf16.msra.mxu0 0
  %2238 = vmatprep.subr.bf16.mxu0 0
  %2239 = vmatpush2.bf16.msra.mxu0 0
  %2240 = vmatprep.mubr.bf16.mxu0 0
  %2241 = vmatmul.mubr.bf16.gmra.mxu0 %v2203
  %v2242 = vpop.f32.mrf.mxu0
  %v2243 = vadd.f32 0.0, %v2242
  %v2244 = vpop.f32.mrf.mxu0
  %v2245 = vpop.f32.mrf.mxu0
  %v2246 = vpop.f32.mrf.mxu0
  %2247 = vdwg.mxu0
  %2249 = vrot.lane.b32.xlu0 %v1524, 96
  %v2250 = vpop.permute.xlu0 %2249
  %v2252 = vsel %vm208, %v2000, 0
  %v2255 = vsel %vm699, %v2250, 0
  %2257 = vmatprep.subr.bf16.mxu0 0
  %2258 = vmatpush1.bf16.msra.mxu0 0
  %2259 = vmatprep.subr.bf16.mxu0 0
  %2260 = vmatpush1.bf16.msra.mxu0 0
  %2261 = vmatprep.subr.bf16.mxu0 0
  %2262 = vmatpush1.bf16.msra.mxu0 0
  %2263 = vmatprep.subr.bf16.mxu0 0
  %2264 = vmatpush1.bf16.msra.mxu0 0
  %2265 = vmatprep.subr.bf16.mxu0 0
  %2266 = vmatpush1.bf16.msra.mxu0 0
  %2267 = vmatprep.subr.bf16.mxu0 0
  %2268 = vmatpush1.bf16.msra.mxu0 0
  %2269 = vmatprep.subr.bf16.mxu0 0
  %2270 = vmatpush1.bf16.msra.mxu0 0
  %2271 = vmatprep.subr.bf16.mxu0 0
  %2272 = vmatpush1.bf16.msra.mxu0 %v2255
  %2273 = vmatprep.subr.bf16.mxu0 0
  %2274 = vmatpush2.bf16.msra.mxu0 0
  %2275 = vmatprep.subr.bf16.mxu0 0
  %2276 = vmatpush2.bf16.msra.mxu0 0
  %2277 = vmatprep.subr.bf16.mxu0 0
  %2278 = vmatpush2.bf16.msra.mxu0 0
  %2279 = vmatprep.subr.bf16.mxu0 0
  %2280 = vmatpush2.bf16.msra.mxu0 0
  %2281 = vmatprep.subr.bf16.mxu0 0
  %2282 = vmatpush2.bf16.msra.mxu0 0
  %2283 = vmatprep.subr.bf16.mxu0 0
  %2284 = vmatpush2.bf16.msra.mxu0 0
  %2285 = vmatprep.subr.bf16.mxu0 0
  %2286 = vmatpush2.bf16.msra.mxu0 0
  %2287 = vmatprep.subr.bf16.mxu0 0
  %2288 = vmatpush2.bf16.msra.mxu0 0
  %2289 = vmatprep.mubr.bf16.mxu0 0
  %2290 = vmatmul.mubr.bf16.gmra.mxu0 %v2252
  %v2291 = vpop.f32.mrf.mxu0
  %v2292 = vadd.f32 0.0, %v2291
  %v2293 = vpop.f32.mrf.mxu0
  %v2294 = vpop.f32.mrf.mxu0
  %v2295 = vpop.f32.mrf.mxu0
  %2296 = vdwg.mxu0
  %2298 = vrot.lane.b32.xlu0 %v1525, 96
  %v2299 = vpop.permute.xlu0 %2298
  %v2301 = vsel %vm208, %v2001, 0
  %v2304 = vsel %vm699, %v2299, 0
  %2306 = vmatprep.subr.bf16.mxu0 0
  %2307 = vmatpush1.bf16.msra.mxu0 0
  %2308 = vmatprep.subr.bf16.mxu0 0
  %2309 = vmatpush1.bf16.msra.mxu0 0
  %2310 = vmatprep.subr.bf16.mxu0 0
  %2311 = vmatpush1.bf16.msra.mxu0 0
  %2312 = vmatprep.subr.bf16.mxu0 0
  %2313 = vmatpush1.bf16.msra.mxu0 0
  %2314 = vmatprep.subr.bf16.mxu0 0
  %2315 = vmatpush1.bf16.msra.mxu0 0
  %2316 = vmatprep.subr.bf16.mxu0 0
  %2317 = vmatpush1.bf16.msra.mxu0 0
  %2318 = vmatprep.subr.bf16.mxu0 0
  %2319 = vmatpush1.bf16.msra.mxu0 0
  %2320 = vmatprep.subr.bf16.mxu0 0
  %2321 = vmatpush1.bf16.msra.mxu0 %v2304
  %2322 = vmatprep.subr.bf16.mxu0 0
  %2323 = vmatpush2.bf16.msra.mxu0 0
  %2324 = vmatprep.subr.bf16.mxu0 0
  %2325 = vmatpush2.bf16.msra.mxu0 0
  %2326 = vmatprep.subr.bf16.mxu0 0
  %2327 = vmatpush2.bf16.msra.mxu0 0
  %2328 = vmatprep.subr.bf16.mxu0 0
  %2329 = vmatpush2.bf16.msra.mxu0 0
  %2330 = vmatprep.subr.bf16.mxu0 0
  %2331 = vmatpush2.bf16.msra.mxu0 0
  %2332 = vmatprep.subr.bf16.mxu0 0
  %2333 = vmatpush2.bf16.msra.mxu0 0
  %2334 = vmatprep.subr.bf16.mxu0 0
  %2335 = vmatpush2.bf16.msra.mxu0 0
  %2336 = vmatprep.subr.bf16.mxu0 0
  %2337 = vmatpush2.bf16.msra.mxu0 0
  %2338 = vmatprep.mubr.bf16.mxu0 0
  %2339 = vmatmul.mubr.bf16.gmra.mxu0 %v2301
  %v2340 = vpop.f32.mrf.mxu0
  %v2341 = vadd.f32 0.0, %v2340
  %v2342 = vpop.f32.mrf.mxu0
  %v2343 = vpop.f32.mrf.mxu0
  %v2344 = vpop.f32.mrf.mxu0
  %2345 = vdwg.mxu0
  %2347 = vrot.lane.b32.xlu0 %v1526, 96
  %v2348 = vpop.permute.xlu0 %2347
  %v2350 = vsel %vm208, %v2002, 0
  %v2353 = vsel %vm699, %v2348, 0
  %2355 = vmatprep.subr.bf16.mxu0 0
  %2356 = vmatpush1.bf16.msra.mxu0 0
  %2357 = vmatprep.subr.bf16.mxu0 0
  %2358 = vmatpush1.bf16.msra.mxu0 0
  %2359 = vmatprep.subr.bf16.mxu0 0
  %2360 = vmatpush1.bf16.msra.mxu0 0
  %2361 = vmatprep.subr.bf16.mxu0 0
  %2362 = vmatpush1.bf16.msra.mxu0 0
  %2363 = vmatprep.subr.bf16.mxu0 0
  %2364 = vmatpush1.bf16.msra.mxu0 0
  %2365 = vmatprep.subr.bf16.mxu0 0
  %2366 = vmatpush1.bf16.msra.mxu0 0
  %2367 = vmatprep.subr.bf16.mxu0 0
  %2368 = vmatpush1.bf16.msra.mxu0 0
  %2369 = vmatprep.subr.bf16.mxu0 0
  %2370 = vmatpush1.bf16.msra.mxu0 %v2353
  %2371 = vmatprep.subr.bf16.mxu0 0
  %2372 = vmatpush2.bf16.msra.mxu0 0
  %2373 = vmatprep.subr.bf16.mxu0 0
  %2374 = vmatpush2.bf16.msra.mxu0 0
  %2375 = vmatprep.subr.bf16.mxu0 0
  %2376 = vmatpush2.bf16.msra.mxu0 0
  %2377 = vmatprep.subr.bf16.mxu0 0
  %2378 = vmatpush2.bf16.msra.mxu0 0
  %2379 = vmatprep.subr.bf16.mxu0 0
  %2380 = vmatpush2.bf16.msra.mxu0 0
  %2381 = vmatprep.subr.bf16.mxu0 0
  %2382 = vmatpush2.bf16.msra.mxu0 0
  %2383 = vmatprep.subr.bf16.mxu0 0
  %2384 = vmatpush2.bf16.msra.mxu0 0
  %2385 = vmatprep.subr.bf16.mxu0 0
  %2386 = vmatpush2.bf16.msra.mxu0 0
  %2387 = vmatprep.mubr.bf16.mxu0 0
  %2388 = vmatmul.mubr.bf16.gmra.mxu0 %v2350
  %v2389 = vpop.f32.mrf.mxu0
  %v2390 = vadd.f32 0.0, %v2389
  %v2391 = vpop.f32.mrf.mxu0
  %v2392 = vpop.f32.mrf.mxu0
  %v2393 = vpop.f32.mrf.mxu0
  %2394 = vdwg.mxu0
  %v2395 = vpack.c.bf16 %v2096, %v2047
  %v2396 = vpack.c.bf16 %v2194, %v2145
  %v2398 = vsel %vm208, %v2396, 0
  %v2401 = vsel %vm699, %v1465, 0
  %2403 = vmatprep.subr.bf16.mxu0 0
  %2404 = vmatpush1.bf16.msra.mxu0 0
  %2405 = vmatprep.subr.bf16.mxu0 0
  %2406 = vmatpush1.bf16.msra.mxu0 0
  %2407 = vmatprep.subr.bf16.mxu0 0
  %2408 = vmatpush1.bf16.msra.mxu0 0
  %2409 = vmatprep.subr.bf16.mxu0 0
  %2410 = vmatpush1.bf16.msra.mxu0 0
  %2411 = vmatprep.subr.bf16.mxu0 0
  %2412 = vmatpush1.bf16.msra.mxu0 0
  %2413 = vmatprep.subr.bf16.mxu0 0
  %2414 = vmatpush1.bf16.msra.mxu0 0
  %2415 = vmatprep.subr.bf16.mxu0 0
  %2416 = vmatpush1.bf16.msra.mxu0 0
  %2417 = vmatprep.subr.bf16.mxu0 0
  %2418 = vmatpush1.bf16.msra.mxu0 %v2401
  %2419 = vmatprep.subr.bf16.mxu0 0
  %2420 = vmatpush2.bf16.msra.mxu0 0
  %2421 = vmatprep.subr.bf16.mxu0 0
  %2422 = vmatpush2.bf16.msra.mxu0 0
  %2423 = vmatprep.subr.bf16.mxu0 0
  %2424 = vmatpush2.bf16.msra.mxu0 0
  %2425 = vmatprep.subr.bf16.mxu0 0
  %2426 = vmatpush2.bf16.msra.mxu0 0
  %2427 = vmatprep.subr.bf16.mxu0 0
  %2428 = vmatpush2.bf16.msra.mxu0 0
  %2429 = vmatprep.subr.bf16.mxu0 0
  %2430 = vmatpush2.bf16.msra.mxu0 0
  %2431 = vmatprep.subr.bf16.mxu0 0
  %2432 = vmatpush2.bf16.msra.mxu0 0
  %2433 = vmatprep.subr.bf16.mxu0 0
  %2434 = vmatpush2.bf16.msra.mxu0 0
  %2435 = vmatprep.mubr.bf16.mxu0 0
  %2436 = vmatmul.mubr.bf16.gmra.mxu0 %v2398
  %v2437 = vpop.f32.mrf.mxu0
  %v2438 = vadd.f32 0.0, %v2437
  %v2439 = vpop.f32.mrf.mxu0
  %v2440 = vpop.f32.mrf.mxu0
  %v2441 = vadd.f32 0.0, %v2440
  %v2442 = vpop.f32.mrf.mxu0
  %2443 = vdwg.mxu0
  %v2445 = vsel %vm208, %v2395, 0
  %v2448 = vsel %vm699, %v1464, 0
  %2450 = vmatprep.subr.bf16.mxu0 0
  %2451 = vmatpush1.bf16.msra.mxu0 0
  %2452 = vmatprep.subr.bf16.mxu0 0
  %2453 = vmatpush1.bf16.msra.mxu0 0
  %2454 = vmatprep.subr.bf16.mxu0 0
  %2455 = vmatpush1.bf16.msra.mxu0 0
  %2456 = vmatprep.subr.bf16.mxu0 0
  %2457 = vmatpush1.bf16.msra.mxu0 0
  %2458 = vmatprep.subr.bf16.mxu0 0
  %2459 = vmatpush1.bf16.msra.mxu0 0
  %2460 = vmatprep.subr.bf16.mxu0 0
  %2461 = vmatpush1.bf16.msra.mxu0 0
  %2462 = vmatprep.subr.bf16.mxu0 0
  %2463 = vmatpush1.bf16.msra.mxu0 0
  %2464 = vmatprep.subr.bf16.mxu0 0
  %2465 = vmatpush1.bf16.msra.mxu0 %v2448
  %2466 = vmatprep.subr.bf16.mxu0 0
  %2467 = vmatpush2.bf16.msra.mxu0 0
  %2468 = vmatprep.subr.bf16.mxu0 0
  %2469 = vmatpush2.bf16.msra.mxu0 0
  %2470 = vmatprep.subr.bf16.mxu0 0
  %2471 = vmatpush2.bf16.msra.mxu0 0
  %2472 = vmatprep.subr.bf16.mxu0 0
  %2473 = vmatpush2.bf16.msra.mxu0 0
  %2474 = vmatprep.subr.bf16.mxu0 0
  %2475 = vmatpush2.bf16.msra.mxu0 0
  %2476 = vmatprep.subr.bf16.mxu0 0
  %2477 = vmatpush2.bf16.msra.mxu0 0
  %2478 = vmatprep.subr.bf16.mxu0 0
  %2479 = vmatpush2.bf16.msra.mxu0 0
  %2480 = vmatprep.subr.bf16.mxu0 0
  %2481 = vmatpush2.bf16.msra.mxu0 0
  %2482 = vmatprep.mubr.bf16.mxu0 0
  %2483 = vmatmul.mubr.bf16.gmra.mxu0 %v2445
  %v2484 = vpop.f32.mrf.mxu0
  %v2485 = vadd.f32 %v2438, %v2484
  %v2486 = vpop.f32.mrf.mxu0
  %v2487 = vpop.f32.mrf.mxu0
  %v2488 = vadd.f32 %v2441, %v2487
  %v2489 = vpop.f32.mrf.mxu0
  %2490 = vdwg.mxu0
  %v2491 = vpack.c.bf16 %v2292, %v2243
  %v2493 = vsel %vm208, %v2491, 0
  %v2496 = vsel %vm699, %v1466, 0
  %2498 = vmatprep.subr.bf16.mxu0 0
  %2499 = vmatpush1.bf16.msra.mxu0 0
  %2500 = vmatprep.subr.bf16.mxu0 0
  %2501 = vmatpush1.bf16.msra.mxu0 0
  %2502 = vmatprep.subr.bf16.mxu0 0
  %2503 = vmatpush1.bf16.msra.mxu0 0
  %2504 = vmatprep.subr.bf16.mxu0 0
  %2505 = vmatpush1.bf16.msra.mxu0 0
  %2506 = vmatprep.subr.bf16.mxu0 0
  %2507 = vmatpush1.bf16.msra.mxu0 0
  %2508 = vmatprep.subr.bf16.mxu0 0
  %2509 = vmatpush1.bf16.msra.mxu0 0
  %2510 = vmatprep.subr.bf16.mxu0 0
  %2511 = vmatpush1.bf16.msra.mxu0 0
  %2512 = vmatprep.subr.bf16.mxu0 0
  %2513 = vmatpush1.bf16.msra.mxu0 %v2496
  %2514 = vmatprep.subr.bf16.mxu0 0
  %2515 = vmatpush2.bf16.msra.mxu0 0
  %2516 = vmatprep.subr.bf16.mxu0 0
  %2517 = vmatpush2.bf16.msra.mxu0 0
  %2518 = vmatprep.subr.bf16.mxu0 0
  %2519 = vmatpush2.bf16.msra.mxu0 0
  %2520 = vmatprep.subr.bf16.mxu0 0
  %2521 = vmatpush2.bf16.msra.mxu0 0
  %2522 = vmatprep.subr.bf16.mxu0 0
  %2523 = vmatpush2.bf16.msra.mxu0 0
  %2524 = vmatprep.subr.bf16.mxu0 0
  %2525 = vmatpush2.bf16.msra.mxu0 0
  %2526 = vmatprep.subr.bf16.mxu0 0
  %2527 = vmatpush2.bf16.msra.mxu0 0
  %2528 = vmatprep.subr.bf16.mxu0 0
  %2529 = vmatpush2.bf16.msra.mxu0 0
  %2530 = vmatprep.mubr.bf16.mxu0 0
  %2531 = vmatmul.mubr.bf16.gmra.mxu0 %v2493
  %v2532 = vpop.f32.mrf.mxu0
  %v2533 = vadd.f32 0.0, %v2532
  %v2534 = vpop.f32.mrf.mxu0
  %v2535 = vpop.f32.mrf.mxu0
  %v2536 = vadd.f32 0.0, %v2535
  %v2537 = vpop.f32.mrf.mxu0
  %2538 = vdwg.mxu0
  %v2539 = vadd.f32 %v2485, %v2533
  %v2540 = vadd.f32 %v2488, %v2536
  %v2541 = vpack.c.bf16 %v2390, %v2341
  %v2543 = vsel %vm208, %v2541, 0
  %v2546 = vsel %vm699, %v1467, 0
  %2548 = vmatprep.subr.bf16.mxu0 0
  %2549 = vmatpush1.bf16.msra.mxu0 0
  %2550 = vmatprep.subr.bf16.mxu0 0
  %2551 = vmatpush1.bf16.msra.mxu0 0
  %2552 = vmatprep.subr.bf16.mxu0 0
  %2553 = vmatpush1.bf16.msra.mxu0 0
  %2554 = vmatprep.subr.bf16.mxu0 0
  %2555 = vmatpush1.bf16.msra.mxu0 0
  %2556 = vmatprep.subr.bf16.mxu0 0
  %2557 = vmatpush1.bf16.msra.mxu0 0
  %2558 = vmatprep.subr.bf16.mxu0 0
  %2559 = vmatpush1.bf16.msra.mxu0 0
  %2560 = vmatprep.subr.bf16.mxu0 0
  %2561 = vmatpush1.bf16.msra.mxu0 0
  %2562 = vmatprep.subr.bf16.mxu0 0
  %2563 = vmatpush1.bf16.msra.mxu0 %v2546
  %2564 = vmatprep.subr.bf16.mxu0 0
  %2565 = vmatpush2.bf16.msra.mxu0 0
  %2566 = vmatprep.subr.bf16.mxu0 0
  %2567 = vmatpush2.bf16.msra.mxu0 0
  %2568 = vmatprep.subr.bf16.mxu0 0
  %2569 = vmatpush2.bf16.msra.mxu0 0
  %2570 = vmatprep.subr.bf16.mxu0 0
  %2571 = vmatpush2.bf16.msra.mxu0 0
  %2572 = vmatprep.subr.bf16.mxu0 0
  %2573 = vmatpush2.bf16.msra.mxu0 0
  %2574 = vmatprep.subr.bf16.mxu0 0
  %2575 = vmatpush2.bf16.msra.mxu0 0
  %2576 = vmatprep.subr.bf16.mxu0 0
  %2577 = vmatpush2.bf16.msra.mxu0 0
  %2578 = vmatprep.subr.bf16.mxu0 0
  %2579 = vmatpush2.bf16.msra.mxu0 0
  %2580 = vmatprep.mubr.bf16.mxu0 0
  %2581 = vmatmul.mubr.bf16.gmra.mxu0 %v2543
  %v2582 = vpop.f32.mrf.mxu0
  %v2583 = vadd.f32 0.0, %v2582
  %v2584 = vpop.f32.mrf.mxu0
  %v2585 = vpop.f32.mrf.mxu0
  %v2586 = vadd.f32 0.0, %v2585
  %v2587 = vpop.f32.mrf.mxu0
  %2588 = vdwg.mxu0
  %v2589 = vadd.f32 %v2539, %v2583
  %v2590 = vadd.f32 %v2540, %v2586
  %v2592 = vlaneseq
  %v2593 = vshrl.u32 %v2592, 7
  %v2594 = vsub.s32 0, %v2593
  %v2595 = vrot.slane %v1468, %v2594
  %v2597 = vadd.f32 %v2589, %v2595
  %v2598 = vadd.f32 %v2590, %v2595
  %v2599 = vld [vmem:[%s12] sm:$0x1]
  %v2600 = vld [vmem:[%s13] sm:$0x1]
  %v2601 = vld [vmem:[%s14] sm:$0xf]
  %v2602 = vld [vmem:[%s14 + $0x4] sm:$0xf]
  %v2603 = vld [vmem:[%s14 + $0x8] sm:$0xf]
  %v2604 = vld [vmem:[%s14 + $0xc] sm:$0xf]
  %v2605 = vld [vmem:[%s15] sm:$0x1]
  %v2606 = vld [vmem:[%s16] sm:$0xf]
  %v2607 = vld [vmem:[%s16 + $0x4] sm:$0xf]
  %v2608 = vld [vmem:[%s16 + $0x8] sm:$0xf]
  %v2609 = vld [vmem:[%s16 + $0xc] sm:$0xf]
  %v2610 = vld [vmem:[%s16 + $0x10] sm:$0xf]
  %v2611 = vld [vmem:[%s16 + $0x14] sm:$0xf]
  %v2612 = vld [vmem:[%s16 + $0x18] sm:$0xf]
  %v2613 = vld [vmem:[%s16 + $0x1c] sm:$0xf]
  %v2614 = vld [vmem:[%s17] sm:$0x1]
  %v2615 = vld [vmem:[%s18] sm:$0x1]
  %v2616 = vld [vmem:[%s19] sm:$0x1]
  %v2617 = vadd.f32 %v2597, %v1328
  %v2618 = vadd.f32 %v2598, %v1329
  %v2619 = vsel %vm91, %v2617, 0.0
  %2620 = vadd.xlane.f32.xlu0 %v2619
  %v2621 = vpop.xlane.xlu0 %2620
  %v2622 = vsel %vm91, %v2618, 0.0
  %2623 = vadd.xlane.f32.xlu0 %v2622
  %v2624 = vpop.xlane.xlu0 %2623
  %v2625 = vmul.f32 %v2621, %v1293
  %v2626 = vmul.f32 %v2624, %v1293
  %v2627 = vsub.f32 %v2617, %v2625
  %v2628 = vsub.f32 %v2618, %v2626
  %v2629 = vmul.f32 %v2627, %v2627
  %v2630 = vmul.f32 %v2628, %v2628
  %v2631 = vsel %vm91, %v2629, 0.0
  %2632 = vadd.xlane.f32.xlu0 %v2631
  %v2633 = vpop.xlane.xlu0 %2632
  %v2634 = vsel %vm91, %v2630, 0.0
  %2635 = vadd.xlane.f32.xlu0 %v2634
  %v2636 = vpop.xlane.xlu0 %2635
  %v2637 = vmul.f32 %v2633, %v1293
  %v2638 = vmul.f32 %v2636, %v1293
  %v2639 = vadd.f32 %v2637, 1e-05
  %v2640 = vadd.f32 %v2638, 1e-05
  %v2641 = vrsqrt.pop %v2639
  %v2642 = vrsqrt.pop %v2640
  %v2643 = vmul.f32 %v2627, %v2641
  %v2644 = vmul.f32 %v2628, %v2642
  %v2646 = vlaneseq
  %v2647 = vshrl.u32 %v2646, 7
  %v2648 = vsub.s32 0, %v2647
  %v2649 = vrot.slane %v2599, %v2648
  %v2651 = vmul.f32 %v2643, %v2649
  %v2652 = vmul.f32 %v2644, %v2649
  %v2654 = vlaneseq
  %v2655 = vshrl.u32 %v2654, 7
  %v2656 = vsub.s32 0, %v2655
  %v2657 = vrot.slane %v2600, %v2656
  %v2659 = vadd.f32 %v2651, %v2657
  %v2660 = vadd.f32 %v2652, %v2657
  %v2661 = vpack.c.bf16 %v2660, %v2659
  %v2663 = vlaneseq
  %v2664 = vshrl.u32 %v2663, 7
  %v2665 = vsub.s32 0, %v2664
  %v2666 = vrot.slane %v2605, %v2665
  %v2672 = vunpack.c.l.b16 %v2601
  %v2673 = vunpack.c.l.b16 %v2602
  %v2674 = vunpack.c.l.b16 %v2603
  %v2675 = vunpack.c.l.b16 %v2604
  %v2676 = vpack.c.b16 %v2673, %v2672
  %v2677 = vpack.c.b16 %v2675, %v2674
  %v2681 = vsel %vm91, %v2661, 0
  %2683 = vmatprep.subr.bf16.mxu0 0
  %2684 = vmatpush1.bf16.msra.mxu0 0
  %2685 = vmatprep.subr.bf16.mxu0 0
  %2686 = vmatpush1.bf16.msra.mxu0 0
  %2687 = vmatprep.subr.bf16.mxu0 0
  %2688 = vmatpush1.bf16.msra.mxu0 0
  %2689 = vmatprep.subr.bf16.mxu0 0
  %2690 = vmatpush1.bf16.msra.mxu0 0
  %2691 = vmatprep.subr.bf16.mxu0 0
  %2692 = vmatpush1.bf16.msra.mxu0 0
  %2693 = vmatprep.subr.bf16.mxu0 0
  %2694 = vmatpush1.bf16.msra.mxu0 0
  %2695 = vmatprep.subr.bf16.mxu0 0
  %2696 = vmatpush1.bf16.msra.mxu0 %v2677
  %2697 = vmatprep.subr.bf16.mxu0 0
  %2698 = vmatpush1.bf16.msra.mxu0 %v2676
  %2699 = vmatprep.subr.bf16.mxu0 0
  %2700 = vmatpush2.bf16.msra.mxu0 0
  %2701 = vmatprep.subr.bf16.mxu0 0
  %2702 = vmatpush2.bf16.msra.mxu0 0
  %2703 = vmatprep.subr.bf16.mxu0 0
  %2704 = vmatpush2.bf16.msra.mxu0 0
  %2705 = vmatprep.subr.bf16.mxu0 0
  %2706 = vmatpush2.bf16.msra.mxu0 0
  %2707 = vmatprep.subr.bf16.mxu0 0
  %2708 = vmatpush2.bf16.msra.mxu0 0
  %2709 = vmatprep.subr.bf16.mxu0 0
  %2710 = vmatpush2.bf16.msra.mxu0 0
  %2711 = vmatprep.subr.bf16.mxu0 0
  %2712 = vmatpush2.bf16.msra.mxu0 0
  %2713 = vmatprep.subr.bf16.mxu0 0
  %2714 = vmatpush2.bf16.msra.mxu0 0
  %2715 = vmatprep.mubr.bf16.mxu0 0
  %2716 = vmatmul.mubr.bf16.gmra.mxu0 %v2681
  %v2717 = vpop.f32.mrf.mxu0
  %v2718 = vadd.f32 %v2666, %v2717
  %v2719 = vpop.f32.mrf.mxu0
  %v2720 = vpop.f32.mrf.mxu0
  %v2721 = vadd.f32 %v2666, %v2720
  %v2722 = vpop.f32.mrf.mxu0
  %2723 = vdwg.mxu0
  %vm2724 = vcmp.ge.f32.partialorder %v2718, 0.0
  %vm2725 = vcmp.ge.f32.partialorder %v2721, 0.0
  %v2726 = vmul.f32 %v2718, 0.01
  %v2727 = vmul.f32 %v2721, 0.01
  %v2728 = vsel %vm2724, %v2718, %v2726
  %v2729 = vsel %vm2725, %v2721, %v2727
  %v2730 = vpack.c.bf16 %v2729, %v2728
  %v2732 = vlaneseq
  %v2733 = vshrl.u32 %v2732, 7
  %v2734 = vsub.s32 0, %v2733
  %v2735 = vrot.slane %v2614, %v2734
  %v2745 = vunpack.c.l.b16 %v2606
  %v2746 = vunpack.c.l.b16 %v2607
  %v2747 = vunpack.c.l.b16 %v2608
  %v2748 = vunpack.c.l.b16 %v2609
  %v2749 = vunpack.c.l.b16 %v2610
  %v2750 = vunpack.c.l.b16 %v2611
  %v2751 = vunpack.c.l.b16 %v2612
  %v2752 = vunpack.c.l.b16 %v2613
  %v2753 = vpack.c.b16 %v2746, %v2745
  %v2754 = vpack.c.b16 %v2748, %v2747
  %v2755 = vpack.c.b16 %v2750, %v2749
  %v2756 = vpack.c.b16 %v2752, %v2751
  %vm2761 = vcmask 523264
  %v2763 = vsel %vm2761, %v2730, 0
  %2765 = vmatprep.subr.bf16.mxu0 0
  %2766 = vmatpush1.bf16.msra.mxu0 0
  %2767 = vmatprep.subr.bf16.mxu0 0
  %2768 = vmatpush1.bf16.msra.mxu0 0
  %2769 = vmatprep.subr.bf16.mxu0 0
  %2770 = vmatpush1.bf16.msra.mxu0 0
  %2771 = vmatprep.subr.bf16.mxu0 0
  %2772 = vmatpush1.bf16.msra.mxu0 0
  %2773 = vmatprep.subr.bf16.mxu0 0
  %2774 = vmatpush1.bf16.msra.mxu0 %v2756
  %2775 = vmatprep.subr.bf16.mxu0 0
  %2776 = vmatpush1.bf16.msra.mxu0 %v2755
  %2777 = vmatprep.subr.bf16.mxu0 0
  %2778 = vmatpush1.bf16.msra.mxu0 %v2754
  %2779 = vmatprep.subr.bf16.mxu0 0
  %2780 = vmatpush1.bf16.msra.mxu0 %v2753
  %2781 = vmatprep.subr.bf16.mxu0 0
  %2782 = vmatpush2.bf16.msra.mxu0 0
  %2783 = vmatprep.subr.bf16.mxu0 0
  %2784 = vmatpush2.bf16.msra.mxu0 0
  %2785 = vmatprep.subr.bf16.mxu0 0
  %2786 = vmatpush2.bf16.msra.mxu0 0
  %2787 = vmatprep.subr.bf16.mxu0 0
  %2788 = vmatpush2.bf16.msra.mxu0 0
  %2789 = vmatprep.subr.bf16.mxu0 0
  %2790 = vmatpush2.bf16.msra.mxu0 0
  %2791 = vmatprep.subr.bf16.mxu0 0
  %2792 = vmatpush2.bf16.msra.mxu0 0
  %2793 = vmatprep.subr.bf16.mxu0 0
  %2794 = vmatpush2.bf16.msra.mxu0 0
  %2795 = vmatprep.subr.bf16.mxu0 0
  %2796 = vmatpush2.bf16.msra.mxu0 0
  %2797 = vmatprep.mubr.bf16.mxu0 0
  %2798 = vmatmul.mubr.bf16.gmra.mxu0 %v2763
  %v2799 = vpop.f32.mrf.mxu0
  %v2800 = vadd.f32 %v2735, %v2799
  %v2801 = vpop.f32.mrf.mxu0
  %v2802 = vpop.f32.mrf.mxu0
  %v2803 = vadd.f32 %v2735, %v2802
  %v2804 = vpop.f32.mrf.mxu0
  %2805 = vdwg.mxu0
  %v2806 = vadd.f32 %v2800, %v2659
  %v2807 = vadd.f32 %v2803, %v2660
  %v2808 = vsel %vm91, %v2806, 0.0
  %2809 = vadd.xlane.f32.xlu0 %v2808
  %v2810 = vpop.xlane.xlu0 %2809
  %v2811 = vsel %vm91, %v2807, 0.0
  %2812 = vadd.xlane.f32.xlu0 %v2811
  %v2813 = vpop.xlane.xlu0 %2812
  %v2814 = vmul.f32 %v2810, %v1293
  %v2815 = vmul.f32 %v2813, %v1293
  %v2816 = vsub.f32 %v2806, %v2814
  %v2817 = vsub.f32 %v2807, %v2815
  %v2818 = vmul.f32 %v2816, %v2816
  %v2819 = vmul.f32 %v2817, %v2817
  %v2820 = vsel %vm91, %v2818, 0.0
  %2821 = vadd.xlane.f32.xlu0 %v2820
  %v2822 = vpop.xlane.xlu0 %2821
  %v2823 = vsel %vm91, %v2819, 0.0
  %2824 = vadd.xlane.f32.xlu0 %v2823
  %v2825 = vpop.xlane.xlu0 %2824
  %v2826 = vmul.f32 %v2822, %v1293
  %v2827 = vmul.f32 %v2825, %v1293
  %v2828 = vadd.f32 %v2826, 1e-05
  %v2829 = vadd.f32 %v2827, 1e-05
  %v2830 = vrsqrt.pop %v2828
  %v2831 = vrsqrt.pop %v2829
  %v2832 = vmul.f32 %v2816, %v2830
  %v2833 = vmul.f32 %v2817, %v2831
  %v2835 = vlaneseq
  %v2836 = vshrl.u32 %v2835, 7
  %v2837 = vsub.s32 0, %v2836
  %v2838 = vrot.slane %v2615, %v2837
  %v2840 = vmul.f32 %v2832, %v2838
  %v2841 = vmul.f32 %v2833, %v2838
  %v2843 = vlaneseq
  %v2844 = vshrl.u32 %v2843, 7
  %v2845 = vsub.s32 0, %v2844
  %v2846 = vrot.slane %v2616, %v2845
  %v2848 = vadd.f32 %v2840, %v2846
  %v2849 = vadd.f32 %v2841, %v2846
  %v2850 = vpack.c.bf16 %v2848, %v2848
  %v2851 = vpack.c.bf16 %v2849, %v2849
  %vm2852 = vcmask 257024
  %2853 = vst.msk [vmem:[%s20] sm:$0xf] %vm2852, %v2850
  %2854 = vst.msk [vmem:[%s20 + $0x4] sm:$0xf] %vm2852, %v2851
  // Predicated region
  $region82: #{transformer_forward.7} parent=0 // pred_check
    _
  $region83: #{transformer_forward.7} parent=0 // pred_check_branch
    %2856 = sbr.rel (0) target = $region85
  $region84: #{transformer_forward.7} parent=0 // pred_region
    _
  $region85: #{transformer_forward.7} parent=0 // pred_fallthru
    _
  // Predicated region
  $region86: #{transformer_forward.7} parent=0 // pred_check
    _
  $region87: #{transformer_forward.7} parent=0 // pred_check_branch
    %2858 = sbr.rel (0) target = $region89
  $region88: #{transformer_forward.7} parent=0 // pred_region
    _
  $region89: #{transformer_forward.7} parent=0 // pred_fallthru
    _

</llo_original>
